<compile_context>
chip_gen: v5e
topology: v5e:2x2
jax: 0.10.0
libtpu: 0.0.40
codegen_flags: <defaults>
</compile_context>

<pallas_src>
import math
from functools import partial

import jax
import jax.numpy as jnp
from jax import lax
from jax.experimental import pallas as pl
from jax.experimental.pallas import tpu as pltpu


def _decoder_block_kernel(
    x_ref, enc_ref, scale_ref,
    sa_wqkv, sa_bqkv, sa_wo, sa_bo,
    ca_wq, ca_bq, ca_wkv, ca_bkv, ca_wo, ca_bo,
    ff_w1, ff_b1, ff_w2, ff_b2,
    o_ref,
    *, d, eps,
):
  dim = x_ref.shape[-1]
  scale = scale_ref[...]                              # (1, D) f32
  inv_sqrt_dim = 1.0 / math.sqrt(dim)
  inv_sqrt_d = 1.0 / math.sqrt(d)
  bf16 = jnp.bfloat16

  def rmsnorm(h):                                     # SimpleRMSNorm (f32)
    rms = jnp.sqrt(jnp.sum(h * h, axis=-1, keepdims=True)) * inv_sqrt_dim
    inv = pl.reciprocal(rms + eps, approx=True)       # EUP slot, ~free
    return h * inv * scale

  def attend(q, k, v, wo, bo):
    # scores = q @ k^T with the transpose folded into the MXU contraction.
    s = lax.dot_general(
        q.astype(bf16), k.astype(bf16),
        (((1,), (1,)), ((), ())),
        preferred_element_type=jnp.float32) * inv_sqrt_d
    s = s - jnp.max(s, axis=-1, keepdims=True)        # f32 softmax stats
    e = jnp.exp(s)
    w = e * pl.reciprocal(jnp.sum(e, axis=-1, keepdims=True), approx=True)
    att = jnp.dot(w.astype(bf16), v.astype(bf16),
                  preferred_element_type=jnp.float32)
    return jnp.dot(att.astype(bf16), wo[...],
                   preferred_element_type=jnp.float32) + bo[...]

  def self_attention(xn):
    # One fused (D, 3d) projection instead of three narrow matmuls.
    qkv = jnp.dot(xn.astype(bf16), sa_wqkv[...],
                  preferred_element_type=jnp.float32) + sa_bqkv[...]
    return attend(qkv[:, :d], qkv[:, d:2 * d], qkv[:, 2 * d:], sa_wo, sa_bo)

  def cross_attention(qn, kvn):
    q = jnp.dot(qn.astype(bf16), ca_wq[...],
                preferred_element_type=jnp.float32) + ca_bq[...]
    kv = jnp.dot(kvn.astype(bf16), ca_wkv[...],
                 preferred_element_type=jnp.float32) + ca_bkv[...]
    return attend(q, kv[:, :d], kv[:, d:], ca_wo, ca_bo)

  x = x_ref[0]                                        # (N, D)
  enc = enc_ref[0]                                    # (N, D)

  # --- self attention + residual ---
  xn = rmsnorm(x)
  h1 = self_attention(xn) + x

  # --- cross attention + residual ---
  h1n = rmsnorm(h1)
  encn = rmsnorm(enc)
  h2 = cross_attention(h1n, encn) + h1

  # --- feed forward (exact GELU, dropout = identity in eval) + residual ---
  h2n = rmsnorm(h2)
  f1 = jnp.dot(h2n.astype(bf16), ff_w1[...],
               preferred_element_type=jnp.float32) + ff_b1[...]
  g = 0.5 * f1 * (1.0 + lax.erf(f1 * 0.7071067811865476))   # exact GELU, f32
  f2 = jnp.dot(g.astype(bf16), ff_w2[...],
               preferred_element_type=jnp.float32) + ff_b2[...]

  o_ref[0] = f2 + h2


def _build_param_list(params):
  """Fuse projections and pre-cast weights to bf16 (biases/scale stay f32)."""
  bf16, f32 = jnp.bfloat16, jnp.float32
  sa_wqkv = jnp.concatenate(
      [params["sa_wq"], params["sa_wk"], params["sa_wv"]], axis=1).astype(bf16)
  sa_bqkv = jnp.concatenate(
      [params["sa_bq"], params["sa_bk"], params["sa_bv"]], axis=1).astype(f32)
  ca_wkv = jnp.concatenate(
      [params["ca_wk"], params["ca_wv"]], axis=1).astype(bf16)
  ca_bkv = jnp.concatenate(
      [params["ca_bk"], params["ca_bv"]], axis=1).astype(f32)
  return [
      params["scale"].astype(f32),
      sa_wqkv, sa_bqkv,
      params["sa_wo"].astype(bf16), params["sa_bo"].astype(f32),
      params["ca_wq"].astype(bf16), params["ca_bq"].astype(f32),
      ca_wkv, ca_bkv,
      params["ca_wo"].astype(bf16), params["ca_bo"].astype(f32),
      params["ff_w1"].astype(bf16), params["ff_b1"].astype(f32),
      params["ff_w2"].astype(bf16), params["ff_b2"].astype(f32),
  ]


def decoder_block(x, enc, params, *, heads):
  B, N, D = x.shape
  d = D // heads
  hidden = params["ff_w1"].shape[1]
  eps = 1e-8
  plist = _build_param_list(params)

  def build_and_call(single_buffer_weights):
    act_spec = lambda: pl.BlockSpec((1, N, D), lambda b: (b, 0, 0))

    def w_spec(shape):
      idx = lambda b: (0,) * len(shape)
      if single_buffer_weights:
        # Grid-invariant weights -> single VMEM buffer (halves weight VMEM).
        return pl.BlockSpec(shape, idx, pipeline_mode=pl.Buffered(1))
      return pl.BlockSpec(shape, idx)

    in_specs = [act_spec(), act_spec()] + [w_spec(p.shape) for p in plist]
    out_spec = pl.BlockSpec((1, N, D), lambda b: (b, 0, 0))

    # Advisory cost estimate (lets XLA overlap surrounding HBM weight fetches).
    flops = 2 * B * N * (D * 3 * d + 2 * N * d + d * D          # self-attn
                         + D * d + D * 2 * d + 2 * N * d + d * D  # cross-attn
                         + 2 * D * hidden)                       # ffn
    transcendentals = B * N * (2 * N + hidden + 8)
    bytes_accessed = 3 * x.size * 4 + sum(
        int(p.size) * p.dtype.itemsize for p in plist)

    kernel = partial(_decoder_block_kernel, d=d, eps=eps)
    call = pl.pallas_call(
        kernel,
        out_shape=jax.ShapeDtypeStruct((B, N, D), jnp.float32),
        grid_spec=pltpu.PrefetchScalarGridSpec(
            num_scalar_prefetch=0,
            grid=(B,),
            in_specs=in_specs,
            out_specs=out_spec,
        ),
        compiler_params=pltpu.CompilerParams(
            dimension_semantics=("parallel",)),
        cost_estimate=pl.CostEstimate(
            flops=flops, transcendentals=transcendentals,
            bytes_accessed=bytes_accessed),
    )
    return call(x, enc, *plist)

  try:
    out = build_and_call(single_buffer_weights=True)
    return jax.block_until_ready(out)
  except Exception:
    # Fallback if this JAX build rejects pipeline_mode=pl.Buffered(1).
    out = build_and_call(single_buffer_weights=False)
    return jax.block_until_ready(out)


def init_params(key, dim, heads, hidden):
  d = dim // heads
  keys = jax.random.split(key, 24)
  k = iter(keys)

  def lin(kk, fan_in, fan_out):
    # PyTorch-style uniform bound init, stored as (in, out)
    bound = 1.0 / math.sqrt(fan_in)
    w = jax.random.uniform(kk, (fan_in, fan_out), jnp.float32, -bound, bound)
    b = jax.random.uniform(jax.random.fold_in(kk, 1), (1, fan_out),
                           jnp.float32, -bound, bound)
    return w, b

  p = {}
  p["scale"] = jnp.ones((1, dim), jnp.float32)          # SimpleRMSNorm.scale
  for pre in ("sa", "ca"):
    p[f"{pre}_wq"], p[f"{pre}_bq"] = lin(next(k), dim, d)
    p[f"{pre}_wk"], p[f"{pre}_bk"] = lin(next(k), dim, d)
    p[f"{pre}_wv"], p[f"{pre}_bv"] = lin(next(k), dim, d)
    p[f"{pre}_wo"], p[f"{pre}_bo"] = lin(next(k), d, dim)
  p["ff_w1"], p["ff_b1"] = lin(next(k), dim, hidden)
  p["ff_w2"], p["ff_b2"] = lin(next(k), hidden, dim)
  return p


def reference_block(x, enc, p, *, heads):
  # pure-JAX f32 reference of the PyTorch forward (eval mode)
  dim = x.shape[-1]
  d = dim // heads
  eps = 1e-8

  def rmsnorm(h):
    rms = jnp.linalg.norm(h, axis=-1, keepdims=True) / math.sqrt(dim)
    return h / (rms + eps) * p["scale"][0]

  def attn(q_in, k_in, v_in, pre):
    q = q_in @ p[f"{pre}_wq"] + p[f"{pre}_bq"][0]
    k = k_in @ p[f"{pre}_wk"] + p[f"{pre}_bk"][0]
    v = v_in @ p[f"{pre}_wv"] + p[f"{pre}_bv"][0]
    s = jnp.einsum("bqd,bkd->bqk", q, k) / math.sqrt(d)
    w = jax.nn.softmax(s, axis=-1)
    a = jnp.einsum("bqk,bkd->bqd", w, v)
    return a @ p[f"{pre}_wo"] + p[f"{pre}_bo"][0]

  h1 = attn(rmsnorm(x), rmsnorm(x), rmsnorm(x), "sa") + x
  h2 = attn(rmsnorm(h1), rmsnorm(enc), rmsnorm(enc), "ca") + h1
  f = jax.nn.gelu(rmsnorm(h2) @ p["ff_w1"] + p["ff_b1"][0], approximate=False)
  return f @ p["ff_w2"] + p["ff_b2"][0] + h2


if __name__ == "__main__":
  # D multiple of 128 keeps activation/output stores lane-dense.
  B, N, DIM, HEADS = 2, 16, 128, 4
  HIDDEN = DIM * 4

  root = jax.random.PRNGKey(0)
  kx, kenc, kp = jax.random.split(root, 3)
  x = jax.random.normal(kx, (B, N, DIM), jnp.float32)
  enc = jax.random.normal(kenc, (B, N, DIM), jnp.float32)
  params = init_params(kp, DIM, HEADS, HIDDEN)

  out = decoder_block(x, enc, params, heads=HEADS)
  out = jax.block_until_ready(out)

  ref = reference_block(x, enc, params, heads=HEADS)
  assert out.shape == (B, N, DIM)
  # bf16 MXU matmuls (f32 accumulation) + approx reciprocals => loosened tol.
  assert jnp.allclose(out, ref, atol=7.5e-2, rtol=5e-2), "mismatch vs reference"

  print("KERNEL_OK")
</pallas_src>

<mosaic_0001>
module attributes {stable_mosaic.version = 11 : i64} {
  func.func @_decoder_block_kernel(%arg0: i32, %arg1: memref<1x16x128xf32, #tpu.memory_space<vmem>>, %arg2: memref<1x16x128xf32, #tpu.memory_space<vmem>>, %arg3: memref<1x128xf32, #tpu.memory_space<vmem>>, %arg4: memref<128x96xbf16, #tpu.memory_space<vmem>>, %arg5: memref<1x96xf32, #tpu.memory_space<vmem>>, %arg6: memref<32x128xbf16, #tpu.memory_space<vmem>>, %arg7: memref<1x128xf32, #tpu.memory_space<vmem>>, %arg8: memref<128x32xbf16, #tpu.memory_space<vmem>>, %arg9: memref<1x32xf32, #tpu.memory_space<vmem>>, %arg10: memref<128x64xbf16, #tpu.memory_space<vmem>>, %arg11: memref<1x64xf32, #tpu.memory_space<vmem>>, %arg12: memref<32x128xbf16, #tpu.memory_space<vmem>>, %arg13: memref<1x128xf32, #tpu.memory_space<vmem>>, %arg14: memref<128x512xbf16, #tpu.memory_space<vmem>>, %arg15: memref<1x512xf32, #tpu.memory_space<vmem>>, %arg16: memref<512x128xbf16, #tpu.memory_space<vmem>>, %arg17: memref<1x128xf32, #tpu.memory_space<vmem>>, %arg18: memref<1x16x128xf32, #tpu.memory_space<vmem>>) attributes {dimension_semantics = [#tpu.dimension_semantics<parallel>], iteration_bounds = array<i64: 2>, scalar_prefetch = 0 : i64, scratch_operands = 0 : i64, tpu.core_type = #tpu.core_type<tc>, window_params = [{transform_indices = @transform_0, window_bounds = array<i64: 1, 16, 128>}, {transform_indices = @transform_1, window_bounds = array<i64: 1, 16, 128>}, {pipeline_mode = #tpu.pipeline_mode<synchronous>, transform_indices = @transform_2, window_bounds = array<i64: 1, 128>}, {pipeline_mode = #tpu.pipeline_mode<synchronous>, transform_indices = @transform_3, window_bounds = array<i64: 128, 96>}, {pipeline_mode = #tpu.pipeline_mode<synchronous>, transform_indices = @transform_4, window_bounds = array<i64: 1, 96>}, {pipeline_mode = #tpu.pipeline_mode<synchronous>, transform_indices = @transform_5, window_bounds = array<i64: 32, 128>}, {pipeline_mode = #tpu.pipeline_mode<synchronous>, transform_indices = @transform_6, window_bounds = array<i64: 1, 128>}, {pipeline_mode = #tpu.pipeline_mode<synchronous>, transform_indices = @transform_7, window_bounds = array<i64: 128, 32>}, {pipeline_mode = #tpu.pipeline_mode<synchronous>, transform_indices = @transform_8, window_bounds = array<i64: 1, 32>}, {pipeline_mode = #tpu.pipeline_mode<synchronous>, transform_indices = @transform_9, window_bounds = array<i64: 128, 64>}, {pipeline_mode = #tpu.pipeline_mode<synchronous>, transform_indices = @transform_10, window_bounds = array<i64: 1, 64>}, {pipeline_mode = #tpu.pipeline_mode<synchronous>, transform_indices = @transform_11, window_bounds = array<i64: 32, 128>}, {pipeline_mode = #tpu.pipeline_mode<synchronous>, transform_indices = @transform_12, window_bounds = array<i64: 1, 128>}, {pipeline_mode = #tpu.pipeline_mode<synchronous>, transform_indices = @transform_13, window_bounds = array<i64: 128, 512>}, {pipeline_mode = #tpu.pipeline_mode<synchronous>, transform_indices = @transform_14, window_bounds = array<i64: 1, 512>}, {pipeline_mode = #tpu.pipeline_mode<synchronous>, transform_indices = @transform_15, window_bounds = array<i64: 512, 128>}, {pipeline_mode = #tpu.pipeline_mode<synchronous>, transform_indices = @transform_16, window_bounds = array<i64: 1, 128>}, {transform_indices = @transform_17, window_bounds = array<i64: 1, 16, 128>}]} {
    %c0 = arith.constant 0 : index
    %c0_0 = arith.constant 0 : index
    %0 = vector.load %arg3[%c0, %c0_0] : memref<1x128xf32, #tpu.memory_space<vmem>>, vector<1x128xf32>
    %c0_1 = arith.constant 0 : index
    %c0_2 = arith.constant 0 : index
    %c0_3 = arith.constant 0 : index
    %1 = vector.load %arg1[%c0_1, %c0_2, %c0_3] : memref<1x16x128xf32, #tpu.memory_space<vmem>>, vector<1x16x128xf32>
    %2 = vector.shape_cast %1 : vector<1x16x128xf32> to vector<16x128xf32>
    %c0_4 = arith.constant 0 : index
    %c0_5 = arith.constant 0 : index
    %c0_6 = arith.constant 0 : index
    %3 = vector.load %arg2[%c0_4, %c0_5, %c0_6] : memref<1x16x128xf32, #tpu.memory_space<vmem>>, vector<1x16x128xf32>
    %4 = vector.shape_cast %3 : vector<1x16x128xf32> to vector<16x128xf32>
    %5 = arith.mulf %2, %2 : vector<16x128xf32>
    %cst = arith.constant dense<0.000000e+00> : vector<16xf32>
    %6 = vector.multi_reduction <add>, %5, %cst [1] : vector<16x128xf32> to vector<16xf32>
    %7 = vector.shape_cast %6 : vector<16xf32> to vector<16x1xf32>
    %8 = math.sqrt %7 : vector<16x1xf32>
    %cst_7 = arith.constant 0.0883883461 : f32
    %9 = vector.broadcast %cst_7 : f32 to vector<16x1xf32>
    %10 = arith.mulf %8, %9 : vector<16x1xf32>
    %cst_8 = arith.constant 9.99999993E-9 : f32
    %11 = vector.broadcast %cst_8 : f32 to vector<16x1xf32>
    %12 = arith.addf %10, %11 : vector<16x1xf32>
    %13 = tpu.reciprocal %12 {approx = true} : vector<16x1xf32> -> vector<16x1xf32>
    %14 = vector.broadcast %13 : vector<16x1xf32> to vector<16x128xf32>
    %15 = arith.mulf %2, %14 : vector<16x128xf32>
    %16 = vector.broadcast %0 : vector<1x128xf32> to vector<16x128xf32>
    %17 = arith.mulf %15, %16 : vector<16x128xf32>
    %18 = arith.truncf %17 : vector<16x128xf32> to vector<16x128xbf16>
    %c0_9 = arith.constant 0 : index
    %c0_10 = arith.constant 0 : index
    %19 = vector.load %arg4[%c0_9, %c0_10] : memref<128x96xbf16, #tpu.memory_space<vmem>>, vector<128x96xbf16>
    %cst_11 = arith.constant dense<0.000000e+00> : vector<16x96xf32>
    %20 = tpu.matmul %18, %19, %cst_11 {dimension_numbers = #tpu.dot_dimension_numbers<[1], [0], [0], [1], [0, 0, 1, 1], [], []>} : vector<16x128xbf16>, vector<128x96xbf16>, vector<16x96xf32> -> vector<16x96xf32>
    %c0_12 = arith.constant 0 : index
    %c0_13 = arith.constant 0 : index
    %21 = vector.load %arg5[%c0_12, %c0_13] : memref<1x96xf32, #tpu.memory_space<vmem>>, vector<1x96xf32>
    %22 = vector.broadcast %21 : vector<1x96xf32> to vector<16x96xf32>
    %23 = arith.addf %20, %22 : vector<16x96xf32>
    %24 = vector.extract_strided_slice %23 {offsets = [0, 0], sizes = [16, 32], strides = [1, 1]} : vector<16x96xf32> to vector<16x32xf32>
    %25 = vector.extract_strided_slice %23 {offsets = [0, 32], sizes = [16, 32], strides = [1, 1]} : vector<16x96xf32> to vector<16x32xf32>
    %26 = vector.extract_strided_slice %23 {offsets = [0, 64], sizes = [16, 32], strides = [1, 1]} : vector<16x96xf32> to vector<16x32xf32>
    %27 = arith.truncf %24 : vector<16x32xf32> to vector<16x32xbf16>
    %28 = arith.truncf %25 : vector<16x32xf32> to vector<16x32xbf16>
    %cst_14 = arith.constant dense<0.000000e+00> : vector<16x16xf32>
    %29 = tpu.matmul %27, %28, %cst_14 {dimension_numbers = #tpu.dot_dimension_numbers<[1], [1], [0], [0], [0, 0, 1, 0], [], []>} : vector<16x32xbf16>, vector<16x32xbf16>, vector<16x16xf32> -> vector<16x16xf32>
    %cst_15 = arith.constant 0.176776692 : f32
    %30 = vector.broadcast %cst_15 : f32 to vector<16x16xf32>
    %31 = arith.mulf %29, %30 : vector<16x16xf32>
    %cst_16 = arith.constant dense<0xFF800000> : vector<16xf32>
    %32 = vector.multi_reduction <maximumf>, %31, %cst_16 [1] : vector<16x16xf32> to vector<16xf32>
    %33 = vector.shape_cast %32 : vector<16xf32> to vector<16x1xf32>
    %34 = vector.broadcast %33 : vector<16x1xf32> to vector<16x16xf32>
    %35 = arith.subf %31, %34 : vector<16x16xf32>
    %36 = math.exp %35 : vector<16x16xf32>
    %cst_17 = arith.constant dense<0.000000e+00> : vector<16xf32>
    %37 = vector.multi_reduction <add>, %36, %cst_17 [1] : vector<16x16xf32> to vector<16xf32>
    %38 = vector.shape_cast %37 : vector<16xf32> to vector<16x1xf32>
    %39 = tpu.reciprocal %38 {approx = true} : vector<16x1xf32> -> vector<16x1xf32>
    %40 = vector.broadcast %39 : vector<16x1xf32> to vector<16x16xf32>
    %41 = arith.mulf %36, %40 : vector<16x16xf32>
    %42 = arith.truncf %41 : vector<16x16xf32> to vector<16x16xbf16>
    %43 = arith.truncf %26 : vector<16x32xf32> to vector<16x32xbf16>
    %cst_18 = arith.constant dense<0.000000e+00> : vector<16x32xf32>
    %44 = tpu.matmul %42, %43, %cst_18 {dimension_numbers = #tpu.dot_dimension_numbers<[1], [0], [0], [1], [0, 0, 1, 1], [], []>} : vector<16x16xbf16>, vector<16x32xbf16>, vector<16x32xf32> -> vector<16x32xf32>
    %45 = arith.truncf %44 : vector<16x32xf32> to vector<16x32xbf16>
    %c0_19 = arith.constant 0 : index
    %c0_20 = arith.constant 0 : index
    %46 = vector.load %arg6[%c0_19, %c0_20] : memref<32x128xbf16, #tpu.memory_space<vmem>>, vector<32x128xbf16>
    %cst_21 = arith.constant dense<0.000000e+00> : vector<16x128xf32>
    %47 = tpu.matmul %45, %46, %cst_21 {dimension_numbers = #tpu.dot_dimension_numbers<[1], [0], [0], [1], [0, 0, 1, 1], [], []>} : vector<16x32xbf16>, vector<32x128xbf16>, vector<16x128xf32> -> vector<16x128xf32>
    %c0_22 = arith.constant 0 : index
    %c0_23 = arith.constant 0 : index
    %48 = vector.load %arg7[%c0_22, %c0_23] : memref<1x128xf32, #tpu.memory_space<vmem>>, vector<1x128xf32>
    %49 = vector.broadcast %48 : vector<1x128xf32> to vector<16x128xf32>
    %50 = arith.addf %47, %49 : vector<16x128xf32>
    %51 = arith.addf %50, %2 : vector<16x128xf32>
    %52 = arith.mulf %51, %51 : vector<16x128xf32>
    %cst_24 = arith.constant dense<0.000000e+00> : vector<16xf32>
    %53 = vector.multi_reduction <add>, %52, %cst_24 [1] : vector<16x128xf32> to vector<16xf32>
    %54 = vector.shape_cast %53 : vector<16xf32> to vector<16x1xf32>
    %55 = math.sqrt %54 : vector<16x1xf32>
    %cst_25 = arith.constant 0.0883883461 : f32
    %56 = vector.broadcast %cst_25 : f32 to vector<16x1xf32>
    %57 = arith.mulf %55, %56 : vector<16x1xf32>
    %cst_26 = arith.constant 9.99999993E-9 : f32
    %58 = vector.broadcast %cst_26 : f32 to vector<16x1xf32>
    %59 = arith.addf %57, %58 : vector<16x1xf32>
    %60 = tpu.reciprocal %59 {approx = true} : vector<16x1xf32> -> vector<16x1xf32>
    %61 = vector.broadcast %60 : vector<16x1xf32> to vector<16x128xf32>
    %62 = arith.mulf %51, %61 : vector<16x128xf32>
    %63 = vector.broadcast %0 : vector<1x128xf32> to vector<16x128xf32>
    %64 = arith.mulf %62, %63 : vector<16x128xf32>
    %65 = arith.mulf %4, %4 : vector<16x128xf32>
    %cst_27 = arith.constant dense<0.000000e+00> : vector<16xf32>
    %66 = vector.multi_reduction <add>, %65, %cst_27 [1] : vector<16x128xf32> to vector<16xf32>
    %67 = vector.shape_cast %66 : vector<16xf32> to vector<16x1xf32>
    %68 = math.sqrt %67 : vector<16x1xf32>
    %cst_28 = arith.constant 0.0883883461 : f32
    %69 = vector.broadcast %cst_28 : f32 to vector<16x1xf32>
    %70 = arith.mulf %68, %69 : vector<16x1xf32>
    %cst_29 = arith.constant 9.99999993E-9 : f32
    %71 = vector.broadcast %cst_29 : f32 to vector<16x1xf32>
    %72 = arith.addf %70, %71 : vector<16x1xf32>
    %73 = tpu.reciprocal %72 {approx = true} : vector<16x1xf32> -> vector<16x1xf32>
    %74 = vector.broadcast %73 : vector<16x1xf32> to vector<16x128xf32>
    %75 = arith.mulf %4, %74 : vector<16x128xf32>
    %76 = vector.broadcast %0 : vector<1x128xf32> to vector<16x128xf32>
    %77 = arith.mulf %75, %76 : vector<16x128xf32>
    %78 = arith.truncf %64 : vector<16x128xf32> to vector<16x128xbf16>
    %c0_30 = arith.constant 0 : index
    %c0_31 = arith.constant 0 : index
    %79 = vector.load %arg8[%c0_30, %c0_31] : memref<128x32xbf16, #tpu.memory_space<vmem>>, vector<128x32xbf16>
    %cst_32 = arith.constant dense<0.000000e+00> : vector<16x32xf32>
    %80 = tpu.matmul %78, %79, %cst_32 {dimension_numbers = #tpu.dot_dimension_numbers<[1], [0], [0], [1], [0, 0, 1, 1], [], []>} : vector<16x128xbf16>, vector<128x32xbf16>, vector<16x32xf32> -> vector<16x32xf32>
    %c0_33 = arith.constant 0 : index
    %c0_34 = arith.constant 0 : index
    %81 = vector.load %arg9[%c0_33, %c0_34] : memref<1x32xf32, #tpu.memory_space<vmem>>, vector<1x32xf32>
    %82 = vector.broadcast %81 : vector<1x32xf32> to vector<16x32xf32>
    %83 = arith.addf %80, %82 : vector<16x32xf32>
    %84 = arith.truncf %77 : vector<16x128xf32> to vector<16x128xbf16>
    %c0_35 = arith.constant 0 : index
    %c0_36 = arith.constant 0 : index
    %85 = vector.load %arg10[%c0_35, %c0_36] : memref<128x64xbf16, #tpu.memory_space<vmem>>, vector<128x64xbf16>
    %cst_37 = arith.constant dense<0.000000e+00> : vector<16x64xf32>
    %86 = tpu.matmul %84, %85, %cst_37 {dimension_numbers = #tpu.dot_dimension_numbers<[1], [0], [0], [1], [0, 0, 1, 1], [], []>} : vector<16x128xbf16>, vector<128x64xbf16>, vector<16x64xf32> -> vector<16x64xf32>
    %c0_38 = arith.constant 0 : index
    %c0_39 = arith.constant 0 : index
    %87 = vector.load %arg11[%c0_38, %c0_39] : memref<1x64xf32, #tpu.memory_space<vmem>>, vector<1x64xf32>
    %88 = vector.broadcast %87 : vector<1x64xf32> to vector<16x64xf32>
    %89 = arith.addf %86, %88 : vector<16x64xf32>
    %90 = vector.extract_strided_slice %89 {offsets = [0, 0], sizes = [16, 32], strides = [1, 1]} : vector<16x64xf32> to vector<16x32xf32>
    %91 = vector.extract_strided_slice %89 {offsets = [0, 32], sizes = [16, 32], strides = [1, 1]} : vector<16x64xf32> to vector<16x32xf32>
    %92 = arith.truncf %83 : vector<16x32xf32> to vector<16x32xbf16>
    %93 = arith.truncf %90 : vector<16x32xf32> to vector<16x32xbf16>
    %cst_40 = arith.constant dense<0.000000e+00> : vector<16x16xf32>
    %94 = tpu.matmul %92, %93, %cst_40 {dimension_numbers = #tpu.dot_dimension_numbers<[1], [1], [0], [0], [0, 0, 1, 0], [], []>} : vector<16x32xbf16>, vector<16x32xbf16>, vector<16x16xf32> -> vector<16x16xf32>
    %cst_41 = arith.constant 0.176776692 : f32
    %95 = vector.broadcast %cst_41 : f32 to vector<16x16xf32>
    %96 = arith.mulf %94, %95 : vector<16x16xf32>
    %cst_42 = arith.constant dense<0xFF800000> : vector<16xf32>
    %97 = vector.multi_reduction <maximumf>, %96, %cst_42 [1] : vector<16x16xf32> to vector<16xf32>
    %98 = vector.shape_cast %97 : vector<16xf32> to vector<16x1xf32>
    %99 = vector.broadcast %98 : vector<16x1xf32> to vector<16x16xf32>
    %100 = arith.subf %96, %99 : vector<16x16xf32>
    %101 = math.exp %100 : vector<16x16xf32>
    %cst_43 = arith.constant dense<0.000000e+00> : vector<16xf32>
    %102 = vector.multi_reduction <add>, %101, %cst_43 [1] : vector<16x16xf32> to vector<16xf32>
    %103 = vector.shape_cast %102 : vector<16xf32> to vector<16x1xf32>
    %104 = tpu.reciprocal %103 {approx = true} : vector<16x1xf32> -> vector<16x1xf32>
    %105 = vector.broadcast %104 : vector<16x1xf32> to vector<16x16xf32>
    %106 = arith.mulf %101, %105 : vector<16x16xf32>
    %107 = arith.truncf %106 : vector<16x16xf32> to vector<16x16xbf16>
    %108 = arith.truncf %91 : vector<16x32xf32> to vector<16x32xbf16>
    %cst_44 = arith.constant dense<0.000000e+00> : vector<16x32xf32>
    %109 = tpu.matmul %107, %108, %cst_44 {dimension_numbers = #tpu.dot_dimension_numbers<[1], [0], [0], [1], [0, 0, 1, 1], [], []>} : vector<16x16xbf16>, vector<16x32xbf16>, vector<16x32xf32> -> vector<16x32xf32>
    %110 = arith.truncf %109 : vector<16x32xf32> to vector<16x32xbf16>
    %c0_45 = arith.constant 0 : index
    %c0_46 = arith.constant 0 : index
    %111 = vector.load %arg12[%c0_45, %c0_46] : memref<32x128xbf16, #tpu.memory_space<vmem>>, vector<32x128xbf16>
    %cst_47 = arith.constant dense<0.000000e+00> : vector<16x128xf32>
    %112 = tpu.matmul %110, %111, %cst_47 {dimension_numbers = #tpu.dot_dimension_numbers<[1], [0], [0], [1], [0, 0, 1, 1], [], []>} : vector<16x32xbf16>, vector<32x128xbf16>, vector<16x128xf32> -> vector<16x128xf32>
    %c0_48 = arith.constant 0 : index
    %c0_49 = arith.constant 0 : index
    %113 = vector.load %arg13[%c0_48, %c0_49] : memref<1x128xf32, #tpu.memory_space<vmem>>, vector<1x128xf32>
    %114 = vector.broadcast %113 : vector<1x128xf32> to vector<16x128xf32>
    %115 = arith.addf %112, %114 : vector<16x128xf32>
    %116 = arith.addf %115, %51 : vector<16x128xf32>
    %117 = arith.mulf %116, %116 : vector<16x128xf32>
    %cst_50 = arith.constant dense<0.000000e+00> : vector<16xf32>
    %118 = vector.multi_reduction <add>, %117, %cst_50 [1] : vector<16x128xf32> to vector<16xf32>
    %119 = vector.shape_cast %118 : vector<16xf32> to vector<16x1xf32>
    %120 = math.sqrt %119 : vector<16x1xf32>
    %cst_51 = arith.constant 0.0883883461 : f32
    %121 = vector.broadcast %cst_51 : f32 to vector<16x1xf32>
    %122 = arith.mulf %120, %121 : vector<16x1xf32>
    %cst_52 = arith.constant 9.99999993E-9 : f32
    %123 = vector.broadcast %cst_52 : f32 to vector<16x1xf32>
    %124 = arith.addf %122, %123 : vector<16x1xf32>
    %125 = tpu.reciprocal %124 {approx = true} : vector<16x1xf32> -> vector<16x1xf32>
    %126 = vector.broadcast %125 : vector<16x1xf32> to vector<16x128xf32>
    %127 = arith.mulf %116, %126 : vector<16x128xf32>
    %128 = vector.broadcast %0 : vector<1x128xf32> to vector<16x128xf32>
    %129 = arith.mulf %127, %128 : vector<16x128xf32>
    %130 = arith.truncf %129 : vector<16x128xf32> to vector<16x128xbf16>
    %c0_53 = arith.constant 0 : index
    %c0_54 = arith.constant 0 : index
    %131 = vector.load %arg14[%c0_53, %c0_54] : memref<128x512xbf16, #tpu.memory_space<vmem>>, vector<128x512xbf16>
    %cst_55 = arith.constant dense<0.000000e+00> : vector<16x512xf32>
    %132 = tpu.matmul %130, %131, %cst_55 {dimension_numbers = #tpu.dot_dimension_numbers<[1], [0], [0], [1], [0, 0, 1, 1], [], []>} : vector<16x128xbf16>, vector<128x512xbf16>, vector<16x512xf32> -> vector<16x512xf32>
    %c0_56 = arith.constant 0 : index
    %c0_57 = arith.constant 0 : index
    %133 = vector.load %arg15[%c0_56, %c0_57] : memref<1x512xf32, #tpu.memory_space<vmem>>, vector<1x512xf32>
    %134 = vector.broadcast %133 : vector<1x512xf32> to vector<16x512xf32>
    %135 = arith.addf %132, %134 : vector<16x512xf32>
    %cst_58 = arith.constant 5.000000e-01 : f32
    %136 = vector.broadcast %cst_58 : f32 to vector<16x512xf32>
    %137 = arith.mulf %136, %135 : vector<16x512xf32>
    %cst_59 = arith.constant 0.707106769 : f32
    %138 = vector.broadcast %cst_59 : f32 to vector<16x512xf32>
    %139 = arith.mulf %135, %138 : vector<16x512xf32>
    %140 = math.erf %139 : vector<16x512xf32>
    %cst_60 = arith.constant 1.000000e+00 : f32
    %141 = vector.broadcast %cst_60 : f32 to vector<16x512xf32>
    %142 = arith.addf %141, %140 : vector<16x512xf32>
    %143 = arith.mulf %137, %142 : vector<16x512xf32>
    %144 = arith.truncf %143 : vector<16x512xf32> to vector<16x512xbf16>
    %c0_61 = arith.constant 0 : index
    %c0_62 = arith.constant 0 : index
    %145 = vector.load %arg16[%c0_61, %c0_62] : memref<512x128xbf16, #tpu.memory_space<vmem>>, vector<512x128xbf16>
    %cst_63 = arith.constant dense<0.000000e+00> : vector<16x128xf32>
    %146 = tpu.matmul %144, %145, %cst_63 {dimension_numbers = #tpu.dot_dimension_numbers<[1], [0], [0], [1], [0, 0, 1, 1], [], []>} : vector<16x512xbf16>, vector<512x128xbf16>, vector<16x128xf32> -> vector<16x128xf32>
    %c0_64 = arith.constant 0 : index
    %c0_65 = arith.constant 0 : index
    %147 = vector.load %arg17[%c0_64, %c0_65] : memref<1x128xf32, #tpu.memory_space<vmem>>, vector<1x128xf32>
    %148 = vector.broadcast %147 : vector<1x128xf32> to vector<16x128xf32>
    %149 = arith.addf %146, %148 : vector<16x128xf32>
    %150 = arith.addf %149, %116 : vector<16x128xf32>
    %c0_66 = arith.constant 0 : index
    %c0_67 = arith.constant 0 : index
    %c0_68 = arith.constant 0 : index
    %151 = vector.load %arg18[%c0_66, %c0_67, %c0_68] : memref<1x16x128xf32, #tpu.memory_space<vmem>>, vector<1x16x128xf32>
    %152 = vector.shape_cast %151 : vector<1x16x128xf32> to vector<16x128xf32>
    %153 = vector.shape_cast %150 : vector<16x128xf32> to vector<1x16x128xf32>
    tpu.vector_store %arg18[%c0_66, %c0_67, %c0_68], %153 {strides = array<i32>} : memref<1x16x128xf32, #tpu.memory_space<vmem>>, vector<1x16x128xf32>,
    return
  }
  func.func @transform_0(%arg0: i32) -> (i32, i32, i32) {
    %c0_i32 = arith.constant 0 : i32
    %c0_i32_0 = arith.constant 0 : i32
    %c0_i32_1 = arith.constant 0 : i32
    return %arg0, %c0_i32, %c0_i32_0 : i32, i32, i32
  }
  func.func @transform_1(%arg0: i32) -> (i32, i32, i32) {
    %c0_i32 = arith.constant 0 : i32
    %c0_i32_0 = arith.constant 0 : i32
    %c0_i32_1 = arith.constant 0 : i32
    return %arg0, %c0_i32, %c0_i32_0 : i32, i32, i32
  }
  func.func @transform_2(%arg0: i32) -> (i32, i32) {
    %c0_i32 = arith.constant 0 : i32
    %c0_i32_0 = arith.constant 0 : i32
    %c0_i32_1 = arith.constant 0 : i32
    return %c0_i32, %c0_i32_0 : i32, i32
  }
  func.func @transform_3(%arg0: i32) -> (i32, i32) {
    %c0_i32 = arith.constant 0 : i32
    %c0_i32_0 = arith.constant 0 : i32
    %c0_i32_1 = arith.constant 0 : i32
    return %c0_i32, %c0_i32_0 : i32, i32
  }
  func.func @transform_4(%arg0: i32) -> (i32, i32) {
    %c0_i32 = arith.constant 0 : i32
    %c0_i32_0 = arith.constant 0 : i32
    %c0_i32_1 = arith.constant 0 : i32
    return %c0_i32, %c0_i32_0 : i32, i32
  }
  func.func @transform_5(%arg0: i32) -> (i32, i32) {
    %c0_i32 = arith.constant 0 : i32
    %c0_i32_0 = arith.constant 0 : i32
    %c0_i32_1 = arith.constant 0 : i32
    return %c0_i32, %c0_i32_0 : i32, i32
  }
  func.func @transform_6(%arg0: i32) -> (i32, i32) {
    %c0_i32 = arith.constant 0 : i32
    %c0_i32_0 = arith.constant 0 : i32
    %c0_i32_1 = arith.constant 0 : i32
    return %c0_i32, %c0_i32_0 : i32, i32
  }
  func.func @transform_7(%arg0: i32) -> (i32, i32) {
    %c0_i32 = arith.constant 0 : i32
    %c0_i32_0 = arith.constant 0 : i32
    %c0_i32_1 = arith.constant 0 : i32
    return %c0_i32, %c0_i32_0 : i32, i32
  }
  func.func @transform_8(%arg0: i32) -> (i32, i32) {
    %c0_i32 = arith.constant 0 : i32
    %c0_i32_0 = arith.constant 0 : i32
    %c0_i32_1 = arith.constant 0 : i32
    return %c0_i32, %c0_i32_0 : i32, i32
  }
  func.func @transform_9(%arg0: i32) -> (i32, i32) {
    %c0_i32 = arith.constant 0 : i32
    %c0_i32_0 = arith.constant 0 : i32
    %c0_i32_1 = arith.constant 0 : i32
    return %c0_i32, %c0_i32_0 : i32, i32
  }
  func.func @transform_10(%arg0: i32) -> (i32, i32) {
    %c0_i32 = arith.constant 0 : i32
    %c0_i32_0 = arith.constant 0 : i32
    %c0_i32_1 = arith.constant 0 : i32
    return %c0_i32, %c0_i32_0 : i32, i32
  }
  func.func @transform_11(%arg0: i32) -> (i32, i32) {
    %c0_i32 = arith.constant 0 : i32
    %c0_i32_0 = arith.constant 0 : i32
    %c0_i32_1 = arith.constant 0 : i32
    return %c0_i32, %c0_i32_0 : i32, i32
  }
  func.func @transform_12(%arg0: i32) -> (i32, i32) {
    %c0_i32 = arith.constant 0 : i32
    %c0_i32_0 = arith.constant 0 : i32
    %c0_i32_1 = arith.constant 0 : i32
    return %c0_i32, %c0_i32_0 : i32, i32
  }
  func.func @transform_13(%arg0: i32) -> (i32, i32) {
    %c0_i32 = arith.constant 0 : i32
    %c0_i32_0 = arith.constant 0 : i32
    %c0_i32_1 = arith.constant 0 : i32
    return %c0_i32, %c0_i32_0 : i32, i32
  }
  func.func @transform_14(%arg0: i32) -> (i32, i32) {
    %c0_i32 = arith.constant 0 : i32
    %c0_i32_0 = arith.constant 0 : i32
    %c0_i32_1 = arith.constant 0 : i32
    return %c0_i32, %c0_i32_0 : i32, i32
  }
  func.func @transform_15(%arg0: i32) -> (i32, i32) {
    %c0_i32 = arith.constant 0 : i32
    %c0_i32_0 = arith.constant 0 : i32
    %c0_i32_1 = arith.constant 0 : i32
    return %c0_i32, %c0_i32_0 : i32, i32
  }
  func.func @transform_16(%arg0: i32) -> (i32, i32) {
    %c0_i32 = arith.constant 0 : i32
    %c0_i32_0 = arith.constant 0 : i32
    %c0_i32_1 = arith.constant 0 : i32
    return %c0_i32, %c0_i32_0 : i32, i32
  }
  func.func @transform_17(%arg0: i32) -> (i32, i32, i32) {
    %c0_i32 = arith.constant 0 : i32
    %c0_i32_0 = arith.constant 0 : i32
    %c0_i32_1 = arith.constant 0 : i32
    return %arg0, %c0_i32, %c0_i32_0 : i32, i32, i32
  }
}

module attributes {stable_mosaic.version = 11 : i64} {
  func.func @_decoder_block_kernel(%arg0: i32, %arg1: memref<1x16x128xf32, #tpu.memory_space<vmem>>, %arg2: memref<1x16x128xf32, #tpu.memory_space<vmem>>, %arg3: memref<1x128xf32, #tpu.memory_space<vmem>>, %arg4: memref<128x96xbf16, #tpu.memory_space<vmem>>, %arg5: memref<1x96xf32, #tpu.memory_space<vmem>>, %arg6: memref<32x128xbf16, #tpu.memory_space<vmem>>, %arg7: memref<1x128xf32, #tpu.memory_space<vmem>>, %arg8: memref<128x32xbf16, #tpu.memory_space<vmem>>, %arg9: memref<1x32xf32, #tpu.memory_space<vmem>>, %arg10: memref<128x64xbf16, #tpu.memory_space<vmem>>, %arg11: memref<1x64xf32, #tpu.memory_space<vmem>>, %arg12: memref<32x128xbf16, #tpu.memory_space<vmem>>, %arg13: memref<1x128xf32, #tpu.memory_space<vmem>>, %arg14: memref<128x512xbf16, #tpu.memory_space<vmem>>, %arg15: memref<1x512xf32, #tpu.memory_space<vmem>>, %arg16: memref<512x128xbf16, #tpu.memory_space<vmem>>, %arg17: memref<1x128xf32, #tpu.memory_space<vmem>>, %arg18: memref<1x16x128xf32, #tpu.memory_space<vmem>>) attributes {dimension_semantics = [#tpu.dimension_semantics<parallel>], iteration_bounds = array<i64: 2>, scalar_prefetch = 0 : i64, scratch_operands = 0 : i64, tpu.core_type = #tpu.core_type<tc>, window_params = [{transform_indices = @transform_0, window_bounds = array<i64: 1, 16, 128>}, {transform_indices = @transform_1, window_bounds = array<i64: 1, 16, 128>}, {pipeline_mode = #tpu.pipeline_mode<synchronous>, transform_indices = @transform_2, window_bounds = array<i64: 1, 128>}, {pipeline_mode = #tpu.pipeline_mode<synchronous>, transform_indices = @transform_3, window_bounds = array<i64: 128, 96>}, {pipeline_mode = #tpu.pipeline_mode<synchronous>, transform_indices = @transform_4, window_bounds = array<i64: 1, 96>}, {pipeline_mode = #tpu.pipeline_mode<synchronous>, transform_indices = @transform_5, window_bounds = array<i64: 32, 128>}, {pipeline_mode = #tpu.pipeline_mode<synchronous>, transform_indices = @transform_6, window_bounds = array<i64: 1, 128>}, {pipeline_mode = #tpu.pipeline_mode<synchronous>, transform_indices = @transform_7, window_bounds = array<i64: 128, 32>}, {pipeline_mode = #tpu.pipeline_mode<synchronous>, transform_indices = @transform_8, window_bounds = array<i64: 1, 32>}, {pipeline_mode = #tpu.pipeline_mode<synchronous>, transform_indices = @transform_9, window_bounds = array<i64: 128, 64>}, {pipeline_mode = #tpu.pipeline_mode<synchronous>, transform_indices = @transform_10, window_bounds = array<i64: 1, 64>}, {pipeline_mode = #tpu.pipeline_mode<synchronous>, transform_indices = @transform_11, window_bounds = array<i64: 32, 128>}, {pipeline_mode = #tpu.pipeline_mode<synchronous>, transform_indices = @transform_12, window_bounds = array<i64: 1, 128>}, {pipeline_mode = #tpu.pipeline_mode<synchronous>, transform_indices = @transform_13, window_bounds = array<i64: 128, 512>}, {pipeline_mode = #tpu.pipeline_mode<synchronous>, transform_indices = @transform_14, window_bounds = array<i64: 1, 512>}, {pipeline_mode = #tpu.pipeline_mode<synchronous>, transform_indices = @transform_15, window_bounds = array<i64: 512, 128>}, {pipeline_mode = #tpu.pipeline_mode<synchronous>, transform_indices = @transform_16, window_bounds = array<i64: 1, 128>}, {transform_indices = @transform_17, window_bounds = array<i64: 1, 16, 128>}]} {
    %c0 = arith.constant 0 : index
    %c0_0 = arith.constant 0 : index
    %0 = vector.load %arg3[%c0, %c0_0] : memref<1x128xf32, #tpu.memory_space<vmem>>, vector<1x128xf32>
    %c0_1 = arith.constant 0 : index
    %c0_2 = arith.constant 0 : index
    %c0_3 = arith.constant 0 : index
    %1 = vector.load %arg1[%c0_1, %c0_2, %c0_3] : memref<1x16x128xf32, #tpu.memory_space<vmem>>, vector<1x16x128xf32>
    %2 = vector.shape_cast %1 : vector<1x16x128xf32> to vector<16x128xf32>
    %c0_4 = arith.constant 0 : index
    %c0_5 = arith.constant 0 : index
    %c0_6 = arith.constant 0 : index
    %3 = vector.load %arg2[%c0_4, %c0_5, %c0_6] : memref<1x16x128xf32, #tpu.memory_space<vmem>>, vector<1x16x128xf32>
    %4 = vector.shape_cast %3 : vector<1x16x128xf32> to vector<16x128xf32>
    %5 = arith.mulf %2, %2 : vector<16x128xf32>
    %cst = arith.constant dense<0.000000e+00> : vector<16xf32>
    %6 = vector.multi_reduction <add>, %5, %cst [1] : vector<16x128xf32> to vector<16xf32>
    %7 = vector.shape_cast %6 : vector<16xf32> to vector<16x1xf32>
    %8 = math.sqrt %7 : vector<16x1xf32>
    %cst_7 = arith.constant 0.0883883461 : f32
    %9 = vector.broadcast %cst_7 : f32 to vector<16x1xf32>
    %10 = arith.mulf %8, %9 : vector<16x1xf32>
    %cst_8 = arith.constant 9.99999993E-9 : f32
    %11 = vector.broadcast %cst_8 : f32 to vector<16x1xf32>
    %12 = arith.addf %10, %11 : vector<16x1xf32>
    %13 = tpu.reciprocal %12 {approx = true} : vector<16x1xf32> -> vector<16x1xf32>
    %14 = vector.broadcast %13 : vector<16x1xf32> to vector<16x128xf32>
    %15 = arith.mulf %2, %14 : vector<16x128xf32>
    %16 = vector.broadcast %0 : vector<1x128xf32> to vector<16x128xf32>
    %17 = arith.mulf %15, %16 : vector<16x128xf32>
    %18 = arith.truncf %17 : vector<16x128xf32> to vector<16x128xbf16>
    %c0_9 = arith.constant 0 : index
    %c0_10 = arith.constant 0 : index
    %19 = vector.load %arg4[%c0_9, %c0_10] : memref<128x96xbf16, #tpu.memory_space<vmem>>, vector<128x96xbf16>
    %cst_11 = arith.constant dense<0.000000e+00> : vector<16x96xf32>
    %20 = tpu.matmul %18, %19, %cst_11 {dimension_numbers = #tpu.dot_dimension_numbers<[1], [0], [0], [1], [0, 0, 1, 1], [], []>} : vector<16x128xbf16>, vector<128x96xbf16>, vector<16x96xf32> -> vector<16x96xf32>
    %c0_12 = arith.constant 0 : index
    %c0_13 = arith.constant 0 : index
    %21 = vector.load %arg5[%c0_12, %c0_13] : memref<1x96xf32, #tpu.memory_space<vmem>>, vector<1x96xf32>
    %22 = vector.broadcast %21 : vector<1x96xf32> to vector<16x96xf32>
    %23 = arith.addf %20, %22 : vector<16x96xf32>
    %24 = vector.extract_strided_slice %23 {offsets = [0, 0], sizes = [16, 32], strides = [1, 1]} : vector<16x96xf32> to vector<16x32xf32>
    %25 = vector.extract_strided_slice %23 {offsets = [0, 32], sizes = [16, 32], strides = [1, 1]} : vector<16x96xf32> to vector<16x32xf32>
    %26 = vector.extract_strided_slice %23 {offsets = [0, 64], sizes = [16, 32], strides = [1, 1]} : vector<16x96xf32> to vector<16x32xf32>
    %27 = arith.truncf %24 : vector<16x32xf32> to vector<16x32xbf16>
    %28 = arith.truncf %25 : vector<16x32xf32> to vector<16x32xbf16>
    %cst_14 = arith.constant dense<0.000000e+00> : vector<16x16xf32>
    %29 = tpu.matmul %27, %28, %cst_14 {dimension_numbers = #tpu.dot_dimension_numbers<[1], [1], [0], [0], [0, 0, 1, 0], [], []>} : vector<16x32xbf16>, vector<16x32xbf16>, vector<16x16xf32> -> vector<16x16xf32>
    %cst_15 = arith.constant 0.176776692 : f32
    %30 = vector.broadcast %cst_15 : f32 to vector<16x16xf32>
    %31 = arith.mulf %29, %30 : vector<16x16xf32>
    %cst_16 = arith.constant dense<0xFF800000> : vector<16xf32>
    %32 = vector.multi_reduction <maximumf>, %31, %cst_16 [1] : vector<16x16xf32> to vector<16xf32>
    %33 = vector.shape_cast %32 : vector<16xf32> to vector<16x1xf32>
    %34 = vector.broadcast %33 : vector<16x1xf32> to vector<16x16xf32>
    %35 = arith.subf %31, %34 : vector<16x16xf32>
    %36 = math.exp %35 : vector<16x16xf32>
    %cst_17 = arith.constant dense<0.000000e+00> : vector<16xf32>
    %37 = vector.multi_reduction <add>, %36, %cst_17 [1] : vector<16x16xf32> to vector<16xf32>
    %38 = vector.shape_cast %37 : vector<16xf32> to vector<16x1xf32>
    %39 = tpu.reciprocal %38 {approx = true} : vector<16x1xf32> -> vector<16x1xf32>
    %40 = vector.broadcast %39 : vector<16x1xf32> to vector<16x16xf32>
    %41 = arith.mulf %36, %40 : vector<16x16xf32>
    %42 = arith.truncf %41 : vector<16x16xf32> to vector<16x16xbf16>
    %43 = arith.truncf %26 : vector<16x32xf32> to vector<16x32xbf16>
    %cst_18 = arith.constant dense<0.000000e+00> : vector<16x32xf32>
    %44 = tpu.matmul %42, %43, %cst_18 {dimension_numbers = #tpu.dot_dimension_numbers<[1], [0], [0], [1], [0, 0, 1, 1], [], []>} : vector<16x16xbf16>, vector<16x32xbf16>, vector<16x32xf32> -> vector<16x32xf32>
    %45 = arith.truncf %44 : vector<16x32xf32> to vector<16x32xbf16>
    %c0_19 = arith.constant 0 : index
    %c0_20 = arith.constant 0 : index
    %46 = vector.load %arg6[%c0_19, %c0_20] : memref<32x128xbf16, #tpu.memory_space<vmem>>, vector<32x128xbf16>
    %cst_21 = arith.constant dense<0.000000e+00> : vector<16x128xf32>
    %47 = tpu.matmul %45, %46, %cst_21 {dimension_numbers = #tpu.dot_dimension_numbers<[1], [0], [0], [1], [0, 0, 1, 1], [], []>} : vector<16x32xbf16>, vector<32x128xbf16>, vector<16x128xf32> -> vector<16x128xf32>
    %c0_22 = arith.constant 0 : index
    %c0_23 = arith.constant 0 : index
    %48 = vector.load %arg7[%c0_22, %c0_23] : memref<1x128xf32, #tpu.memory_space<vmem>>, vector<1x128xf32>
    %49 = vector.broadcast %48 : vector<1x128xf32> to vector<16x128xf32>
    %50 = arith.addf %47, %49 : vector<16x128xf32>
    %51 = arith.addf %50, %2 : vector<16x128xf32>
    %52 = arith.mulf %51, %51 : vector<16x128xf32>
    %cst_24 = arith.constant dense<0.000000e+00> : vector<16xf32>
    %53 = vector.multi_reduction <add>, %52, %cst_24 [1] : vector<16x128xf32> to vector<16xf32>
    %54 = vector.shape_cast %53 : vector<16xf32> to vector<16x1xf32>
    %55 = math.sqrt %54 : vector<16x1xf32>
    %cst_25 = arith.constant 0.0883883461 : f32
    %56 = vector.broadcast %cst_25 : f32 to vector<16x1xf32>
    %57 = arith.mulf %55, %56 : vector<16x1xf32>
    %cst_26 = arith.constant 9.99999993E-9 : f32
    %58 = vector.broadcast %cst_26 : f32 to vector<16x1xf32>
    %59 = arith.addf %57, %58 : vector<16x1xf32>
    %60 = tpu.reciprocal %59 {approx = true} : vector<16x1xf32> -> vector<16x1xf32>
    %61 = vector.broadcast %60 : vector<16x1xf32> to vector<16x128xf32>
    %62 = arith.mulf %51, %61 : vector<16x128xf32>
    %63 = vector.broadcast %0 : vector<1x128xf32> to vector<16x128xf32>
    %64 = arith.mulf %62, %63 : vector<16x128xf32>
    %65 = arith.mulf %4, %4 : vector<16x128xf32>
    %cst_27 = arith.constant dense<0.000000e+00> : vector<16xf32>
    %66 = vector.multi_reduction <add>, %65, %cst_27 [1] : vector<16x128xf32> to vector<16xf32>
    %67 = vector.shape_cast %66 : vector<16xf32> to vector<16x1xf32>
    %68 = math.sqrt %67 : vector<16x1xf32>
    %cst_28 = arith.constant 0.0883883461 : f32
    %69 = vector.broadcast %cst_28 : f32 to vector<16x1xf32>
    %70 = arith.mulf %68, %69 : vector<16x1xf32>
    %cst_29 = arith.constant 9.99999993E-9 : f32
    %71 = vector.broadcast %cst_29 : f32 to vector<16x1xf32>
    %72 = arith.addf %70, %71 : vector<16x1xf32>
    %73 = tpu.reciprocal %72 {approx = true} : vector<16x1xf32> -> vector<16x1xf32>
    %74 = vector.broadcast %73 : vector<16x1xf32> to vector<16x128xf32>
    %75 = arith.mulf %4, %74 : vector<16x128xf32>
    %76 = vector.broadcast %0 : vector<1x128xf32> to vector<16x128xf32>
    %77 = arith.mulf %75, %76 : vector<16x128xf32>
    %78 = arith.truncf %64 : vector<16x128xf32> to vector<16x128xbf16>
    %c0_30 = arith.constant 0 : index
    %c0_31 = arith.constant 0 : index
    %79 = vector.load %arg8[%c0_30, %c0_31] : memref<128x32xbf16, #tpu.memory_space<vmem>>, vector<128x32xbf16>
    %cst_32 = arith.constant dense<0.000000e+00> : vector<16x32xf32>
    %80 = tpu.matmul %78, %79, %cst_32 {dimension_numbers = #tpu.dot_dimension_numbers<[1], [0], [0], [1], [0, 0, 1, 1], [], []>} : vector<16x128xbf16>, vector<128x32xbf16>, vector<16x32xf32> -> vector<16x32xf32>
    %c0_33 = arith.constant 0 : index
    %c0_34 = arith.constant 0 : index
    %81 = vector.load %arg9[%c0_33, %c0_34] : memref<1x32xf32, #tpu.memory_space<vmem>>, vector<1x32xf32>
    %82 = vector.broadcast %81 : vector<1x32xf32> to vector<16x32xf32>
    %83 = arith.addf %80, %82 : vector<16x32xf32>
    %84 = arith.truncf %77 : vector<16x128xf32> to vector<16x128xbf16>
    %c0_35 = arith.constant 0 : index
    %c0_36 = arith.constant 0 : index
    %85 = vector.load %arg10[%c0_35, %c0_36] : memref<128x64xbf16, #tpu.memory_space<vmem>>, vector<128x64xbf16>
    %cst_37 = arith.constant dense<0.000000e+00> : vector<16x64xf32>
    %86 = tpu.matmul %84, %85, %cst_37 {dimension_numbers = #tpu.dot_dimension_numbers<[1], [0], [0], [1], [0, 0, 1, 1], [], []>} : vector<16x128xbf16>, vector<128x64xbf16>, vector<16x64xf32> -> vector<16x64xf32>
    %c0_38 = arith.constant 0 : index
    %c0_39 = arith.constant 0 : index
    %87 = vector.load %arg11[%c0_38, %c0_39] : memref<1x64xf32, #tpu.memory_space<vmem>>, vector<1x64xf32>
    %88 = vector.broadcast %87 : vector<1x64xf32> to vector<16x64xf32>
    %89 = arith.addf %86, %88 : vector<16x64xf32>
    %90 = vector.extract_strided_slice %89 {offsets = [0, 0], sizes = [16, 32], strides = [1, 1]} : vector<16x64xf32> to vector<16x32xf32>
    %91 = vector.extract_strided_slice %89 {offsets = [0, 32], sizes = [16, 32], strides = [1, 1]} : vector<16x64xf32> to vector<16x32xf32>
    %92 = arith.truncf %83 : vector<16x32xf32> to vector<16x32xbf16>
    %93 = arith.truncf %90 : vector<16x32xf32> to vector<16x32xbf16>
    %cst_40 = arith.constant dense<0.000000e+00> : vector<16x16xf32>
    %94 = tpu.matmul %92, %93, %cst_40 {dimension_numbers = #tpu.dot_dimension_numbers<[1], [1], [0], [0], [0, 0, 1, 0], [], []>} : vector<16x32xbf16>, vector<16x32xbf16>, vector<16x16xf32> -> vector<16x16xf32>
    %cst_41 = arith.constant 0.176776692 : f32
    %95 = vector.broadcast %cst_41 : f32 to vector<16x16xf32>
    %96 = arith.mulf %94, %95 : vector<16x16xf32>
    %cst_42 = arith.constant dense<0xFF800000> : vector<16xf32>
    %97 = vector.multi_reduction <maximumf>, %96, %cst_42 [1] : vector<16x16xf32> to vector<16xf32>
    %98 = vector.shape_cast %97 : vector<16xf32> to vector<16x1xf32>
    %99 = vector.broadcast %98 : vector<16x1xf32> to vector<16x16xf32>
    %100 = arith.subf %96, %99 : vector<16x16xf32>
    %101 = math.exp %100 : vector<16x16xf32>
    %cst_43 = arith.constant dense<0.000000e+00> : vector<16xf32>
    %102 = vector.multi_reduction <add>, %101, %cst_43 [1] : vector<16x16xf32> to vector<16xf32>
    %103 = vector.shape_cast %102 : vector<16xf32> to vector<16x1xf32>
    %104 = tpu.reciprocal %103 {approx = true} : vector<16x1xf32> -> vector<16x1xf32>
    %105 = vector.broadcast %104 : vector<16x1xf32> to vector<16x16xf32>
    %106 = arith.mulf %101, %105 : vector<16x16xf32>
    %107 = arith.truncf %106 : vector<16x16xf32> to vector<16x16xbf16>
    %108 = arith.truncf %91 : vector<16x32xf32> to vector<16x32xbf16>
    %cst_44 = arith.constant dense<0.000000e+00> : vector<16x32xf32>
    %109 = tpu.matmul %107, %108, %cst_44 {dimension_numbers = #tpu.dot_dimension_numbers<[1], [0], [0], [1], [0, 0, 1, 1], [], []>} : vector<16x16xbf16>, vector<16x32xbf16>, vector<16x32xf32> -> vector<16x32xf32>
    %110 = arith.truncf %109 : vector<16x32xf32> to vector<16x32xbf16>
    %c0_45 = arith.constant 0 : index
    %c0_46 = arith.constant 0 : index
    %111 = vector.load %arg12[%c0_45, %c0_46] : memref<32x128xbf16, #tpu.memory_space<vmem>>, vector<32x128xbf16>
    %cst_47 = arith.constant dense<0.000000e+00> : vector<16x128xf32>
    %112 = tpu.matmul %110, %111, %cst_47 {dimension_numbers = #tpu.dot_dimension_numbers<[1], [0], [0], [1], [0, 0, 1, 1], [], []>} : vector<16x32xbf16>, vector<32x128xbf16>, vector<16x128xf32> -> vector<16x128xf32>
    %c0_48 = arith.constant 0 : index
    %c0_49 = arith.constant 0 : index
    %113 = vector.load %arg13[%c0_48, %c0_49] : memref<1x128xf32, #tpu.memory_space<vmem>>, vector<1x128xf32>
    %114 = vector.broadcast %113 : vector<1x128xf32> to vector<16x128xf32>
    %115 = arith.addf %112, %114 : vector<16x128xf32>
    %116 = arith.addf %115, %51 : vector<16x128xf32>
    %117 = arith.mulf %116, %116 : vector<16x128xf32>
    %cst_50 = arith.constant dense<0.000000e+00> : vector<16xf32>
    %118 = vector.multi_reduction <add>, %117, %cst_50 [1] : vector<16x128xf32> to vector<16xf32>
    %119 = vector.shape_cast %118 : vector<16xf32> to vector<16x1xf32>
    %120 = math.sqrt %119 : vector<16x1xf32>
    %cst_51 = arith.constant 0.0883883461 : f32
    %121 = vector.broadcast %cst_51 : f32 to vector<16x1xf32>
    %122 = arith.mulf %120, %121 : vector<16x1xf32>
    %cst_52 = arith.constant 9.99999993E-9 : f32
    %123 = vector.broadcast %cst_52 : f32 to vector<16x1xf32>
    %124 = arith.addf %122, %123 : vector<16x1xf32>
    %125 = tpu.reciprocal %124 {approx = true} : vector<16x1xf32> -> vector<16x1xf32>
    %126 = vector.broadcast %125 : vector<16x1xf32> to vector<16x128xf32>
    %127 = arith.mulf %116, %126 : vector<16x128xf32>
    %128 = vector.broadcast %0 : vector<1x128xf32> to vector<16x128xf32>
    %129 = arith.mulf %127, %128 : vector<16x128xf32>
    %130 = arith.truncf %129 : vector<16x128xf32> to vector<16x128xbf16>
    %c0_53 = arith.constant 0 : index
    %c0_54 = arith.constant 0 : index
    %131 = vector.load %arg14[%c0_53, %c0_54] : memref<128x512xbf16, #tpu.memory_space<vmem>>, vector<128x512xbf16>
    %cst_55 = arith.constant dense<0.000000e+00> : vector<16x512xf32>
    %132 = tpu.matmul %130, %131, %cst_55 {dimension_numbers = #tpu.dot_dimension_numbers<[1], [0], [0], [1], [0, 0, 1, 1], [], []>} : vector<16x128xbf16>, vector<128x512xbf16>, vector<16x512xf32> -> vector<16x512xf32>
    %c0_56 = arith.constant 0 : index
    %c0_57 = arith.constant 0 : index
    %133 = vector.load %arg15[%c0_56, %c0_57] : memref<1x512xf32, #tpu.memory_space<vmem>>, vector<1x512xf32>
    %134 = vector.broadcast %133 : vector<1x512xf32> to vector<16x512xf32>
    %135 = arith.addf %132, %134 : vector<16x512xf32>
    %cst_58 = arith.constant 5.000000e-01 : f32
    %136 = vector.broadcast %cst_58 : f32 to vector<16x512xf32>
    %137 = arith.mulf %136, %135 : vector<16x512xf32>
    %cst_59 = arith.constant 0.707106769 : f32
    %138 = vector.broadcast %cst_59 : f32 to vector<16x512xf32>
    %139 = arith.mulf %135, %138 : vector<16x512xf32>
    %140 = math.erf %139 : vector<16x512xf32>
    %cst_60 = arith.constant 1.000000e+00 : f32
    %141 = vector.broadcast %cst_60 : f32 to vector<16x512xf32>
    %142 = arith.addf %141, %140 : vector<16x512xf32>
    %143 = arith.mulf %137, %142 : vector<16x512xf32>
    %144 = arith.truncf %143 : vector<16x512xf32> to vector<16x512xbf16>
    %c0_61 = arith.constant 0 : index
    %c0_62 = arith.constant 0 : index
    %145 = vector.load %arg16[%c0_61, %c0_62] : memref<512x128xbf16, #tpu.memory_space<vmem>>, vector<512x128xbf16>
    %cst_63 = arith.constant dense<0.000000e+00> : vector<16x128xf32>
    %146 = tpu.matmul %144, %145, %cst_63 {dimension_numbers = #tpu.dot_dimension_numbers<[1], [0], [0], [1], [0, 0, 1, 1], [], []>} : vector<16x512xbf16>, vector<512x128xbf16>, vector<16x128xf32> -> vector<16x128xf32>
    %c0_64 = arith.constant 0 : index
    %c0_65 = arith.constant 0 : index
    %147 = vector.load %arg17[%c0_64, %c0_65] : memref<1x128xf32, #tpu.memory_space<vmem>>, vector<1x128xf32>
    %148 = vector.broadcast %147 : vector<1x128xf32> to vector<16x128xf32>
    %149 = arith.addf %146, %148 : vector<16x128xf32>
    %150 = arith.addf %149, %116 : vector<16x128xf32>
    %c0_66 = arith.constant 0 : index
    %c0_67 = arith.constant 0 : index
    %c0_68 = arith.constant 0 : index
    %151 = vector.load %arg18[%c0_66, %c0_67, %c0_68] : memref<1x16x128xf32, #tpu.memory_space<vmem>>, vector<1x16x128xf32>
    %152 = vector.shape_cast %151 : vector<1x16x128xf32> to vector<16x128xf32>
    %153 = vector.shape_cast %150 : vector<16x128xf32> to vector<1x16x128xf32>
    tpu.vector_store %arg18[%c0_66, %c0_67, %c0_68], %153 {strides = array<i32>} : memref<1x16x128xf32, #tpu.memory_space<vmem>>, vector<1x16x128xf32>,
    return
  }
  func.func @transform_0(%arg0: i32) -> (i32, i32, i32) {
    %c0_i32 = arith.constant 0 : i32
    %c0_i32_0 = arith.constant 0 : i32
    %c0_i32_1 = arith.constant 0 : i32
    return %arg0, %c0_i32, %c0_i32_0 : i32, i32, i32
  }
  func.func @transform_1(%arg0: i32) -> (i32, i32, i32) {
    %c0_i32 = arith.constant 0 : i32
    %c0_i32_0 = arith.constant 0 : i32
    %c0_i32_1 = arith.constant 0 : i32
    return %arg0, %c0_i32, %c0_i32_0 : i32, i32, i32
  }
  func.func @transform_2(%arg0: i32) -> (i32, i32) {
    %c0_i32 = arith.constant 0 : i32
    %c0_i32_0 = arith.constant 0 : i32
    %c0_i32_1 = arith.constant 0 : i32
    return %c0_i32, %c0_i32_0 : i32, i32
  }
  func.func @transform_3(%arg0: i32) -> (i32, i32) {
    %c0_i32 = arith.constant 0 : i32
    %c0_i32_0 = arith.constant 0 : i32
    %c0_i32_1 = arith.constant 0 : i32
    return %c0_i32, %c0_i32_0 : i32, i32
  }
  func.func @transform_4(%arg0: i32) -> (i32, i32) {
    %c0_i32 = arith.constant 0 : i32
    %c0_i32_0 = arith.constant 0 : i32
    %c0_i32_1 = arith.constant 0 : i32
    return %c0_i32, %c0_i32_0 : i32, i32
  }
  func.func @transform_5(%arg0: i32) -> (i32, i32) {
    %c0_i32 = arith.constant 0 : i32
    %c0_i32_0 = arith.constant 0 : i32
    %c0_i32_1 = arith.constant 0 : i32
    return %c0_i32, %c0_i32_0 : i32, i32
  }
  func.func @transform_6(%arg0: i32) -> (i32, i32) {
    %c0_i32 = arith.constant 0 : i32
    %c0_i32_0 = arith.constant 0 : i32
    %c0_i32_1 = arith.constant 0 : i32
    return %c0_i32, %c0_i32_0 : i32, i32
  }
  func.func @transform_7(%arg0: i32) -> (i32, i32) {
    %c0_i32 = arith.constant 0 : i32
    %c0_i32_0 = arith.constant 0 : i32
    %c0_i32_1 = arith.constant 0 : i32
    return %c0_i32, %c0_i32_0 : i32, i32
  }
  func.func @transform_8(%arg0: i32) -> (i32, i32) {
    %c0_i32 = arith.constant 0 : i32
    %c0_i32_0 = arith.constant 0 : i32
    %c0_i32_1 = arith.constant 0 : i32
    return %c0_i32, %c0_i32_0 : i32, i32
  }
  func.func @transform_9(%arg0: i32) -> (i32, i32) {
    %c0_i32 = arith.constant 0 : i32
    %c0_i32_0 = arith.constant 0 : i32
    %c0_i32_1 = arith.constant 0 : i32
    return %c0_i32, %c0_i32_0 : i32, i32
  }
  func.func @transform_10(%arg0: i32) -> (i32, i32) {
    %c0_i32 = arith.constant 0 : i32
    %c0_i32_0 = arith.constant 0 : i32
    %c0_i32_1 = arith.constant 0 : i32
    return %c0_i32, %c0_i32_0 : i32, i32
  }
  func.func @transform_11(%arg0: i32) -> (i32, i32) {
    %c0_i32 = arith.constant 0 : i32
    %c0_i32_0 = arith.constant 0 : i32
    %c0_i32_1 = arith.constant 0 : i32
    return %c0_i32, %c0_i32_0 : i32, i32
  }
  func.func @transform_12(%arg0: i32) -> (i32, i32) {
    %c0_i32 = arith.constant 0 : i32
    %c0_i32_0 = arith.constant 0 : i32
    %c0_i32_1 = arith.constant 0 : i32
    return %c0_i32, %c0_i32_0 : i32, i32
  }
  func.func @transform_13(%arg0: i32) -> (i32, i32) {
    %c0_i32 = arith.constant 0 : i32
    %c0_i32_0 = arith.constant 0 : i32
    %c0_i32_1 = arith.constant 0 : i32
    return %c0_i32, %c0_i32_0 : i32, i32
  }
  func.func @transform_14(%arg0: i32) -> (i32, i32) {
    %c0_i32 = arith.constant 0 : i32
    %c0_i32_0 = arith.constant 0 : i32
    %c0_i32_1 = arith.constant 0 : i32
    return %c0_i32, %c0_i32_0 : i32, i32
  }
  func.func @transform_15(%arg0: i32) -> (i32, i32) {
    %c0_i32 = arith.constant 0 : i32
    %c0_i32_0 = arith.constant 0 : i32
    %c0_i32_1 = arith.constant 0 : i32
    return %c0_i32, %c0_i32_0 : i32, i32
  }
  func.func @transform_16(%arg0: i32) -> (i32, i32) {
    %c0_i32 = arith.constant 0 : i32
    %c0_i32_0 = arith.constant 0 : i32
    %c0_i32_1 = arith.constant 0 : i32
    return %c0_i32, %c0_i32_0 : i32, i32
  }
  func.func @transform_17(%arg0: i32) -> (i32, i32, i32) {
    %c0_i32 = arith.constant 0 : i32
    %c0_i32_0 = arith.constant 0 : i32
    %c0_i32_1 = arith.constant 0 : i32
    return %arg0, %c0_i32, %c0_i32_0 : i32, i32, i32
  }
}

</mosaic_0001>

<llo_original>
// kernel: tpu_custom_call.1
$region0: #{tpu_custom_call.1}
  #allocation0 [shape = 'u32[]', space=smem, size = 0x4, offset = 0x4, fixed_abs, tag = 'smem constant byte address 0x4 - core index']
  #allocation1 [shape = 'u32[72,128]{1,0:T(1,128)}', space=vmem, size = 0x9000, scoped, tag = 'internal scratch']
  %s0 = inlined_call_operand.vmem [shape: f32[2,16,128], index: 0, kind: input, shape index: {}]
  %s1 = inlined_call_operand.hbm [shape: f32[2,16,128], index: 1, kind: input, shape index: {}]
  %s2 = inlined_call_operand.vmem [shape: f32[1,128], index: 2, kind: input, shape index: {}]
  %s3 = inlined_call_operand.vmem [shape: bf16[128,96], index: 3, kind: input, shape index: {}]
  %s4 = inlined_call_operand.vmem [shape: f32[1,96], index: 4, kind: input, shape index: {}]
  %s5 = inlined_call_operand.hbm [shape: bf16[32,128], index: 5, kind: input, shape index: {}]
  %s6 = inlined_call_operand.vmem [shape: f32[1,128], index: 6, kind: input, shape index: {}]
  %s7 = inlined_call_operand.vmem [shape: bf16[128,32], index: 7, kind: input, shape index: {}]
  %s8 = inlined_call_operand.vmem [shape: f32[1,32], index: 8, kind: input, shape index: {}]
  %s9 = inlined_call_operand.vmem [shape: bf16[128,64], index: 9, kind: input, shape index: {}]
  %s10 = inlined_call_operand.vmem [shape: f32[1,64], index: 10, kind: input, shape index: {}]
  %s11 = inlined_call_operand.hbm [shape: bf16[32,128], index: 11, kind: input, shape index: {}]
  %s12 = inlined_call_operand.vmem [shape: f32[1,128], index: 12, kind: input, shape index: {}]
  %s13 = inlined_call_operand.vmem [shape: bf16[128,512], index: 13, kind: input, shape index: {}]
  %s14 = inlined_call_operand.vmem [shape: f32[1,512], index: 14, kind: input, shape index: {}]
  %s15 = inlined_call_operand.hbm [shape: bf16[512,128], index: 15, kind: input, shape index: {}]
  %s16 = inlined_call_operand.vmem [shape: f32[1,128], index: 16, kind: input, shape index: {}]
  %s17 = inlined_call_operand.hbm [shape: f32[2,16,128], index: 17, kind: output, shape index: {}]
  %s18 = sld [smem:[#allocation0]]
  $region117: #{tpu_custom_call.1} parent=0
    _
  %s20 = ssub.s32 1, %s18
  %s21 = scalar_select 0, %s20, %s18
  $region1: #{tpu_custom_call.1} parent=0
    #allocation2 [shape = 'u8[16384]{0}', space=vmem, size = 0x4000, scoped, tag = 'input window, operand 1']
    #allocation3 [shape = 's32[2]{0}', space=sflag, size = 0x8, scoped, tag = 'scoped memory for tpu_custom_call.1']
    #allocation4 [shape = 's32[2]{0}', space=sflag, size = 0x8, scoped, tag = 'scoped memory for tpu_custom_call.1']
    #allocation5 [shape = 'u8[8192]{0}', space=vmem, size = 0x2000, scoped, tag = 'input window, operand 5, single buffered']
    #allocation6 [shape = 's32[1]{0}', space=sflag, size = 0x4, scoped, tag = 'scoped memory for tpu_custom_call.1']
    #allocation7 [shape = 'u8[8192]{0}', space=vmem, size = 0x2000, scoped, tag = 'input window, operand 11, single buffered']
    #allocation8 [shape = 'u8[131072]{0}', space=vmem, size = 0x20000, scoped, tag = 'input window, operand 15, single buffered']
    #allocation9 [shape = 's32[1]{0}', space=sflag, size = 0x4, scoped, tag = 'scoped memory for tpu_custom_call.1']
    #allocation10 [shape = 'u8[16384]{0}', space=vmem, size = 0x4000, scoped, tag = 'output window, operand 0']
    %22 = vsyncpa [#allocation3], 0
    %s23 = scalar_lea.sflag [#allocation3], 1
    %24 = vsyncpa %s23, 0
    %25 = vsyncpa [#allocation6], 0
    %26 = vsyncpa [#allocation9], 0
    %27 = vsyncpa [#allocation4], 0
    %s28 = scalar_lea.sflag [#allocation4], 1
    %29 = vsyncpa %s28, 0
    loop: start=0, step=1, limit=4
    $region2: #{tpu_custom_call.1} parent=1 // loop_pre_header
      _
    $region3: #{tpu_custom_call.1} parent=1 // loop_header
      %s31 = sphi 0, %s35
      %p32 = scmp.ge.s32.totalorder %s31, 4
      %s41 = sphi 0, %s43
      %s44 = sphi 0, %s41
      %s45 = sphi 0, %s44
      %s61 = sphi 0, %s45
      %s67 = sphi 0, %s69
      %s70 = sphi 0, %s67
      %s71 = sphi 0, %s70
      %s87 = sphi 0, %s71
      %s91 = sphi 0, %s91
      %s93 = sphi 0, %s91
      %s94 = sphi 0, %s93
      %s108 = sphi 0, %s94
      %s112 = sphi 0, %s112
      %s114 = sphi 0, %s112
      %s115 = sphi 0, %s114
      %s129 = sphi 0, %s115
      %s133 = sphi 0, %s133
      %s135 = sphi 0, %s133
      %s136 = sphi 0, %s135
      %s150 = sphi 0, %s136
      %s154 = sphi 0, %s154
      %s156 = sphi 0, %s154
      %s157 = sphi 0, %s156
      %s171 = sphi 0, %s157
      %s175 = sphi 0, %s175
      %s177 = sphi 0, %s175
      %s178 = sphi 0, %s177
      %s192 = sphi 0, %s178
      %s196 = sphi 0, %s196
      %s198 = sphi 0, %s196
      %s199 = sphi 0, %s198
      %s213 = sphi 0, %s199
      %s217 = sphi 0, %s217
      %s219 = sphi 0, %s217
      %s220 = sphi 0, %s219
      %s234 = sphi 0, %s220
      %s238 = sphi 0, %s238
      %s240 = sphi 0, %s238
      %s241 = sphi 0, %s240
      %s255 = sphi 0, %s241
      %s259 = sphi 0, %s259
      %s261 = sphi 0, %s259
      %s262 = sphi 0, %s261
      %s276 = sphi 0, %s262
      %s280 = sphi 0, %s280
      %s282 = sphi 0, %s280
      %s283 = sphi 0, %s282
      %s297 = sphi 0, %s283
      %s301 = sphi 0, %s301
      %s303 = sphi 0, %s301
      %s304 = sphi 0, %s303
      %s318 = sphi 0, %s304
      %s322 = sphi 0, %s322
      %s324 = sphi 0, %s322
      %s325 = sphi 0, %s324
      %s339 = sphi 0, %s325
      %s343 = sphi 0, %s343
      %s345 = sphi 0, %s343
      %s346 = sphi 0, %s345
      %s360 = sphi 0, %s346
      %s364 = sphi 0, %s364
      %s366 = sphi 0, %s364
      %s367 = sphi 0, %s366
      %s381 = sphi 0, %s367
      %s385 = sphi 0, %s385
      %s387 = sphi 0, %s385
      %s388 = sphi 0, %s387
      %s402 = sphi 0, %s388
      %s408 = sphi 0, %s410
      %s411 = sphi 0, %s408
      %s412 = sphi 0, %s411
      %s428 = sphi 0, %s412
    $region4: #{tpu_custom_call.1} parent=1 // loop_header_branch
      %34 = sbr.rel (%p32) target = $region8
    $region5: #{tpu_custom_call.1} parent=1 // loop_body
      %s36 = ssub.s32 %s31, 1
      %s37 = ssub.s32 %s31, 2
      %s38 = sadd.s32 %s31, 1
      %s39 = ssub.s32 %s31, %s38
      %p40 = scmp.eq.s32.totalorder %s39, 0
      %s42 = sadd.s32 %s41, 1
      %s43 = scalar_select %p40, %s41, %s42
      %p46 = pneg %p40
      %p47 = scmp.eq.s32.totalorder %s31, 1
      %p48 = por %p46, %p47
      %p49 = scmp.ne.s32.totalorder %s41, %s44
      %p50 = scmp.eq.s32.totalorder %s31, 0
      %p51 = por %p49, %p50
      %p52 = scmp.ne.s32.totalorder %s41, %s44
      %p53 = scmp.eq.s32.totalorder %s36, 1
      %p54 = por %p52, %p53
      %p55 = scmp.ne.s32.totalorder %s44, %s45
      %p56 = scmp.eq.s32.totalorder %s36, 0
      %p57 = por %p55, %p56
      %p58 = scmp.ne.s32.totalorder %s44, %s45
      %p59 = scmp.eq.s32.totalorder %s37, 1
      %p60 = por %p58, %p59
      %p62 = scmp.ne.s32.totalorder %s45, %s61
      %p63 = scmp.eq.s32.totalorder %s37, 0
      %p64 = por %p62, %p63
      %s65 = ssub.s32 %s31, %s38
      %p66 = scmp.eq.s32.totalorder %s65, 0
      %s68 = sadd.s32 %s67, 1
      %s69 = scalar_select %p66, %s67, %s68
      %p72 = pneg %p66
      %p73 = scmp.eq.s32.totalorder %s31, 1
      %p74 = por %p72, %p73
      %p75 = scmp.ne.s32.totalorder %s67, %s70
      %p76 = scmp.eq.s32.totalorder %s31, 0
      %p77 = por %p75, %p76
      %p78 = scmp.ne.s32.totalorder %s67, %s70
      %p79 = scmp.eq.s32.totalorder %s36, 1
      %p80 = por %p78, %p79
      %p81 = scmp.ne.s32.totalorder %s70, %s71
      %p82 = scmp.eq.s32.totalorder %s36, 0
      %p83 = por %p81, %p82
      %p84 = scmp.ne.s32.totalorder %s70, %s71
      %p85 = scmp.eq.s32.totalorder %s37, 1
      %p86 = por %p84, %p85
      %p88 = scmp.ne.s32.totalorder %s71, %s87
      %p89 = scmp.eq.s32.totalorder %s37, 0
      %p90 = por %p88, %p89
      %s92 = sadd.s32 %s91, 1
      %p95 = scmp.eq.s32.totalorder %s31, 1
      %p96 = scmp.ne.s32.totalorder %s91, %s93
      %p97 = scmp.eq.s32.totalorder %s31, 0
      %p98 = por %p96, %p97
      %p99 = scmp.ne.s32.totalorder %s91, %s93
      %p100 = scmp.eq.s32.totalorder %s36, 1
      %p101 = por %p99, %p100
      %p102 = scmp.ne.s32.totalorder %s93, %s94
      %p103 = scmp.eq.s32.totalorder %s36, 0
      %p104 = por %p102, %p103
      %p105 = scmp.ne.s32.totalorder %s93, %s94
      %p106 = scmp.eq.s32.totalorder %s37, 1
      %p107 = por %p105, %p106
      %p109 = scmp.ne.s32.totalorder %s94, %s108
      %p110 = scmp.eq.s32.totalorder %s37, 0
      %p111 = por %p109, %p110
      %s113 = sadd.s32 %s112, 1
      %p116 = scmp.eq.s32.totalorder %s31, 1
      %p117 = scmp.ne.s32.totalorder %s112, %s114
      %p118 = scmp.eq.s32.totalorder %s31, 0
      %p119 = por %p117, %p118
      %p120 = scmp.ne.s32.totalorder %s112, %s114
      %p121 = scmp.eq.s32.totalorder %s36, 1
      %p122 = por %p120, %p121
      %p123 = scmp.ne.s32.totalorder %s114, %s115
      %p124 = scmp.eq.s32.totalorder %s36, 0
      %p125 = por %p123, %p124
      %p126 = scmp.ne.s32.totalorder %s114, %s115
      %p127 = scmp.eq.s32.totalorder %s37, 1
      %p128 = por %p126, %p127
      %p130 = scmp.ne.s32.totalorder %s115, %s129
      %p131 = scmp.eq.s32.totalorder %s37, 0
      %p132 = por %p130, %p131
      %s134 = sadd.s32 %s133, 1
      %p137 = scmp.eq.s32.totalorder %s31, 1
      %p138 = scmp.ne.s32.totalorder %s133, %s135
      %p139 = scmp.eq.s32.totalorder %s31, 0
      %p140 = por %p138, %p139
      %p141 = scmp.ne.s32.totalorder %s133, %s135
      %p142 = scmp.eq.s32.totalorder %s36, 1
      %p143 = por %p141, %p142
      %p144 = scmp.ne.s32.totalorder %s135, %s136
      %p145 = scmp.eq.s32.totalorder %s36, 0
      %p146 = por %p144, %p145
      %p147 = scmp.ne.s32.totalorder %s135, %s136
      %p148 = scmp.eq.s32.totalorder %s37, 1
      %p149 = por %p147, %p148
      %p151 = scmp.ne.s32.totalorder %s136, %s150
      %p152 = scmp.eq.s32.totalorder %s37, 0
      %p153 = por %p151, %p152
      %s155 = sadd.s32 %s154, 1
      %p158 = scmp.eq.s32.totalorder %s31, 1
      %p159 = scmp.ne.s32.totalorder %s154, %s156
      %p160 = scmp.eq.s32.totalorder %s31, 0
      %p161 = por %p159, %p160
      %p162 = scmp.ne.s32.totalorder %s154, %s156
      %p163 = scmp.eq.s32.totalorder %s36, 1
      %p164 = por %p162, %p163
      %p165 = scmp.ne.s32.totalorder %s156, %s157
      %p166 = scmp.eq.s32.totalorder %s36, 0
      %p167 = por %p165, %p166
      %p168 = scmp.ne.s32.totalorder %s156, %s157
      %p169 = scmp.eq.s32.totalorder %s37, 1
      %p170 = por %p168, %p169
      %p172 = scmp.ne.s32.totalorder %s157, %s171
      %p173 = scmp.eq.s32.totalorder %s37, 0
      %p174 = por %p172, %p173
      %s176 = sadd.s32 %s175, 1
      %p179 = scmp.eq.s32.totalorder %s31, 1
      %p180 = scmp.ne.s32.totalorder %s175, %s177
      %p181 = scmp.eq.s32.totalorder %s31, 0
      %p182 = por %p180, %p181
      %p183 = scmp.ne.s32.totalorder %s175, %s177
      %p184 = scmp.eq.s32.totalorder %s36, 1
      %p185 = por %p183, %p184
      %p186 = scmp.ne.s32.totalorder %s177, %s178
      %p187 = scmp.eq.s32.totalorder %s36, 0
      %p188 = por %p186, %p187
      %p189 = scmp.ne.s32.totalorder %s177, %s178
      %p190 = scmp.eq.s32.totalorder %s37, 1
      %p191 = por %p189, %p190
      %p193 = scmp.ne.s32.totalorder %s178, %s192
      %p194 = scmp.eq.s32.totalorder %s37, 0
      %p195 = por %p193, %p194
      %s197 = sadd.s32 %s196, 1
      %p200 = scmp.eq.s32.totalorder %s31, 1
      %p201 = scmp.ne.s32.totalorder %s196, %s198
      %p202 = scmp.eq.s32.totalorder %s31, 0
      %p203 = por %p201, %p202
      %p204 = scmp.ne.s32.totalorder %s196, %s198
      %p205 = scmp.eq.s32.totalorder %s36, 1
      %p206 = por %p204, %p205
      %p207 = scmp.ne.s32.totalorder %s198, %s199
      %p208 = scmp.eq.s32.totalorder %s36, 0
      %p209 = por %p207, %p208
      %p210 = scmp.ne.s32.totalorder %s198, %s199
      %p211 = scmp.eq.s32.totalorder %s37, 1
      %p212 = por %p210, %p211
      %p214 = scmp.ne.s32.totalorder %s199, %s213
      %p215 = scmp.eq.s32.totalorder %s37, 0
      %p216 = por %p214, %p215
      %s218 = sadd.s32 %s217, 1
      %p221 = scmp.eq.s32.totalorder %s31, 1
      %p222 = scmp.ne.s32.totalorder %s217, %s219
      %p223 = scmp.eq.s32.totalorder %s31, 0
      %p224 = por %p222, %p223
      %p225 = scmp.ne.s32.totalorder %s217, %s219
      %p226 = scmp.eq.s32.totalorder %s36, 1
      %p227 = por %p225, %p226
      %p228 = scmp.ne.s32.totalorder %s219, %s220
      %p229 = scmp.eq.s32.totalorder %s36, 0
      %p230 = por %p228, %p229
      %p231 = scmp.ne.s32.totalorder %s219, %s220
      %p232 = scmp.eq.s32.totalorder %s37, 1
      %p233 = por %p231, %p232
      %p235 = scmp.ne.s32.totalorder %s220, %s234
      %p236 = scmp.eq.s32.totalorder %s37, 0
      %p237 = por %p235, %p236
      %s239 = sadd.s32 %s238, 1
      %p242 = scmp.eq.s32.totalorder %s31, 1
      %p243 = scmp.ne.s32.totalorder %s238, %s240
      %p244 = scmp.eq.s32.totalorder %s31, 0
      %p245 = por %p243, %p244
      %p246 = scmp.ne.s32.totalorder %s238, %s240
      %p247 = scmp.eq.s32.totalorder %s36, 1
      %p248 = por %p246, %p247
      %p249 = scmp.ne.s32.totalorder %s240, %s241
      %p250 = scmp.eq.s32.totalorder %s36, 0
      %p251 = por %p249, %p250
      %p252 = scmp.ne.s32.totalorder %s240, %s241
      %p253 = scmp.eq.s32.totalorder %s37, 1
      %p254 = por %p252, %p253
      %p256 = scmp.ne.s32.totalorder %s241, %s255
      %p257 = scmp.eq.s32.totalorder %s37, 0
      %p258 = por %p256, %p257
      %s260 = sadd.s32 %s259, 1
      %p263 = scmp.eq.s32.totalorder %s31, 1
      %p264 = scmp.ne.s32.totalorder %s259, %s261
      %p265 = scmp.eq.s32.totalorder %s31, 0
      %p266 = por %p264, %p265
      %p267 = scmp.ne.s32.totalorder %s259, %s261
      %p268 = scmp.eq.s32.totalorder %s36, 1
      %p269 = por %p267, %p268
      %p270 = scmp.ne.s32.totalorder %s261, %s262
      %p271 = scmp.eq.s32.totalorder %s36, 0
      %p272 = por %p270, %p271
      %p273 = scmp.ne.s32.totalorder %s261, %s262
      %p274 = scmp.eq.s32.totalorder %s37, 1
      %p275 = por %p273, %p274
      %p277 = scmp.ne.s32.totalorder %s262, %s276
      %p278 = scmp.eq.s32.totalorder %s37, 0
      %p279 = por %p277, %p278
      %s281 = sadd.s32 %s280, 1
      %p284 = scmp.eq.s32.totalorder %s31, 1
      %p285 = scmp.ne.s32.totalorder %s280, %s282
      %p286 = scmp.eq.s32.totalorder %s31, 0
      %p287 = por %p285, %p286
      %p288 = scmp.ne.s32.totalorder %s280, %s282
      %p289 = scmp.eq.s32.totalorder %s36, 1
      %p290 = por %p288, %p289
      %p291 = scmp.ne.s32.totalorder %s282, %s283
      %p292 = scmp.eq.s32.totalorder %s36, 0
      %p293 = por %p291, %p292
      %p294 = scmp.ne.s32.totalorder %s282, %s283
      %p295 = scmp.eq.s32.totalorder %s37, 1
      %p296 = por %p294, %p295
      %p298 = scmp.ne.s32.totalorder %s283, %s297
      %p299 = scmp.eq.s32.totalorder %s37, 0
      %p300 = por %p298, %p299
      %s302 = sadd.s32 %s301, 1
      %p305 = scmp.eq.s32.totalorder %s31, 1
      %p306 = scmp.ne.s32.totalorder %s301, %s303
      %p307 = scmp.eq.s32.totalorder %s31, 0
      %p308 = por %p306, %p307
      %p309 = scmp.ne.s32.totalorder %s301, %s303
      %p310 = scmp.eq.s32.totalorder %s36, 1
      %p311 = por %p309, %p310
      %p312 = scmp.ne.s32.totalorder %s303, %s304
      %p313 = scmp.eq.s32.totalorder %s36, 0
      %p314 = por %p312, %p313
      %p315 = scmp.ne.s32.totalorder %s303, %s304
      %p316 = scmp.eq.s32.totalorder %s37, 1
      %p317 = por %p315, %p316
      %p319 = scmp.ne.s32.totalorder %s304, %s318
      %p320 = scmp.eq.s32.totalorder %s37, 0
      %p321 = por %p319, %p320
      %s323 = sadd.s32 %s322, 1
      %p326 = scmp.eq.s32.totalorder %s31, 1
      %p327 = scmp.ne.s32.totalorder %s322, %s324
      %p328 = scmp.eq.s32.totalorder %s31, 0
      %p329 = por %p327, %p328
      %p330 = scmp.ne.s32.totalorder %s322, %s324
      %p331 = scmp.eq.s32.totalorder %s36, 1
      %p332 = por %p330, %p331
      %p333 = scmp.ne.s32.totalorder %s324, %s325
      %p334 = scmp.eq.s32.totalorder %s36, 0
      %p335 = por %p333, %p334
      %p336 = scmp.ne.s32.totalorder %s324, %s325
      %p337 = scmp.eq.s32.totalorder %s37, 1
      %p338 = por %p336, %p337
      %p340 = scmp.ne.s32.totalorder %s325, %s339
      %p341 = scmp.eq.s32.totalorder %s37, 0
      %p342 = por %p340, %p341
      %s344 = sadd.s32 %s343, 1
      %p347 = scmp.eq.s32.totalorder %s31, 1
      %p348 = scmp.ne.s32.totalorder %s343, %s345
      %p349 = scmp.eq.s32.totalorder %s31, 0
      %p350 = por %p348, %p349
      %p351 = scmp.ne.s32.totalorder %s343, %s345
      %p352 = scmp.eq.s32.totalorder %s36, 1
      %p353 = por %p351, %p352
      %p354 = scmp.ne.s32.totalorder %s345, %s346
      %p355 = scmp.eq.s32.totalorder %s36, 0
      %p356 = por %p354, %p355
      %p357 = scmp.ne.s32.totalorder %s345, %s346
      %p358 = scmp.eq.s32.totalorder %s37, 1
      %p359 = por %p357, %p358
      %p361 = scmp.ne.s32.totalorder %s346, %s360
      %p362 = scmp.eq.s32.totalorder %s37, 0
      %p363 = por %p361, %p362
      %s365 = sadd.s32 %s364, 1
      %p368 = scmp.eq.s32.totalorder %s31, 1
      %p369 = scmp.ne.s32.totalorder %s364, %s366
      %p370 = scmp.eq.s32.totalorder %s31, 0
      %p371 = por %p369, %p370
      %p372 = scmp.ne.s32.totalorder %s364, %s366
      %p373 = scmp.eq.s32.totalorder %s36, 1
      %p374 = por %p372, %p373
      %p375 = scmp.ne.s32.totalorder %s366, %s367
      %p376 = scmp.eq.s32.totalorder %s36, 0
      %p377 = por %p375, %p376
      %p378 = scmp.ne.s32.totalorder %s366, %s367
      %p379 = scmp.eq.s32.totalorder %s37, 1
      %p380 = por %p378, %p379
      %p382 = scmp.ne.s32.totalorder %s367, %s381
      %p383 = scmp.eq.s32.totalorder %s37, 0
      %p384 = por %p382, %p383
      %s386 = sadd.s32 %s385, 1
      %p389 = scmp.eq.s32.totalorder %s31, 1
      %p390 = scmp.ne.s32.totalorder %s385, %s387
      %p391 = scmp.eq.s32.totalorder %s31, 0
      %p392 = por %p390, %p391
      %p393 = scmp.ne.s32.totalorder %s385, %s387
      %p394 = scmp.eq.s32.totalorder %s36, 1
      %p395 = por %p393, %p394
      %p396 = scmp.ne.s32.totalorder %s387, %s388
      %p397 = scmp.eq.s32.totalorder %s36, 0
      %p398 = por %p396, %p397
      %p399 = scmp.ne.s32.totalorder %s387, %s388
      %p400 = scmp.eq.s32.totalorder %s37, 1
      %p401 = por %p399, %p400
      %p403 = scmp.ne.s32.totalorder %s388, %s402
      %p404 = scmp.eq.s32.totalorder %s37, 0
      %p405 = por %p403, %p404
      %s406 = ssub.s32 %s31, %s38
      %p407 = scmp.eq.s32.totalorder %s406, 0
      %s409 = sadd.s32 %s408, 1
      %s410 = scalar_select %p407, %s408, %s409
      %p413 = pneg %p407
      %p414 = scmp.eq.s32.totalorder %s31, 1
      %p415 = por %p413, %p414
      %p416 = scmp.ne.s32.totalorder %s408, %s411
      %p417 = scmp.eq.s32.totalorder %s31, 0
      %p418 = por %p416, %p417
      %p419 = scmp.ne.s32.totalorder %s408, %s411
      %p420 = scmp.eq.s32.totalorder %s36, 1
      %p421 = por %p419, %p420
      %p422 = scmp.ne.s32.totalorder %s411, %s412
      %p423 = scmp.eq.s32.totalorder %s36, 0
      %p424 = por %p422, %p423
      %p425 = scmp.ne.s32.totalorder %s411, %s412
      %p426 = scmp.eq.s32.totalorder %s37, 1
      %p427 = por %p425, %p426
      %p429 = scmp.ne.s32.totalorder %s412, %s428
      %p430 = scmp.eq.s32.totalorder %s37, 0
      %p431 = por %p429, %p430
      %p432 = scmp.le.s32.totalorder 1, %s31
      %p433 = scmp.lt.s32.totalorder %s31, 3
      %p434 = pnand %p432, %p433
      %p435 = pneg %p434
      // Predicated region
      $region9: #{tpu_custom_call.1} parent=5 // pred_check
        _
      $region10: #{tpu_custom_call.1} parent=5 // pred_check_branch
        %437 = sbr.rel (%p434) target = $region12
      $region11: #{tpu_custom_call.1} parent=5 // pred_region
        %s438 = ssub.s32 %s31, 1
        // Predicated region
        $region13: #{tpu_custom_call.1} parent=11 // pred_check
          %p439 = pneg %p104
        $region14: #{tpu_custom_call.1} parent=11 // pred_check_branch
          %441 = sbr.rel (%p439) target = $region16
        $region15: #{tpu_custom_call.1} parent=11 // pred_region
          _
        $region16: #{tpu_custom_call.1} parent=11 // pred_fallthru
          _
        // Predicated region
        $region17: #{tpu_custom_call.1} parent=11 // pred_check
          %p442 = pneg %p125
        $region18: #{tpu_custom_call.1} parent=11 // pred_check_branch
          %444 = sbr.rel (%p442) target = $region20
        $region19: #{tpu_custom_call.1} parent=11 // pred_region
          _
        $region20: #{tpu_custom_call.1} parent=11 // pred_fallthru
          _
        // Predicated region
        $region21: #{tpu_custom_call.1} parent=11 // pred_check
          %p445 = pneg %p146
        $region22: #{tpu_custom_call.1} parent=11 // pred_check_branch
          %447 = sbr.rel (%p445) target = $region24
        $region23: #{tpu_custom_call.1} parent=11 // pred_region
          _
        $region24: #{tpu_custom_call.1} parent=11 // pred_fallthru
          _
        // Predicated region
        $region25: #{tpu_custom_call.1} parent=11 // pred_check
          %p448 = pneg %p167
        $region26: #{tpu_custom_call.1} parent=11 // pred_check_branch
          %450 = sbr.rel (%p448) target = $region28
        $region27: #{tpu_custom_call.1} parent=11 // pred_region
          %452 = vsyncadd [#allocation6], 0
          %s453 = sshll.u32 %s5, 4
          %s454 = int_to_ptr.hbm [resolvable:$true] %s453
          %s455 = sshll.u32 [#allocation5], 4
          %s456 = int_to_ptr.vmem [resolvable:$true] %s455
          %461 = dma.hbm_to_vmem [thread:$0]  %s454, 256, %s456, [#allocation6], 64, 64, 4
        $region28: #{tpu_custom_call.1} parent=11 // pred_fallthru
          _
        // Predicated region
        $region29: #{tpu_custom_call.1} parent=11 // pred_check
          %p462 = pneg %p188
        $region30: #{tpu_custom_call.1} parent=11 // pred_check_branch
          %464 = sbr.rel (%p462) target = $region32
        $region31: #{tpu_custom_call.1} parent=11 // pred_region
          _
        $region32: #{tpu_custom_call.1} parent=11 // pred_fallthru
          _
        // Predicated region
        $region33: #{tpu_custom_call.1} parent=11 // pred_check
          %p465 = pneg %p209
        $region34: #{tpu_custom_call.1} parent=11 // pred_check_branch
          %467 = sbr.rel (%p465) target = $region36
        $region35: #{tpu_custom_call.1} parent=11 // pred_region
          _
        $region36: #{tpu_custom_call.1} parent=11 // pred_fallthru
          _
        // Predicated region
        $region37: #{tpu_custom_call.1} parent=11 // pred_check
          %p468 = pneg %p230
        $region38: #{tpu_custom_call.1} parent=11 // pred_check_branch
          %470 = sbr.rel (%p468) target = $region40
        $region39: #{tpu_custom_call.1} parent=11 // pred_region
          _
        $region40: #{tpu_custom_call.1} parent=11 // pred_fallthru
          _
        // Predicated region
        $region41: #{tpu_custom_call.1} parent=11 // pred_check
          %p471 = pneg %p251
        $region42: #{tpu_custom_call.1} parent=11 // pred_check_branch
          %473 = sbr.rel (%p471) target = $region44
        $region43: #{tpu_custom_call.1} parent=11 // pred_region
          _
        $region44: #{tpu_custom_call.1} parent=11 // pred_fallthru
          _
        // Predicated region
        $region45: #{tpu_custom_call.1} parent=11 // pred_check
          %p474 = pneg %p272
        $region46: #{tpu_custom_call.1} parent=11 // pred_check_branch
          %476 = sbr.rel (%p474) target = $region48
        $region47: #{tpu_custom_call.1} parent=11 // pred_region
          _
        $region48: #{tpu_custom_call.1} parent=11 // pred_fallthru
          _
        // Predicated region
        $region49: #{tpu_custom_call.1} parent=11 // pred_check
          %p477 = pneg %p293
        $region50: #{tpu_custom_call.1} parent=11 // pred_check_branch
          %479 = sbr.rel (%p477) target = $region52
        $region51: #{tpu_custom_call.1} parent=11 // pred_region
          %481 = vsyncadd [#allocation6], 0
          %s482 = sshll.u32 %s11, 4
          %s483 = int_to_ptr.hbm [resolvable:$true] %s482
          %s484 = sshll.u32 [#allocation7], 4
          %s485 = int_to_ptr.vmem [resolvable:$true] %s484
          %490 = dma.hbm_to_vmem [thread:$0]  %s483, 256, %s485, [#allocation6], 64, 64, 4
        $region52: #{tpu_custom_call.1} parent=11 // pred_fallthru
          _
        // Predicated region
        $region53: #{tpu_custom_call.1} parent=11 // pred_check
          %p491 = pneg %p314
        $region54: #{tpu_custom_call.1} parent=11 // pred_check_branch
          %493 = sbr.rel (%p491) target = $region56
        $region55: #{tpu_custom_call.1} parent=11 // pred_region
          _
        $region56: #{tpu_custom_call.1} parent=11 // pred_fallthru
          _
        // Predicated region
        $region57: #{tpu_custom_call.1} parent=11 // pred_check
          %p494 = pneg %p335
        $region58: #{tpu_custom_call.1} parent=11 // pred_check_branch
          %496 = sbr.rel (%p494) target = $region60
        $region59: #{tpu_custom_call.1} parent=11 // pred_region
          _
        $region60: #{tpu_custom_call.1} parent=11 // pred_fallthru
          _
        // Predicated region
        $region61: #{tpu_custom_call.1} parent=11 // pred_check
          %p497 = pneg %p356
        $region62: #{tpu_custom_call.1} parent=11 // pred_check_branch
          %499 = sbr.rel (%p497) target = $region64
        $region63: #{tpu_custom_call.1} parent=11 // pred_region
          _
        $region64: #{tpu_custom_call.1} parent=11 // pred_fallthru
          _
        // Predicated region
        $region65: #{tpu_custom_call.1} parent=11 // pred_check
          %p500 = pneg %p377
        $region66: #{tpu_custom_call.1} parent=11 // pred_check_branch
          %502 = sbr.rel (%p500) target = $region68
        $region67: #{tpu_custom_call.1} parent=11 // pred_region
          %504 = vsyncadd [#allocation9], 0
          %s505 = sshll.u32 %s15, 4
          %s506 = int_to_ptr.hbm [resolvable:$true] %s505
          %s507 = sshll.u32 [#allocation8], 4
          %s508 = int_to_ptr.vmem [resolvable:$true] %s507
          %513 = dma.hbm_to_vmem [thread:$0]  %s506, 4096, %s508, [#allocation9], 64, 64, 4
        $region68: #{tpu_custom_call.1} parent=11 // pred_fallthru
          _
        // Predicated region
        $region69: #{tpu_custom_call.1} parent=11 // pred_check
          %p514 = pneg %p398
        $region70: #{tpu_custom_call.1} parent=11 // pred_check_branch
          %516 = sbr.rel (%p514) target = $region72
        $region71: #{tpu_custom_call.1} parent=11 // pred_region
          _
        $region72: #{tpu_custom_call.1} parent=11 // pred_fallthru
          _
      $region12: #{tpu_custom_call.1} parent=5 // pred_fallthru
        _
      %p517 = scmp.lt.s32.totalorder %s31, 2
      // Predicated region
      $region73: #{tpu_custom_call.1} parent=5 // pred_check
        %p518 = pneg %p517
      $region74: #{tpu_custom_call.1} parent=5 // pred_check_branch
        %520 = sbr.rel (%p518) target = $region76
      $region75: #{tpu_custom_call.1} parent=5 // pred_region
        // Predicated region
        $region77: #{tpu_custom_call.1} parent=75 // pred_check
          %p521 = pneg %p51
        $region78: #{tpu_custom_call.1} parent=75 // pred_check_branch
          %523 = sbr.rel (%p521) target = $region80
        $region79: #{tpu_custom_call.1} parent=75 // pred_region
          %p524 = scmp.lt.s32.totalorder %s31, 1
          %s525 = scalar_select %p524, %s31, 1
          %s526 = smul.addr %s525, 2
          %s527 = smul.addr %s526, 8
          %s528 = scalar_lea.vmem %s0, %s527
        $region80: #{tpu_custom_call.1} parent=75 // pred_fallthru
          _
        // Predicated region
        $region81: #{tpu_custom_call.1} parent=75 // pred_check
          %p529 = pneg %p77
        $region82: #{tpu_custom_call.1} parent=75 // pred_check_branch
          %531 = sbr.rel (%p529) target = $region84
        $region83: #{tpu_custom_call.1} parent=75 // pred_region
          %s532 = sand.u32 %s67, 1
          %s533 = scalar_lea.sflag [#allocation3], %s532
          %s534 = sand.u32 %s67, 1
          %s535 = smul.addr %s534, 16
          %s536 = scalar_lea.vmem [#allocation2], %s535
          %538 = vsyncadd %s533, 0
          %s539 = smul.addr %s31, 2
          %s540 = smul.addr %s539, 8
          %s541 = scalar_lea.hbm %s1, %s540
          %s542 = sshll.u32 %s541, 4
          %s543 = int_to_ptr.hbm [resolvable:$true] %s542
          %s544 = sshll.u32 %s536, 4
          %s545 = int_to_ptr.vmem [resolvable:$true] %s544
          %550 = dma.hbm_to_vmem [thread:$0]  %s543, 256, %s545, %s533, 128, 128, 8
        $region84: #{tpu_custom_call.1} parent=75 // pred_fallthru
          _
      $region76: #{tpu_custom_call.1} parent=5 // pred_fallthru
        _
      %p551 = scmp.le.s32.totalorder 1, %s31
      %p552 = scmp.lt.s32.totalorder %s31, 3
      %p553 = pnand %p551, %p552
      %p554 = pneg %p553
      // Predicated region
      $region85: #{tpu_custom_call.1} parent=5 // pred_check
        _
      $region86: #{tpu_custom_call.1} parent=5 // pred_check_branch
        %556 = sbr.rel (%p553) target = $region88
      $region87: #{tpu_custom_call.1} parent=5 // pred_region
        %s557 = ssub.s32 %s31, 1
        %s558 = sand.u32 %s70, 1
        %s559 = scalar_lea.sflag [#allocation3], %s558
        %s560 = sand.u32 %s70, 1
        %s561 = smul.addr %s560, 16
        %s562 = scalar_lea.vmem [#allocation2], %s561
        // Predicated region
        $region89: #{tpu_custom_call.1} parent=87 // pred_check
          %p563 = pneg %p83
        $region90: #{tpu_custom_call.1} parent=87 // pred_check_branch
          %565 = sbr.rel (%p563) target = $region92
        $region91: #{tpu_custom_call.1} parent=87 // pred_region
          %567 = dma.done %s559, 256
        $region92: #{tpu_custom_call.1} parent=87 // pred_fallthru
          _
        // Predicated region
        $region93: #{tpu_custom_call.1} parent=87 // pred_check
          %p568 = pneg %p167
        $region94: #{tpu_custom_call.1} parent=87 // pred_check_branch
          %570 = sbr.rel (%p568) target = $region96
        $region95: #{tpu_custom_call.1} parent=87 // pred_region
          %572 = dma.done [#allocation6], 256
        $region96: #{tpu_custom_call.1} parent=87 // pred_fallthru
          _
        // Predicated region
        $region97: #{tpu_custom_call.1} parent=87 // pred_check
          %p573 = pneg %p293
        $region98: #{tpu_custom_call.1} parent=87 // pred_check_branch
          %575 = sbr.rel (%p573) target = $region100
        $region99: #{tpu_custom_call.1} parent=87 // pred_region
          %577 = dma.done [#allocation6], 256
        $region100: #{tpu_custom_call.1} parent=87 // pred_fallthru
          _
        // Predicated region
        $region101: #{tpu_custom_call.1} parent=87 // pred_check
          %p578 = pneg %p377
        $region102: #{tpu_custom_call.1} parent=87 // pred_check_branch
          %580 = sbr.rel (%p578) target = $region104
        $region103: #{tpu_custom_call.1} parent=87 // pred_region
          %582 = dma.done [#allocation9], 4096
        $region104: #{tpu_custom_call.1} parent=87 // pred_fallthru
          _
        %p583 = scmp.lt.s32.totalorder %s36, 1
        %s584 = scalar_select %p583, %s36, 1
        %s585 = smul.addr %s584, 2
        %s586 = smul.addr %s585, 8
        %s587 = scalar_lea.vmem %s0, %s586
        %p588 = pneg %p57
        %p589 = pneg %p54
        %s590 = sand.u32 %s70, 1
        %s591 = scalar_lea.sflag [#allocation3], %s590
        %s592 = sand.u32 %s70, 1
        %s593 = smul.addr %s592, 16
        %s594 = scalar_lea.vmem [#allocation2], %s593
        %p595 = pneg %p83
        %p596 = pneg %p80
        %p597 = pneg %p104
        %p598 = pneg %p101
        %p599 = pneg %p125
        %p600 = pneg %p122
        %p601 = pneg %p146
        %p602 = pneg %p143
        %p603 = pneg %p167
        %p604 = pneg %p164
        %p605 = pneg %p188
        %p606 = pneg %p185
        %p607 = pneg %p209
        %p608 = pneg %p206
        %p609 = pneg %p230
        %p610 = pneg %p227
        %p611 = pneg %p251
        %p612 = pneg %p248
        %p613 = pneg %p272
        %p614 = pneg %p269
        %p615 = pneg %p293
        %p616 = pneg %p290
        %p617 = pneg %p314
        %p618 = pneg %p311
        %p619 = pneg %p335
        %p620 = pneg %p332
        %p621 = pneg %p356
        %p622 = pneg %p353
        %p623 = pneg %p377
        %p624 = pneg %p374
        %p625 = pneg %p398
        %p626 = pneg %p395
        %p627 = pneg %p424
        %p628 = pneg %p421
        %s629 = sand.u32 %s411, 1
        %s630 = scalar_lea.sflag [#allocation4], %s629
        %s631 = sand.u32 %s411, 1
        %s632 = smul.addr %s631, 16
        %s633 = scalar_lea.vmem [#allocation10], %s632
        %p634 = scmp.lt.s32.totalorder %s36, 1
        %s635 = scalar_select %p634, %s36, 1
        %s636 = smul.addr %s635, 2
        %s637 = smul.addr %s636, 8
        %s638 = scalar_lea.vmem %s0, %s637
        %v640 = vld [vmem:[%s2] sm:$0x1]
        %v641 = vld [vmem:[%s638] sm:$0xff]
        %v642 = vld [vmem:[%s638 + $0x8] sm:$0xff]
        %v643 = vld [vmem:[%s562] sm:$0xff]
        %v644 = vld [vmem:[%s562 + $0x8] sm:$0xff]
        %v645 = vmul.f32 %v641, %v641
        %v646 = vmul.f32 %v642, %v642
        %647 = vadd.xlane.f32.xlu0 %v645
        %v648 = vpop.xlane.xlu0 %647
        %649 = vadd.xlane.f32.xlu0 %v646
        %v650 = vpop.xlane.xlu0 %649
        %v651 = vrsqrt.pop %v648
        %v652 = vmul.f32 %v651, %v648
        %v653 = vmul.f32 %v652, %v651
        %v654 = vmul.f32 0.5, %v653
        %v655 = vsub.f32 1.5, %v654
        %v656 = vmul.f32 %v651, %v655
        %v657 = vmul.f32 %v648, %v656
        %vm658 = vcmp.eq.f32.partialorder %v648, inf
        %v659 = vsel %vm658, %v648, %v657
        %vm660 = vcmp.eq.f32.partialorder %v648, 0.0
        %v661 = vand.u32 %v648, 2147483648
        %v662 = vsel %vm660, %v661, %v659
        %v663 = vrsqrt.pop %v650
        %v664 = vmul.f32 %v663, %v650
        %v665 = vmul.f32 %v664, %v663
        %v666 = vmul.f32 0.5, %v665
        %v667 = vsub.f32 1.5, %v666
        %v668 = vmul.f32 %v663, %v667
        %v669 = vmul.f32 %v650, %v668
        %vm670 = vcmp.eq.f32.partialorder %v650, inf
        %v671 = vsel %vm670, %v650, %v669
        %vm672 = vcmp.eq.f32.partialorder %v650, 0.0
        %v673 = vand.u32 %v650, 2147483648
        %v674 = vsel %vm672, %v673, %v671
        %v675 = vmul.f32 %v662, 0.088388346
        %v676 = vmul.f32 %v674, 0.088388346
        %v677 = vadd.f32 %v675, 1e-08
        %v678 = vadd.f32 %v676, 1e-08
        %v679 = vrcp.pop %v677
        %v680 = vrcp.pop %v678
        %v681 = vmul.f32 %v641, %v679
        %v682 = vmul.f32 %v642, %v680
        %v684 = vperm.slane %v640, 0
        %v686 = vmul.f32 %v681, %v684
        %v687 = vmul.f32 %v682, %v684
        %v688 = vpack.c.bf16 %v687, %v686
        %v689 = vld [vmem:[%s3] sm:$0xf]
        %v690 = vld [vmem:[%s3 + $0x4] sm:$0xf]
        %v691 = vld [vmem:[%s3 + $0x8] sm:$0xf]
        %v692 = vld [vmem:[%s3 + $0xc] sm:$0xf]
        %v693 = vld [vmem:[%s3 + $0x10] sm:$0xf]
        %v694 = vld [vmem:[%s3 + $0x14] sm:$0xf]
        %v695 = vld [vmem:[%s3 + $0x18] sm:$0xf]
        %v696 = vld [vmem:[%s3 + $0x1c] sm:$0xf]
        %v697 = vld [vmem:[%s3 + $0x20] sm:$0xf]
        %v698 = vld [vmem:[%s3 + $0x24] sm:$0xf]
        %v699 = vld [vmem:[%s3 + $0x28] sm:$0xf]
        %v700 = vld [vmem:[%s3 + $0x2c] sm:$0xf]
        %v701 = vld [vmem:[%s3 + $0x30] sm:$0xf]
        %v702 = vld [vmem:[%s3 + $0x34] sm:$0xf]
        %v703 = vld [vmem:[%s3 + $0x38] sm:$0xf]
        %v704 = vld [vmem:[%s3 + $0x3c] sm:$0xf]
        %v705 = vld [vmem:[%s4] sm:$0x1]
        %v707 = vperm.slane %v705, 0
        %v725 = vunpack.c.l.b16 %v689
        %v726 = vunpack.c.l.b16 %v690
        %v727 = vunpack.c.l.b16 %v691
        %v728 = vunpack.c.l.b16 %v692
        %v729 = vunpack.c.l.b16 %v693
        %v730 = vunpack.c.l.b16 %v694
        %v731 = vunpack.c.l.b16 %v695
        %v732 = vunpack.c.l.b16 %v696
        %v733 = vunpack.c.l.b16 %v697
        %v734 = vunpack.c.l.b16 %v698
        %v735 = vunpack.c.l.b16 %v699
        %v736 = vunpack.c.l.b16 %v700
        %v737 = vunpack.c.l.b16 %v701
        %v738 = vunpack.c.l.b16 %v702
        %v739 = vunpack.c.l.b16 %v703
        %v740 = vunpack.c.l.b16 %v704
        %v741 = vpack.c.b16 %v726, %v725
        %v742 = vpack.c.b16 %v728, %v727
        %v743 = vpack.c.b16 %v730, %v729
        %v744 = vpack.c.b16 %v732, %v731
        %v745 = vpack.c.b16 %v734, %v733
        %v746 = vpack.c.b16 %v736, %v735
        %v747 = vpack.c.b16 %v738, %v737
        %v748 = vpack.c.b16 %v740, %v739
        %757 = vmatpush.bf16.msra.mxu0 %v748
        %758 = vmatpush.bf16.msra.mxu0 %v747
        %759 = vmatpush.bf16.msra.mxu0 %v746
        %760 = vmatpush.bf16.msra.mxu0 %v745
        %761 = vmatpush.bf16.msra.mxu0 %v744
        %762 = vmatpush.bf16.msra.mxu0 %v743
        %763 = vmatpush.bf16.msra.mxu0 %v742
        %764 = vmatpush.bf16.msra.mxu0 %v741
        %765 = vmatmul.bf16.gmra.mxu0 %v688
        %v766 = vpop.f32.mrf.mxu0
        %v767 = vadd.f32 %v707, %v766
        %v768 = vpop.f32.mrf.mxu0
        %v769 = vadd.f32 %v707, %v768
        %770 = vdwg.mxu0
        %v771 = vpack.c.bf16 %v769, %v767
        %773 = vrot.lane.b32.xlu0 %v771, 96
        %v774 = vpop.permute.xlu0 %773
        %vm775 = vcmask 261120
        %v777 = vsel %vm775, %v771, 0
        %v780 = vsel %vm775, %v774, 0
        %782 = vmatpush.bf16.xpose.msra.mxu0 0
        %783 = vmatpush.bf16.xpose.msra.mxu0 0
        %784 = vmatpush.bf16.xpose.msra.mxu0 0
        %785 = vmatpush.bf16.xpose.msra.mxu0 0
        %786 = vmatpush.bf16.xpose.msra.mxu0 0
        %787 = vmatpush.bf16.xpose.msra.mxu0 0
        %788 = vmatpush.bf16.xpose.msra.mxu0 0
        %789 = vmatpush.bf16.xpose.msra.mxu0 %v780
        %790 = vmatmul.bf16.gmra.mxu0 %v777
        %v791 = vpop.f32.mrf.mxu0
        %v792 = vadd.f32 0.0, %v791
        %v793 = vpop.f32.mrf.mxu0
        %v794 = vadd.f32 0.0, %v793
        %795 = vdwg.mxu0
        %v796 = vmul.f32 %v792, 0.17677669
        %v797 = vmul.f32 %v794, 0.17677669
        %vm798 = vcmask 130048
        %v799 = vsel %vm798, %v796, -inf
        %800 = vmax.xlane.f32.xlu0 %v799
        %v801 = vpop.xlane.xlu0 %800
        %v802 = vsel %vm798, %v797, -inf
        %803 = vmax.xlane.f32.xlu0 %v802
        %v804 = vpop.xlane.xlu0 %803
        %v805 = vsub.f32 %v796, %v801
        %v806 = vsub.f32 %v797, %v804
        %v807 = vmul.f32 %v805, 1.442695
        %v808 = vpow.pop %v807
        %v809 = vmul.f32 %v806, 1.442695
        %v810 = vpow.pop %v809
        %v811 = vsel %vm798, %v808, 0.0
        %812 = vadd.xlane.f32.xlu0 %v811
        %v813 = vpop.xlane.xlu0 %812
        %v814 = vsel %vm798, %v810, 0.0
        %815 = vadd.xlane.f32.xlu0 %v814
        %v816 = vpop.xlane.xlu0 %815
        %v817 = vrcp.pop %v813
        %v818 = vrcp.pop %v816
        %v819 = vmul.f32 %v808, %v817
        %v820 = vmul.f32 %v810, %v818
        %v821 = vpack.c.bf16 %v820, %v819
        %822 = vrot.lane.b32.xlu0 %v771, 64
        %v823 = vpop.permute.xlu0 %822
        %v826 = vsel %vm798, %v821, 0
        %828 = vmatpush.bf16.msra.mxu0 0
        %829 = vmatpush.bf16.msra.mxu0 0
        %830 = vmatpush.bf16.msra.mxu0 0
        %831 = vmatpush.bf16.msra.mxu0 0
        %832 = vmatpush.bf16.msra.mxu0 0
        %833 = vmatpush.bf16.msra.mxu0 0
        %834 = vmatpush.bf16.msra.mxu0 0
        %835 = vmatpush.bf16.msra.mxu0 %v823
        %836 = vmatmul.bf16.gmra.mxu0 %v826
        %v837 = vpop.f32.mrf.mxu0
        %v838 = vadd.f32 0.0, %v837
        %v839 = vpop.f32.mrf.mxu0
        %v840 = vadd.f32 0.0, %v839
        %841 = vdwg.mxu0
        %v842 = vpack.c.bf16 %v840, %v838
        %v843 = vld [vmem:[#allocation5] sm:$0xf]
        %v844 = vld [vmem:[#allocation5 + $0x4] sm:$0xf]
        %v845 = vld [vmem:[#allocation5 + $0x8] sm:$0xf]
        %v846 = vld [vmem:[#allocation5 + $0xc] sm:$0xf]
        %v847 = vld [vmem:[%s6] sm:$0x1]
        %v849 = vperm.slane %v847, 0
        %v855 = vunpack.c.l.b16 %v843
        %v856 = vunpack.c.l.b16 %v844
        %v857 = vunpack.c.l.b16 %v845
        %v858 = vunpack.c.l.b16 %v846
        %v859 = vpack.c.b16 %v856, %v855
        %v860 = vpack.c.b16 %v858, %v857
        %v864 = vsel %vm775, %v842, 0
        %866 = vmatpush.bf16.msra.mxu0 0
        %867 = vmatpush.bf16.msra.mxu0 0
        %868 = vmatpush.bf16.msra.mxu0 0
        %869 = vmatpush.bf16.msra.mxu0 0
        %870 = vmatpush.bf16.msra.mxu0 0
        %871 = vmatpush.bf16.msra.mxu0 0
        %872 = vmatpush.bf16.msra.mxu0 %v860
        %873 = vmatpush.bf16.msra.mxu0 %v859
        %874 = vmatmul.bf16.gmra.mxu0 %v864
        %v875 = vpop.f32.mrf.mxu0
        %v876 = vadd.f32 %v849, %v875
        %v877 = vpop.f32.mrf.mxu0
        %v878 = vadd.f32 %v849, %v877
        %879 = vdwg.mxu0
        %v880 = vadd.f32 %v876, %v641
        %v881 = vadd.f32 %v878, %v642
        %v882 = vmul.f32 %v880, %v880
        %v883 = vmul.f32 %v881, %v881
        %884 = vadd.xlane.f32.xlu0 %v882
        %v885 = vpop.xlane.xlu0 %884
        %886 = vadd.xlane.f32.xlu0 %v883
        %v887 = vpop.xlane.xlu0 %886
        %v888 = vrsqrt.pop %v885
        %v889 = vmul.f32 %v888, %v885
        %v890 = vmul.f32 %v889, %v888
        %v891 = vmul.f32 0.5, %v890
        %v892 = vsub.f32 1.5, %v891
        %v893 = vmul.f32 %v888, %v892
        %v894 = vmul.f32 %v885, %v893
        %vm895 = vcmp.eq.f32.partialorder %v885, inf
        %v896 = vsel %vm895, %v885, %v894
        %vm897 = vcmp.eq.f32.partialorder %v885, 0.0
        %v898 = vand.u32 %v885, 2147483648
        %v899 = vsel %vm897, %v898, %v896
        %v900 = vrsqrt.pop %v887
        %v901 = vmul.f32 %v900, %v887
        %v902 = vmul.f32 %v901, %v900
        %v903 = vmul.f32 0.5, %v902
        %v904 = vsub.f32 1.5, %v903
        %v905 = vmul.f32 %v900, %v904
        %v906 = vmul.f32 %v887, %v905
        %vm907 = vcmp.eq.f32.partialorder %v887, inf
        %v908 = vsel %vm907, %v887, %v906
        %vm909 = vcmp.eq.f32.partialorder %v887, 0.0
        %v910 = vand.u32 %v887, 2147483648
        %v911 = vsel %vm909, %v910, %v908
        %v912 = vmul.f32 %v899, 0.088388346
        %v913 = vmul.f32 %v911, 0.088388346
        %v914 = vadd.f32 %v912, 1e-08
        %v915 = vadd.f32 %v913, 1e-08
        %v916 = vrcp.pop %v914
        %v917 = vrcp.pop %v915
        %v918 = vmul.f32 %v880, %v916
        %v919 = vmul.f32 %v881, %v917
        %v920 = vmul.f32 %v918, %v684
        %v921 = vmul.f32 %v919, %v684
        %v922 = vmul.f32 %v643, %v643
        %v923 = vmul.f32 %v644, %v644
        %924 = vadd.xlane.f32.xlu0 %v922
        %v925 = vpop.xlane.xlu0 %924
        %926 = vadd.xlane.f32.xlu0 %v923
        %v927 = vpop.xlane.xlu0 %926
        %v928 = vrsqrt.pop %v925
        %v929 = vmul.f32 %v928, %v925
        %v930 = vmul.f32 %v929, %v928
        %v931 = vmul.f32 0.5, %v930
        %v932 = vsub.f32 1.5, %v931
        %v933 = vmul.f32 %v928, %v932
        %v934 = vmul.f32 %v925, %v933
        %vm935 = vcmp.eq.f32.partialorder %v925, inf
        %v936 = vsel %vm935, %v925, %v934
        %vm937 = vcmp.eq.f32.partialorder %v925, 0.0
        %v938 = vand.u32 %v925, 2147483648
        %v939 = vsel %vm937, %v938, %v936
        %v940 = vrsqrt.pop %v927
        %v941 = vmul.f32 %v940, %v927
        %v942 = vmul.f32 %v941, %v940
        %v943 = vmul.f32 0.5, %v942
        %v944 = vsub.f32 1.5, %v943
        %v945 = vmul.f32 %v940, %v944
        %v946 = vmul.f32 %v927, %v945
        %vm947 = vcmp.eq.f32.partialorder %v927, inf
        %v948 = vsel %vm947, %v927, %v946
        %vm949 = vcmp.eq.f32.partialorder %v927, 0.0
        %v950 = vand.u32 %v927, 2147483648
        %v951 = vsel %vm949, %v950, %v948
        %v952 = vmul.f32 %v939, 0.088388346
        %v953 = vmul.f32 %v951, 0.088388346
        %v954 = vadd.f32 %v952, 1e-08
        %v955 = vadd.f32 %v953, 1e-08
        %v956 = vrcp.pop %v954
        %v957 = vrcp.pop %v955
        %v958 = vmul.f32 %v643, %v956
        %v959 = vmul.f32 %v644, %v957
        %v960 = vmul.f32 %v958, %v684
        %v961 = vmul.f32 %v959, %v684
        %v962 = vpack.c.bf16 %v921, %v920
        %v963 = vld [vmem:[%s7] sm:$0xf]
        %v964 = vld [vmem:[%s7 + $0x4] sm:$0xf]
        %v965 = vld [vmem:[%s7 + $0x8] sm:$0xf]
        %v966 = vld [vmem:[%s7 + $0xc] sm:$0xf]
        %v967 = vld [vmem:[%s7 + $0x10] sm:$0xf]
        %v968 = vld [vmem:[%s7 + $0x14] sm:$0xf]
        %v969 = vld [vmem:[%s7 + $0x18] sm:$0xf]
        %v970 = vld [vmem:[%s7 + $0x1c] sm:$0xf]
        %v971 = vld [vmem:[%s7 + $0x20] sm:$0xf]
        %v972 = vld [vmem:[%s7 + $0x24] sm:$0xf]
        %v973 = vld [vmem:[%s7 + $0x28] sm:$0xf]
        %v974 = vld [vmem:[%s7 + $0x2c] sm:$0xf]
        %v975 = vld [vmem:[%s7 + $0x30] sm:$0xf]
        %v976 = vld [vmem:[%s7 + $0x34] sm:$0xf]
        %v977 = vld [vmem:[%s7 + $0x38] sm:$0xf]
        %v978 = vld [vmem:[%s7 + $0x3c] sm:$0xf]
        %v979 = vld [vmem:[%s8] sm:$0x1]
        %v981 = vperm.slane %v979, 0
        %v999 = vunpack.c.l.b16 %v963
        %v1000 = vunpack.c.l.b16 %v964
        %v1001 = vunpack.c.l.b16 %v965
        %v1002 = vunpack.c.l.b16 %v966
        %v1003 = vunpack.c.l.b16 %v967
        %v1004 = vunpack.c.l.b16 %v968
        %v1005 = vunpack.c.l.b16 %v969
        %v1006 = vunpack.c.l.b16 %v970
        %v1007 = vunpack.c.l.b16 %v971
        %v1008 = vunpack.c.l.b16 %v972
        %v1009 = vunpack.c.l.b16 %v973
        %v1010 = vunpack.c.l.b16 %v974
        %v1011 = vunpack.c.l.b16 %v975
        %v1012 = vunpack.c.l.b16 %v976
        %v1013 = vunpack.c.l.b16 %v977
        %v1014 = vunpack.c.l.b16 %v978
        %v1015 = vpack.c.b16 %v1000, %v999
        %v1016 = vpack.c.b16 %v1002, %v1001
        %v1017 = vpack.c.b16 %v1004, %v1003
        %v1018 = vpack.c.b16 %v1006, %v1005
        %v1019 = vpack.c.b16 %v1008, %v1007
        %v1020 = vpack.c.b16 %v1010, %v1009
        %v1021 = vpack.c.b16 %v1012, %v1011
        %v1022 = vpack.c.b16 %v1014, %v1013
        %1031 = vmatpush.bf16.msra.mxu0 %v1022
        %1032 = vmatpush.bf16.msra.mxu0 %v1021
        %1033 = vmatpush.bf16.msra.mxu0 %v1020
        %1034 = vmatpush.bf16.msra.mxu0 %v1019
        %1035 = vmatpush.bf16.msra.mxu0 %v1018
        %1036 = vmatpush.bf16.msra.mxu0 %v1017
        %1037 = vmatpush.bf16.msra.mxu0 %v1016
        %1038 = vmatpush.bf16.msra.mxu0 %v1015
        %1039 = vmatmul.bf16.gmra.mxu0 %v962
        %v1040 = vpop.f32.mrf.mxu0
        %v1041 = vadd.f32 %v981, %v1040
        %v1042 = vpop.f32.mrf.mxu0
        %v1043 = vadd.f32 %v981, %v1042
        %1044 = vdwg.mxu0
        %v1045 = vpack.c.bf16 %v961, %v960
        %v1046 = vld [vmem:[%s9] sm:$0xf]
        %v1047 = vld [vmem:[%s9 + $0x4] sm:$0xf]
        %v1048 = vld [vmem:[%s9 + $0x8] sm:$0xf]
        %v1049 = vld [vmem:[%s9 + $0xc] sm:$0xf]
        %v1050 = vld [vmem:[%s9 + $0x10] sm:$0xf]
        %v1051 = vld [vmem:[%s9 + $0x14] sm:$0xf]
        %v1052 = vld [vmem:[%s9 + $0x18] sm:$0xf]
        %v1053 = vld [vmem:[%s9 + $0x1c] sm:$0xf]
        %v1054 = vld [vmem:[%s9 + $0x20] sm:$0xf]
        %v1055 = vld [vmem:[%s9 + $0x24] sm:$0xf]
        %v1056 = vld [vmem:[%s9 + $0x28] sm:$0xf]
        %v1057 = vld [vmem:[%s9 + $0x2c] sm:$0xf]
        %v1058 = vld [vmem:[%s9 + $0x30] sm:$0xf]
        %v1059 = vld [vmem:[%s9 + $0x34] sm:$0xf]
        %v1060 = vld [vmem:[%s9 + $0x38] sm:$0xf]
        %v1061 = vld [vmem:[%s9 + $0x3c] sm:$0xf]
        %v1062 = vld [vmem:[%s10] sm:$0x1]
        %v1064 = vperm.slane %v1062, 0
        %v1082 = vunpack.c.l.b16 %v1046
        %v1083 = vunpack.c.l.b16 %v1047
        %v1084 = vunpack.c.l.b16 %v1048
        %v1085 = vunpack.c.l.b16 %v1049
        %v1086 = vunpack.c.l.b16 %v1050
        %v1087 = vunpack.c.l.b16 %v1051
        %v1088 = vunpack.c.l.b16 %v1052
        %v1089 = vunpack.c.l.b16 %v1053
        %v1090 = vunpack.c.l.b16 %v1054
        %v1091 = vunpack.c.l.b16 %v1055
        %v1092 = vunpack.c.l.b16 %v1056
        %v1093 = vunpack.c.l.b16 %v1057
        %v1094 = vunpack.c.l.b16 %v1058
        %v1095 = vunpack.c.l.b16 %v1059
        %v1096 = vunpack.c.l.b16 %v1060
        %v1097 = vunpack.c.l.b16 %v1061
        %v1098 = vpack.c.b16 %v1083, %v1082
        %v1099 = vpack.c.b16 %v1085, %v1084
        %v1100 = vpack.c.b16 %v1087, %v1086
        %v1101 = vpack.c.b16 %v1089, %v1088
        %v1102 = vpack.c.b16 %v1091, %v1090
        %v1103 = vpack.c.b16 %v1093, %v1092
        %v1104 = vpack.c.b16 %v1095, %v1094
        %v1105 = vpack.c.b16 %v1097, %v1096
        %1114 = vmatpush.bf16.msra.mxu0 %v1105
        %1115 = vmatpush.bf16.msra.mxu0 %v1104
        %1116 = vmatpush.bf16.msra.mxu0 %v1103
        %1117 = vmatpush.bf16.msra.mxu0 %v1102
        %1118 = vmatpush.bf16.msra.mxu0 %v1101
        %1119 = vmatpush.bf16.msra.mxu0 %v1100
        %1120 = vmatpush.bf16.msra.mxu0 %v1099
        %1121 = vmatpush.bf16.msra.mxu0 %v1098
        %1122 = vmatmul.bf16.gmra.mxu0 %v1045
        %v1123 = vpop.f32.mrf.mxu0
        %v1124 = vadd.f32 %v1064, %v1123
        %v1125 = vpop.f32.mrf.mxu0
        %v1126 = vadd.f32 %v1064, %v1125
        %1127 = vdwg.mxu0
        %v1128 = vpack.c.bf16 %v1043, %v1041
        %v1129 = vpack.c.bf16 %v1126, %v1124
        %v1131 = vsel %vm775, %v1128, 0
        %v1134 = vsel %vm775, %v1129, 0
        %1136 = vmatpush.bf16.xpose.msra.mxu0 0
        %1137 = vmatpush.bf16.xpose.msra.mxu0 0
        %1138 = vmatpush.bf16.xpose.msra.mxu0 0
        %1139 = vmatpush.bf16.xpose.msra.mxu0 0
        %1140 = vmatpush.bf16.xpose.msra.mxu0 0
        %1141 = vmatpush.bf16.xpose.msra.mxu0 0
        %1142 = vmatpush.bf16.xpose.msra.mxu0 0
        %1143 = vmatpush.bf16.xpose.msra.mxu0 %v1134
        %1144 = vmatmul.bf16.gmra.mxu0 %v1131
        %v1145 = vpop.f32.mrf.mxu0
        %v1146 = vadd.f32 0.0, %v1145
        %v1147 = vpop.f32.mrf.mxu0
        %v1148 = vadd.f32 0.0, %v1147
        %1149 = vdwg.mxu0
        %v1150 = vmul.f32 %v1146, 0.17677669
        %v1151 = vmul.f32 %v1148, 0.17677669
        %v1152 = vsel %vm798, %v1150, -inf
        %1153 = vmax.xlane.f32.xlu0 %v1152
        %v1154 = vpop.xlane.xlu0 %1153
        %v1155 = vsel %vm798, %v1151, -inf
        %1156 = vmax.xlane.f32.xlu0 %v1155
        %v1157 = vpop.xlane.xlu0 %1156
        %v1158 = vsub.f32 %v1150, %v1154
        %v1159 = vsub.f32 %v1151, %v1157
        %v1160 = vmul.f32 %v1158, 1.442695
        %v1161 = vpow.pop %v1160
        %v1162 = vmul.f32 %v1159, 1.442695
        %v1163 = vpow.pop %v1162
        %v1164 = vsel %vm798, %v1161, 0.0
        %1165 = vadd.xlane.f32.xlu0 %v1164
        %v1166 = vpop.xlane.xlu0 %1165
        %v1167 = vsel %vm798, %v1163, 0.0
        %1168 = vadd.xlane.f32.xlu0 %v1167
        %v1169 = vpop.xlane.xlu0 %1168
        %v1170 = vrcp.pop %v1166
        %v1171 = vrcp.pop %v1169
        %v1172 = vmul.f32 %v1161, %v1170
        %v1173 = vmul.f32 %v1163, %v1171
        %v1174 = vpack.c.bf16 %v1173, %v1172
        %1176 = vrot.lane.b32.xlu0 %v1129, 96
        %v1177 = vpop.permute.xlu0 %1176
        %v1180 = vsel %vm798, %v1174, 0
        %1182 = vmatpush.bf16.msra.mxu0 0
        %1183 = vmatpush.bf16.msra.mxu0 0
        %1184 = vmatpush.bf16.msra.mxu0 0
        %1185 = vmatpush.bf16.msra.mxu0 0
        %1186 = vmatpush.bf16.msra.mxu0 0
        %1187 = vmatpush.bf16.msra.mxu0 0
        %1188 = vmatpush.bf16.msra.mxu0 0
        %1189 = vmatpush.bf16.msra.mxu0 %v1177
        %1190 = vmatmul.bf16.gmra.mxu0 %v1180
        %v1191 = vpop.f32.mrf.mxu0
        %v1192 = vadd.f32 0.0, %v1191
        %v1193 = vpop.f32.mrf.mxu0
        %v1194 = vadd.f32 0.0, %v1193
        %1195 = vdwg.mxu0
        %v1196 = vpack.c.bf16 %v1194, %v1192
        %v1197 = vld [vmem:[#allocation7] sm:$0xf]
        %v1198 = vld [vmem:[#allocation7 + $0x4] sm:$0xf]
        %v1199 = vld [vmem:[#allocation7 + $0x8] sm:$0xf]
        %v1200 = vld [vmem:[#allocation7 + $0xc] sm:$0xf]
        %v1201 = vld [vmem:[%s12] sm:$0x1]
        %v1203 = vperm.slane %v1201, 0
        %v1209 = vunpack.c.l.b16 %v1197
        %v1210 = vunpack.c.l.b16 %v1198
        %v1211 = vunpack.c.l.b16 %v1199
        %v1212 = vunpack.c.l.b16 %v1200
        %v1213 = vpack.c.b16 %v1210, %v1209
        %v1214 = vpack.c.b16 %v1212, %v1211
        %v1218 = vsel %vm775, %v1196, 0
        %1220 = vmatpush.bf16.msra.mxu0 0
        %1221 = vmatpush.bf16.msra.mxu0 0
        %1222 = vmatpush.bf16.msra.mxu0 0
        %1223 = vmatpush.bf16.msra.mxu0 0
        %1224 = vmatpush.bf16.msra.mxu0 0
        %1225 = vmatpush.bf16.msra.mxu0 0
        %1226 = vmatpush.bf16.msra.mxu0 %v1214
        %1227 = vmatpush.bf16.msra.mxu0 %v1213
        %1228 = vmatmul.bf16.gmra.mxu0 %v1218
        %v1229 = vpop.f32.mrf.mxu0
        %v1230 = vadd.f32 %v1203, %v1229
        %v1231 = vpop.f32.mrf.mxu0
        %v1232 = vadd.f32 %v1203, %v1231
        %1233 = vdwg.mxu0
        %v1234 = vadd.f32 %v1230, %v880
        %v1235 = vadd.f32 %v1232, %v881
        %v1236 = vmul.f32 %v1234, %v1234
        %v1237 = vmul.f32 %v1235, %v1235
        %1238 = vadd.xlane.f32.xlu0 %v1236
        %v1239 = vpop.xlane.xlu0 %1238
        %1240 = vadd.xlane.f32.xlu0 %v1237
        %v1241 = vpop.xlane.xlu0 %1240
        %v1242 = vrsqrt.pop %v1239
        %v1243 = vmul.f32 %v1242, %v1239
        %v1244 = vmul.f32 %v1243, %v1242
        %v1245 = vmul.f32 0.5, %v1244
        %v1246 = vsub.f32 1.5, %v1245
        %v1247 = vmul.f32 %v1242, %v1246
        %v1248 = vmul.f32 %v1239, %v1247
        %vm1249 = vcmp.eq.f32.partialorder %v1239, inf
        %v1250 = vsel %vm1249, %v1239, %v1248
        %vm1251 = vcmp.eq.f32.partialorder %v1239, 0.0
        %v1252 = vand.u32 %v1239, 2147483648
        %v1253 = vsel %vm1251, %v1252, %v1250
        %v1254 = vrsqrt.pop %v1241
        %v1255 = vmul.f32 %v1254, %v1241
        %v1256 = vmul.f32 %v1255, %v1254
        %v1257 = vmul.f32 0.5, %v1256
        %v1258 = vsub.f32 1.5, %v1257
        %v1259 = vmul.f32 %v1254, %v1258
        %v1260 = vmul.f32 %v1241, %v1259
        %vm1261 = vcmp.eq.f32.partialorder %v1241, inf
        %v1262 = vsel %vm1261, %v1241, %v1260
        %vm1263 = vcmp.eq.f32.partialorder %v1241, 0.0
        %v1264 = vand.u32 %v1241, 2147483648
        %v1265 = vsel %vm1263, %v1264, %v1262
        %v1266 = vmul.f32 %v1253, 0.088388346
        %v1267 = vmul.f32 %v1265, 0.088388346
        %v1268 = vadd.f32 %v1266, 1e-08
        %v1269 = vadd.f32 %v1267, 1e-08
        %v1270 = vrcp.pop %v1268
        %v1271 = vrcp.pop %v1269
        %v1272 = vmul.f32 %v1234, %v1270
        %v1273 = vmul.f32 %v1235, %v1271
        %v1274 = vmul.f32 %v1272, %v684
        %v1275 = vmul.f32 %v1273, %v684
        %v1276 = vpack.c.bf16 %v1275, %v1274
        %v1277 = vld [vmem:[%s13] sm:$0xff]
        %v1278 = vld [vmem:[%s13 + $0x8] sm:$0xff]
        %v1279 = vld [vmem:[%s13 + $0x10] sm:$0xff]
        %v1280 = vld [vmem:[%s13 + $0x18] sm:$0xff]
        %v1281 = vld [vmem:[%s13 + $0x20] sm:$0xff]
        %v1282 = vld [vmem:[%s13 + $0x28] sm:$0xff]
        %v1283 = vld [vmem:[%s13 + $0x30] sm:$0xff]
        %v1284 = vld [vmem:[%s13 + $0x38] sm:$0xff]
        %v1285 = vld [vmem:[%s13 + $0x40] sm:$0xff]
        %v1286 = vld [vmem:[%s13 + $0x48] sm:$0xff]
        %v1287 = vld [vmem:[%s13 + $0x50] sm:$0xff]
        %v1288 = vld [vmem:[%s13 + $0x58] sm:$0xff]
        %v1289 = vld [vmem:[%s13 + $0x60] sm:$0xff]
        %v1290 = vld [vmem:[%s13 + $0x68] sm:$0xff]
        %v1291 = vld [vmem:[%s13 + $0x70] sm:$0xff]
        %v1292 = vld [vmem:[%s13 + $0x78] sm:$0xff]
        %v1293 = vld [vmem:[%s13 + $0x80] sm:$0xff]
        %v1294 = vld [vmem:[%s13 + $0x88] sm:$0xff]
        %v1295 = vld [vmem:[%s13 + $0x90] sm:$0xff]
        %v1296 = vld [vmem:[%s13 + $0x98] sm:$0xff]
        %v1297 = vld [vmem:[%s13 + $0xa0] sm:$0xff]
        %v1298 = vld [vmem:[%s13 + $0xa8] sm:$0xff]
        %v1299 = vld [vmem:[%s13 + $0xb0] sm:$0xff]
        %v1300 = vld [vmem:[%s13 + $0xb8] sm:$0xff]
        %v1301 = vld [vmem:[%s13 + $0xc0] sm:$0xff]
        %v1302 = vld [vmem:[%s13 + $0xc8] sm:$0xff]
        %v1303 = vld [vmem:[%s13 + $0xd0] sm:$0xff]
        %v1304 = vld [vmem:[%s13 + $0xd8] sm:$0xff]
        %v1305 = vld [vmem:[%s13 + $0xe0] sm:$0xff]
        %v1306 = vld [vmem:[%s13 + $0xe8] sm:$0xff]
        %v1307 = vld [vmem:[%s13 + $0xf0] sm:$0xff]
        %v1308 = vld [vmem:[%s13 + $0xf8] sm:$0xff]
        %v1309 = vld [vmem:[%s14] sm:$0xf]
        %v1311 = vperm.slane %v1309, 0
        %v1312 = vperm.slane %v1309, 1
        %v1313 = vperm.slane %v1309, 2
        %v1314 = vperm.slane %v1309, 3
        %v1351 = vunpack.c.l.b16 %v1277
        %v1352 = vunpack.c.h.b16 %v1277
        %v1353 = vunpack.c.l.b16 %v1278
        %v1354 = vunpack.c.h.b16 %v1278
        %v1355 = vunpack.c.l.b16 %v1279
        %v1356 = vunpack.c.h.b16 %v1279
        %v1357 = vunpack.c.l.b16 %v1280
        %v1358 = vunpack.c.h.b16 %v1280
        %v1359 = vunpack.c.l.b16 %v1281
        %v1360 = vunpack.c.h.b16 %v1281
        %v1361 = vunpack.c.l.b16 %v1282
        %v1362 = vunpack.c.h.b16 %v1282
        %v1363 = vunpack.c.l.b16 %v1283
        %v1364 = vunpack.c.h.b16 %v1283
        %v1365 = vunpack.c.l.b16 %v1284
        %v1366 = vunpack.c.h.b16 %v1284
        %v1367 = vunpack.c.l.b16 %v1285
        %v1368 = vunpack.c.h.b16 %v1285
        %v1369 = vunpack.c.l.b16 %v1286
        %v1370 = vunpack.c.h.b16 %v1286
        %v1371 = vunpack.c.l.b16 %v1287
        %v1372 = vunpack.c.h.b16 %v1287
        %v1373 = vunpack.c.l.b16 %v1288
        %v1374 = vunpack.c.h.b16 %v1288
        %v1375 = vunpack.c.l.b16 %v1289
        %v1376 = vunpack.c.h.b16 %v1289
        %v1377 = vunpack.c.l.b16 %v1290
        %v1378 = vunpack.c.h.b16 %v1290
        %v1379 = vunpack.c.l.b16 %v1291
        %v1380 = vunpack.c.h.b16 %v1291
        %v1381 = vunpack.c.l.b16 %v1292
        %v1382 = vunpack.c.h.b16 %v1292
        %v1383 = vunpack.c.l.b16 %v1293
        %v1384 = vunpack.c.h.b16 %v1293
        %v1385 = vunpack.c.l.b16 %v1294
        %v1386 = vunpack.c.h.b16 %v1294
        %v1387 = vunpack.c.l.b16 %v1295
        %v1388 = vunpack.c.h.b16 %v1295
        %v1389 = vunpack.c.l.b16 %v1296
        %v1390 = vunpack.c.h.b16 %v1296
        %v1391 = vunpack.c.l.b16 %v1297
        %v1392 = vunpack.c.h.b16 %v1297
        %v1393 = vunpack.c.l.b16 %v1298
        %v1394 = vunpack.c.h.b16 %v1298
        %v1395 = vunpack.c.l.b16 %v1299
        %v1396 = vunpack.c.h.b16 %v1299
        %v1397 = vunpack.c.l.b16 %v1300
        %v1398 = vunpack.c.h.b16 %v1300
        %v1399 = vunpack.c.l.b16 %v1301
        %v1400 = vunpack.c.h.b16 %v1301
        %v1401 = vunpack.c.l.b16 %v1302
        %v1402 = vunpack.c.h.b16 %v1302
        %v1403 = vunpack.c.l.b16 %v1303
        %v1404 = vunpack.c.h.b16 %v1303
        %v1405 = vunpack.c.l.b16 %v1304
        %v1406 = vunpack.c.h.b16 %v1304
        %v1407 = vunpack.c.l.b16 %v1305
        %v1408 = vunpack.c.h.b16 %v1305
        %v1409 = vunpack.c.l.b16 %v1306
        %v1410 = vunpack.c.h.b16 %v1306
        %v1411 = vunpack.c.l.b16 %v1307
        %v1412 = vunpack.c.h.b16 %v1307
        %v1413 = vunpack.c.l.b16 %v1308
        %v1414 = vunpack.c.h.b16 %v1308
        %v1415 = vpack.c.b16 %v1355, %v1351
        %v1416 = vpack.c.b16 %v1356, %v1352
        %v1417 = vpack.c.b16 %v1357, %v1353
        %v1418 = vpack.c.b16 %v1358, %v1354
        %v1419 = vpack.c.b16 %v1363, %v1359
        %v1420 = vpack.c.b16 %v1364, %v1360
        %v1421 = vpack.c.b16 %v1365, %v1361
        %v1422 = vpack.c.b16 %v1366, %v1362
        %v1423 = vpack.c.b16 %v1371, %v1367
        %v1424 = vpack.c.b16 %v1372, %v1368
        %v1425 = vpack.c.b16 %v1373, %v1369
        %v1426 = vpack.c.b16 %v1374, %v1370
        %v1427 = vpack.c.b16 %v1379, %v1375
        %v1428 = vpack.c.b16 %v1380, %v1376
        %v1429 = vpack.c.b16 %v1381, %v1377
        %v1430 = vpack.c.b16 %v1382, %v1378
        %v1431 = vpack.c.b16 %v1387, %v1383
        %v1432 = vpack.c.b16 %v1388, %v1384
        %v1433 = vpack.c.b16 %v1389, %v1385
        %v1434 = vpack.c.b16 %v1390, %v1386
        %v1435 = vpack.c.b16 %v1395, %v1391
        %v1436 = vpack.c.b16 %v1396, %v1392
        %v1437 = vpack.c.b16 %v1397, %v1393
        %v1438 = vpack.c.b16 %v1398, %v1394
        %v1439 = vpack.c.b16 %v1403, %v1399
        %v1440 = vpack.c.b16 %v1404, %v1400
        %v1441 = vpack.c.b16 %v1405, %v1401
        %v1442 = vpack.c.b16 %v1406, %v1402
        %v1443 = vpack.c.b16 %v1411, %v1407
        %v1444 = vpack.c.b16 %v1412, %v1408
        %v1445 = vpack.c.b16 %v1413, %v1409
        %v1446 = vpack.c.b16 %v1414, %v1410
        %1479 = vmatpush.bf16.msra.mxu0 %v1443
        %1480 = vmatpush.bf16.msra.mxu0 %v1439
        %1481 = vmatpush.bf16.msra.mxu0 %v1435
        %1482 = vmatpush.bf16.msra.mxu0 %v1431
        %1483 = vmatpush.bf16.msra.mxu0 %v1427
        %1484 = vmatpush.bf16.msra.mxu0 %v1423
        %1485 = vmatpush.bf16.msra.mxu0 %v1419
        %1486 = vmatpush.bf16.msra.mxu0 %v1415
        %1487 = vmatmul.bf16.gmra.mxu0 %v1276
        %v1488 = vpop.f32.mrf.mxu0
        %v1489 = vadd.f32 %v1311, %v1488
        %v1490 = vpop.f32.mrf.mxu0
        %v1491 = vadd.f32 %v1311, %v1490
        %1492 = vdwg.mxu0
        %1493 = vmatpush.bf16.msra.mxu0 %v1444
        %1494 = vmatpush.bf16.msra.mxu0 %v1440
        %1495 = vmatpush.bf16.msra.mxu0 %v1436
        %1496 = vmatpush.bf16.msra.mxu0 %v1432
        %1497 = vmatpush.bf16.msra.mxu0 %v1428
        %1498 = vmatpush.bf16.msra.mxu0 %v1424
        %1499 = vmatpush.bf16.msra.mxu0 %v1420
        %1500 = vmatpush.bf16.msra.mxu0 %v1416
        %1501 = vmatmul.bf16.gmra.mxu0 %v1276
        %v1502 = vpop.f32.mrf.mxu0
        %v1503 = vadd.f32 %v1312, %v1502
        %v1504 = vpop.f32.mrf.mxu0
        %v1505 = vadd.f32 %v1312, %v1504
        %1506 = vdwg.mxu0
        %1507 = vmatpush.bf16.msra.mxu0 %v1445
        %1508 = vmatpush.bf16.msra.mxu0 %v1441
        %1509 = vmatpush.bf16.msra.mxu0 %v1437
        %1510 = vmatpush.bf16.msra.mxu0 %v1433
        %1511 = vmatpush.bf16.msra.mxu0 %v1429
        %1512 = vmatpush.bf16.msra.mxu0 %v1425
        %1513 = vmatpush.bf16.msra.mxu0 %v1421
        %1514 = vmatpush.bf16.msra.mxu0 %v1417
        %1515 = vmatmul.bf16.gmra.mxu0 %v1276
        %v1516 = vpop.f32.mrf.mxu0
        %v1517 = vadd.f32 %v1313, %v1516
        %v1518 = vpop.f32.mrf.mxu0
        %v1519 = vadd.f32 %v1313, %v1518
        %1520 = vdwg.mxu0
        %1521 = vmatpush.bf16.msra.mxu0 %v1446
        %1522 = vmatpush.bf16.msra.mxu0 %v1442
        %1523 = vmatpush.bf16.msra.mxu0 %v1438
        %1524 = vmatpush.bf16.msra.mxu0 %v1434
        %1525 = vmatpush.bf16.msra.mxu0 %v1430
        %1526 = vmatpush.bf16.msra.mxu0 %v1426
        %1527 = vmatpush.bf16.msra.mxu0 %v1422
        %1528 = vmatpush.bf16.msra.mxu0 %v1418
        %1529 = vmatmul.bf16.gmra.mxu0 %v1276
        %v1530 = vpop.f32.mrf.mxu0
        %v1531 = vadd.f32 %v1314, %v1530
        %v1532 = vpop.f32.mrf.mxu0
        %v1533 = vadd.f32 %v1314, %v1532
        %1534 = vdwg.mxu0
        %v1535 = vmul.f32 %v1489, 0.5
        %v1536 = vmul.f32 %v1503, 0.5
        %v1537 = vmul.f32 %v1517, 0.5
        %v1538 = vmul.f32 %v1531, 0.5
        %v1539 = vmul.f32 %v1491, 0.5
        %v1540 = vmul.f32 %v1505, 0.5
        %v1541 = vmul.f32 %v1519, 0.5
        %v1542 = vmul.f32 %v1533, 0.5
        %v1543 = vmul.f32 %v1489, 0.70710677
        %v1544 = vmul.f32 %v1503, 0.70710677
        %v1545 = vmul.f32 %v1517, 0.70710677
        %v1546 = vmul.f32 %v1531, 0.70710677
        %v1547 = vmul.f32 %v1491, 0.70710677
        %v1548 = vmul.f32 %v1505, 0.70710677
        %v1549 = vmul.f32 %v1519, 0.70710677
        %v1550 = vmul.f32 %v1533, 0.70710677
        %v1551 = vmul.f32 %v1543, %v1543
        %v1552 = vmin.f32 16.0, %v1551
        %v1553 = vmul.f32 %v1552, 2.1237322e-06
        %v1554 = vadd.f32 %v1553, 0.00028619796
        %v1555 = vmul.f32 %v1552, %v1554
        %v1556 = vadd.f32 %v1555, 0.0036580483
        %v1557 = vmul.f32 %v1552, %v1556
        %v1558 = vadd.f32 %v1557, 0.05243302
        %v1559 = vmul.f32 %v1552, %v1558
        %v1560 = vadd.f32 %v1559, 0.18741608
        %v1561 = vmul.f32 %v1552, %v1560
        %v1562 = vadd.f32 %v1561, 1.1283791
        %v1563 = vmul.f32 %v1543, %v1562
        %v1564 = vmul.f32 %v1552, 3.8918573e-05
        %v1565 = vadd.f32 %v1564, 0.001143296
        %v1566 = vmul.f32 %v1552, %v1565
        %v1567 = vadd.f32 %v1566, 0.014752088
        %v1568 = vmul.f32 %v1552, %v1567
        %v1569 = vadd.f32 %v1568, 0.112945676
        %v1570 = vmul.f32 %v1552, %v1569
        %v1571 = vadd.f32 %v1570, 0.4994258
        %v1572 = vmul.f32 %v1552, %v1571
        %v1573 = vadd.f32 %v1572, 1.0
        %v1574 = vrcp.pop %v1573
        %v1575 = vmul.f32 %v1573, %v1574
        %v1576 = vsub.f32 1.0, %v1575
        %v1577 = vmul.f32 %v1574, %v1576
        %v1578 = vadd.f32 %v1574, %v1577
        %vm1579 = vweird.f32 %v1573
        %vm1580 = vweird.f32 %v1574
        %vm1581 = vmor %vm1579, %vm1580
        %v1582 = vsel %vm1581, %v1574, %v1578
        %v1583 = vand.u32 2147483647, %v1573
        %vm1584 = vcmp.eq.f32.partialorder %v1583, 8.507059e+37
        %v1585 = vand.u32 %v1573, 2147483648
        %v1586 = vor.u32 1.1754944e-38, %v1585
        %v1587 = vsel %vm1584, %v1586, %v1582
        %v1588 = vmul.f32 %v1563, %v1587
        %v1589 = vmin.f32 %v1588, 1.0
        %v1590 = vmax.f32 %v1589, -1.0
        %v1591 = vmul.f32 %v1544, %v1544
        %v1592 = vmin.f32 16.0, %v1591
        %v1593 = vmul.f32 %v1592, 2.1237322e-06
        %v1594 = vadd.f32 %v1593, 0.00028619796
        %v1595 = vmul.f32 %v1592, %v1594
        %v1596 = vadd.f32 %v1595, 0.0036580483
        %v1597 = vmul.f32 %v1592, %v1596
        %v1598 = vadd.f32 %v1597, 0.05243302
        %v1599 = vmul.f32 %v1592, %v1598
        %v1600 = vadd.f32 %v1599, 0.18741608
        %v1601 = vmul.f32 %v1592, %v1600
        %v1602 = vadd.f32 %v1601, 1.1283791
        %v1603 = vmul.f32 %v1544, %v1602
        %v1604 = vmul.f32 %v1592, 3.8918573e-05
        %v1605 = vadd.f32 %v1604, 0.001143296
        %v1606 = vmul.f32 %v1592, %v1605
        %v1607 = vadd.f32 %v1606, 0.014752088
        %v1608 = vmul.f32 %v1592, %v1607
        %v1609 = vadd.f32 %v1608, 0.112945676
        %v1610 = vmul.f32 %v1592, %v1609
        %v1611 = vadd.f32 %v1610, 0.4994258
        %v1612 = vmul.f32 %v1592, %v1611
        %v1613 = vadd.f32 %v1612, 1.0
        %v1614 = vrcp.pop %v1613
        %v1615 = vmul.f32 %v1613, %v1614
        %v1616 = vsub.f32 1.0, %v1615
        %v1617 = vmul.f32 %v1614, %v1616
        %v1618 = vadd.f32 %v1614, %v1617
        %vm1619 = vweird.f32 %v1613
        %vm1620 = vweird.f32 %v1614
        %vm1621 = vmor %vm1619, %vm1620
        %v1622 = vsel %vm1621, %v1614, %v1618
        %v1623 = vand.u32 2147483647, %v1613
        %vm1624 = vcmp.eq.f32.partialorder %v1623, 8.507059e+37
        %v1625 = vand.u32 %v1613, 2147483648
        %v1626 = vor.u32 1.1754944e-38, %v1625
        %v1627 = vsel %vm1624, %v1626, %v1622
        %v1628 = vmul.f32 %v1603, %v1627
        %v1629 = vmin.f32 %v1628, 1.0
        %v1630 = vmax.f32 %v1629, -1.0
        %v1631 = vmul.f32 %v1545, %v1545
        %v1632 = vmin.f32 16.0, %v1631
        %v1633 = vmul.f32 %v1632, 2.1237322e-06
        %v1634 = vadd.f32 %v1633, 0.00028619796
        %v1635 = vmul.f32 %v1632, %v1634
        %v1636 = vadd.f32 %v1635, 0.0036580483
        %v1637 = vmul.f32 %v1632, %v1636
        %v1638 = vadd.f32 %v1637, 0.05243302
        %v1639 = vmul.f32 %v1632, %v1638
        %v1640 = vadd.f32 %v1639, 0.18741608
        %v1641 = vmul.f32 %v1632, %v1640
        %v1642 = vadd.f32 %v1641, 1.1283791
        %v1643 = vmul.f32 %v1545, %v1642
        %v1644 = vmul.f32 %v1632, 3.8918573e-05
        %v1645 = vadd.f32 %v1644, 0.001143296
        %v1646 = vmul.f32 %v1632, %v1645
        %v1647 = vadd.f32 %v1646, 0.014752088
        %v1648 = vmul.f32 %v1632, %v1647
        %v1649 = vadd.f32 %v1648, 0.112945676
        %v1650 = vmul.f32 %v1632, %v1649
        %v1651 = vadd.f32 %v1650, 0.4994258
        %v1652 = vmul.f32 %v1632, %v1651
        %v1653 = vadd.f32 %v1652, 1.0
        %v1654 = vrcp.pop %v1653
        %v1655 = vmul.f32 %v1653, %v1654
        %v1656 = vsub.f32 1.0, %v1655
        %v1657 = vmul.f32 %v1654, %v1656
        %v1658 = vadd.f32 %v1654, %v1657
        %vm1659 = vweird.f32 %v1653
        %vm1660 = vweird.f32 %v1654
        %vm1661 = vmor %vm1659, %vm1660
        %v1662 = vsel %vm1661, %v1654, %v1658
        %v1663 = vand.u32 2147483647, %v1653
        %vm1664 = vcmp.eq.f32.partialorder %v1663, 8.507059e+37
        %v1665 = vand.u32 %v1653, 2147483648
        %v1666 = vor.u32 1.1754944e-38, %v1665
        %v1667 = vsel %vm1664, %v1666, %v1662
        %v1668 = vmul.f32 %v1643, %v1667
        %v1669 = vmin.f32 %v1668, 1.0
        %v1670 = vmax.f32 %v1669, -1.0
        %v1671 = vmul.f32 %v1546, %v1546
        %v1672 = vmin.f32 16.0, %v1671
        %v1673 = vmul.f32 %v1672, 2.1237322e-06
        %v1674 = vadd.f32 %v1673, 0.00028619796
        %v1675 = vmul.f32 %v1672, %v1674
        %v1676 = vadd.f32 %v1675, 0.0036580483
        %v1677 = vmul.f32 %v1672, %v1676
        %v1678 = vadd.f32 %v1677, 0.05243302
        %v1679 = vmul.f32 %v1672, %v1678
        %v1680 = vadd.f32 %v1679, 0.18741608
        %v1681 = vmul.f32 %v1672, %v1680
        %v1682 = vadd.f32 %v1681, 1.1283791
        %v1683 = vmul.f32 %v1546, %v1682
        %v1684 = vmul.f32 %v1672, 3.8918573e-05
        %v1685 = vadd.f32 %v1684, 0.001143296
        %v1686 = vmul.f32 %v1672, %v1685
        %v1687 = vadd.f32 %v1686, 0.014752088
        %v1688 = vmul.f32 %v1672, %v1687
        %v1689 = vadd.f32 %v1688, 0.112945676
        %v1690 = vmul.f32 %v1672, %v1689
        %v1691 = vadd.f32 %v1690, 0.4994258
        %v1692 = vmul.f32 %v1672, %v1691
        %v1693 = vadd.f32 %v1692, 1.0
        %v1694 = vrcp.pop %v1693
        %v1695 = vmul.f32 %v1693, %v1694
        %v1696 = vsub.f32 1.0, %v1695
        %v1697 = vmul.f32 %v1694, %v1696
        %v1698 = vadd.f32 %v1694, %v1697
        %vm1699 = vweird.f32 %v1693
        %vm1700 = vweird.f32 %v1694
        %vm1701 = vmor %vm1699, %vm1700
        %v1702 = vsel %vm1701, %v1694, %v1698
        %v1703 = vand.u32 2147483647, %v1693
        %vm1704 = vcmp.eq.f32.partialorder %v1703, 8.507059e+37
        %v1705 = vand.u32 %v1693, 2147483648
        %v1706 = vor.u32 1.1754944e-38, %v1705
        %v1707 = vsel %vm1704, %v1706, %v1702
        %v1708 = vmul.f32 %v1683, %v1707
        %v1709 = vmin.f32 %v1708, 1.0
        %v1710 = vmax.f32 %v1709, -1.0
        %v1711 = vmul.f32 %v1547, %v1547
        %v1712 = vmin.f32 16.0, %v1711
        %v1713 = vmul.f32 %v1712, 2.1237322e-06
        %v1714 = vadd.f32 %v1713, 0.00028619796
        %v1715 = vmul.f32 %v1712, %v1714
        %v1716 = vadd.f32 %v1715, 0.0036580483
        %v1717 = vmul.f32 %v1712, %v1716
        %v1718 = vadd.f32 %v1717, 0.05243302
        %v1719 = vmul.f32 %v1712, %v1718
        %v1720 = vadd.f32 %v1719, 0.18741608
        %v1721 = vmul.f32 %v1712, %v1720
        %v1722 = vadd.f32 %v1721, 1.1283791
        %v1723 = vmul.f32 %v1547, %v1722
        %v1724 = vmul.f32 %v1712, 3.8918573e-05
        %v1725 = vadd.f32 %v1724, 0.001143296
        %v1726 = vmul.f32 %v1712, %v1725
        %v1727 = vadd.f32 %v1726, 0.014752088
        %v1728 = vmul.f32 %v1712, %v1727
        %v1729 = vadd.f32 %v1728, 0.112945676
        %v1730 = vmul.f32 %v1712, %v1729
        %v1731 = vadd.f32 %v1730, 0.4994258
        %v1732 = vmul.f32 %v1712, %v1731
        %v1733 = vadd.f32 %v1732, 1.0
        %v1734 = vrcp.pop %v1733
        %v1735 = vmul.f32 %v1733, %v1734
        %v1736 = vsub.f32 1.0, %v1735
        %v1737 = vmul.f32 %v1734, %v1736
        %v1738 = vadd.f32 %v1734, %v1737
        %vm1739 = vweird.f32 %v1733
        %vm1740 = vweird.f32 %v1734
        %vm1741 = vmor %vm1739, %vm1740
        %v1742 = vsel %vm1741, %v1734, %v1738
        %v1743 = vand.u32 2147483647, %v1733
        %vm1744 = vcmp.eq.f32.partialorder %v1743, 8.507059e+37
        %v1745 = vand.u32 %v1733, 2147483648
        %v1746 = vor.u32 1.1754944e-38, %v1745
        %v1747 = vsel %vm1744, %v1746, %v1742
        %v1748 = vmul.f32 %v1723, %v1747
        %v1749 = vmin.f32 %v1748, 1.0
        %v1750 = vmax.f32 %v1749, -1.0
        %v1751 = vmul.f32 %v1548, %v1548
        %v1752 = vmin.f32 16.0, %v1751
        %v1753 = vmul.f32 %v1752, 2.1237322e-06
        %v1754 = vadd.f32 %v1753, 0.00028619796
        %v1755 = vmul.f32 %v1752, %v1754
        %v1756 = vadd.f32 %v1755, 0.0036580483
        %v1757 = vmul.f32 %v1752, %v1756
        %v1758 = vadd.f32 %v1757, 0.05243302
        %v1759 = vmul.f32 %v1752, %v1758
        %v1760 = vadd.f32 %v1759, 0.18741608
        %v1761 = vmul.f32 %v1752, %v1760
        %v1762 = vadd.f32 %v1761, 1.1283791
        %v1763 = vmul.f32 %v1548, %v1762
        %v1764 = vmul.f32 %v1752, 3.8918573e-05
        %v1765 = vadd.f32 %v1764, 0.001143296
        %v1766 = vmul.f32 %v1752, %v1765
        %v1767 = vadd.f32 %v1766, 0.014752088
        %v1768 = vmul.f32 %v1752, %v1767
        %v1769 = vadd.f32 %v1768, 0.112945676
        %v1770 = vmul.f32 %v1752, %v1769
        %v1771 = vadd.f32 %v1770, 0.4994258
        %v1772 = vmul.f32 %v1752, %v1771
        %v1773 = vadd.f32 %v1772, 1.0
        %v1774 = vrcp.pop %v1773
        %v1775 = vmul.f32 %v1773, %v1774
        %v1776 = vsub.f32 1.0, %v1775
        %v1777 = vmul.f32 %v1774, %v1776
        %v1778 = vadd.f32 %v1774, %v1777
        %vm1779 = vweird.f32 %v1773
        %vm1780 = vweird.f32 %v1774
        %vm1781 = vmor %vm1779, %vm1780
        %v1782 = vsel %vm1781, %v1774, %v1778
        %v1783 = vand.u32 2147483647, %v1773
        %vm1784 = vcmp.eq.f32.partialorder %v1783, 8.507059e+37
        %v1785 = vand.u32 %v1773, 2147483648
        %v1786 = vor.u32 1.1754944e-38, %v1785
        %v1787 = vsel %vm1784, %v1786, %v1782
        %v1788 = vmul.f32 %v1763, %v1787
        %v1789 = vmin.f32 %v1788, 1.0
        %v1790 = vmax.f32 %v1789, -1.0
        %v1791 = vmul.f32 %v1549, %v1549
        %v1792 = vmin.f32 16.0, %v1791
        %v1793 = vmul.f32 %v1792, 2.1237322e-06
        %v1794 = vadd.f32 %v1793, 0.00028619796
        %v1795 = vmul.f32 %v1792, %v1794
        %v1796 = vadd.f32 %v1795, 0.0036580483
        %v1797 = vmul.f32 %v1792, %v1796
        %v1798 = vadd.f32 %v1797, 0.05243302
        %v1799 = vmul.f32 %v1792, %v1798
        %v1800 = vadd.f32 %v1799, 0.18741608
        %v1801 = vmul.f32 %v1792, %v1800
        %v1802 = vadd.f32 %v1801, 1.1283791
        %v1803 = vmul.f32 %v1549, %v1802
        %v1804 = vmul.f32 %v1792, 3.8918573e-05
        %v1805 = vadd.f32 %v1804, 0.001143296
        %v1806 = vmul.f32 %v1792, %v1805
        %v1807 = vadd.f32 %v1806, 0.014752088
        %v1808 = vmul.f32 %v1792, %v1807
        %v1809 = vadd.f32 %v1808, 0.112945676
        %v1810 = vmul.f32 %v1792, %v1809
        %v1811 = vadd.f32 %v1810, 0.4994258
        %v1812 = vmul.f32 %v1792, %v1811
        %v1813 = vadd.f32 %v1812, 1.0
        %v1814 = vrcp.pop %v1813
        %v1815 = vmul.f32 %v1813, %v1814
        %v1816 = vsub.f32 1.0, %v1815
        %v1817 = vmul.f32 %v1814, %v1816
        %v1818 = vadd.f32 %v1814, %v1817
        %vm1819 = vweird.f32 %v1813
        %vm1820 = vweird.f32 %v1814
        %vm1821 = vmor %vm1819, %vm1820
        %v1822 = vsel %vm1821, %v1814, %v1818
        %v1823 = vand.u32 2147483647, %v1813
        %vm1824 = vcmp.eq.f32.partialorder %v1823, 8.507059e+37
        %v1825 = vand.u32 %v1813, 2147483648
        %v1826 = vor.u32 1.1754944e-38, %v1825
        %v1827 = vsel %vm1824, %v1826, %v1822
        %v1828 = vmul.f32 %v1803, %v1827
        %v1829 = vmin.f32 %v1828, 1.0
        %v1830 = vmax.f32 %v1829, -1.0
        %v1831 = vmul.f32 %v1550, %v1550
        %v1832 = vmin.f32 16.0, %v1831
        %v1833 = vmul.f32 %v1832, 2.1237322e-06
        %v1834 = vadd.f32 %v1833, 0.00028619796
        %v1835 = vmul.f32 %v1832, %v1834
        %v1836 = vadd.f32 %v1835, 0.0036580483
        %v1837 = vmul.f32 %v1832, %v1836
        %v1838 = vadd.f32 %v1837, 0.05243302
        %v1839 = vmul.f32 %v1832, %v1838
        %v1840 = vadd.f32 %v1839, 0.18741608
        %v1841 = vmul.f32 %v1832, %v1840
        %v1842 = vadd.f32 %v1841, 1.1283791
        %v1843 = vmul.f32 %v1550, %v1842
        %v1844 = vmul.f32 %v1832, 3.8918573e-05
        %v1845 = vadd.f32 %v1844, 0.001143296
        %v1846 = vmul.f32 %v1832, %v1845
        %v1847 = vadd.f32 %v1846, 0.014752088
        %v1848 = vmul.f32 %v1832, %v1847
        %v1849 = vadd.f32 %v1848, 0.112945676
        %v1850 = vmul.f32 %v1832, %v1849
        %v1851 = vadd.f32 %v1850, 0.4994258
        %v1852 = vmul.f32 %v1832, %v1851
        %v1853 = vadd.f32 %v1852, 1.0
        %v1854 = vrcp.pop %v1853
        %v1855 = vmul.f32 %v1853, %v1854
        %v1856 = vsub.f32 1.0, %v1855
        %v1857 = vmul.f32 %v1854, %v1856
        %v1858 = vadd.f32 %v1854, %v1857
        %vm1859 = vweird.f32 %v1853
        %vm1860 = vweird.f32 %v1854
        %vm1861 = vmor %vm1859, %vm1860
        %v1862 = vsel %vm1861, %v1854, %v1858
        %v1863 = vand.u32 2147483647, %v1853
        %vm1864 = vcmp.eq.f32.partialorder %v1863, 8.507059e+37
        %v1865 = vand.u32 %v1853, 2147483648
        %v1866 = vor.u32 1.1754944e-38, %v1865
        %v1867 = vsel %vm1864, %v1866, %v1862
        %v1868 = vmul.f32 %v1843, %v1867
        %v1869 = vmin.f32 %v1868, 1.0
        %v1870 = vmax.f32 %v1869, -1.0
        %v1871 = vadd.f32 %v1590, 1.0
        %v1872 = vadd.f32 %v1630, 1.0
        %v1873 = vadd.f32 %v1670, 1.0
        %v1874 = vadd.f32 %v1710, 1.0
        %v1875 = vadd.f32 %v1750, 1.0
        %v1876 = vadd.f32 %v1790, 1.0
        %v1877 = vadd.f32 %v1830, 1.0
        %v1878 = vadd.f32 %v1870, 1.0
        %v1879 = vmul.f32 %v1535, %v1871
        %v1880 = vmul.f32 %v1536, %v1872
        %v1881 = vmul.f32 %v1537, %v1873
        %v1882 = vmul.f32 %v1538, %v1874
        %v1883 = vmul.f32 %v1539, %v1875
        %v1884 = vmul.f32 %v1540, %v1876
        %v1885 = vmul.f32 %v1541, %v1877
        %v1886 = vmul.f32 %v1542, %v1878
        %v1887 = vpack.c.bf16 %v1883, %v1879
        %v1888 = vpack.c.bf16 %v1884, %v1880
        %v1889 = vpack.c.bf16 %v1885, %v1881
        %v1890 = vpack.c.bf16 %v1886, %v1882
        %v1891 = vld [vmem:[#allocation8] sm:$0xf]
        %v1892 = vld [vmem:[#allocation8 + $0x4] sm:$0xf]
        %v1893 = vld [vmem:[#allocation8 + $0x8] sm:$0xf]
        %v1894 = vld [vmem:[#allocation8 + $0xc] sm:$0xf]
        %v1895 = vld [vmem:[#allocation8 + $0x10] sm:$0xf]
        %v1896 = vld [vmem:[#allocation8 + $0x14] sm:$0xf]
        %v1897 = vld [vmem:[#allocation8 + $0x18] sm:$0xf]
        %v1898 = vld [vmem:[#allocation8 + $0x1c] sm:$0xf]
        %v1899 = vld [vmem:[#allocation8 + $0x20] sm:$0xf]
        %v1900 = vld [vmem:[#allocation8 + $0x24] sm:$0xf]
        %v1901 = vld [vmem:[#allocation8 + $0x28] sm:$0xf]
        %v1902 = vld [vmem:[#allocation8 + $0x2c] sm:$0xf]
        %v1903 = vld [vmem:[#allocation8 + $0x30] sm:$0xf]
        %v1904 = vld [vmem:[#allocation8 + $0x34] sm:$0xf]
        %v1905 = vld [vmem:[#allocation8 + $0x38] sm:$0xf]
        %v1906 = vld [vmem:[#allocation8 + $0x3c] sm:$0xf]
        %v1907 = vld [vmem:[#allocation8 + $0x40] sm:$0xf]
        %v1908 = vld [vmem:[#allocation8 + $0x44] sm:$0xf]
        %v1909 = vld [vmem:[#allocation8 + $0x48] sm:$0xf]
        %v1910 = vld [vmem:[#allocation8 + $0x4c] sm:$0xf]
        %v1911 = vld [vmem:[#allocation8 + $0x50] sm:$0xf]
        %v1912 = vld [vmem:[#allocation8 + $0x54] sm:$0xf]
        %v1913 = vld [vmem:[#allocation8 + $0x58] sm:$0xf]
        %v1914 = vld [vmem:[#allocation8 + $0x5c] sm:$0xf]
        %v1915 = vld [vmem:[#allocation8 + $0x60] sm:$0xf]
        %v1916 = vld [vmem:[#allocation8 + $0x64] sm:$0xf]
        %v1917 = vld [vmem:[#allocation8 + $0x68] sm:$0xf]
        %v1918 = vld [vmem:[#allocation8 + $0x6c] sm:$0xf]
        %v1919 = vld [vmem:[#allocation8 + $0x70] sm:$0xf]
        %v1920 = vld [vmem:[#allocation8 + $0x74] sm:$0xf]
        %v1921 = vld [vmem:[#allocation8 + $0x78] sm:$0xf]
        %v1922 = vld [vmem:[#allocation8 + $0x7c] sm:$0xf]
        %v1923 = vld [vmem:[#allocation8 + $0x80] sm:$0xf]
        %v1924 = vld [vmem:[#allocation8 + $0x84] sm:$0xf]
        %v1925 = vld [vmem:[#allocation8 + $0x88] sm:$0xf]
        %v1926 = vld [vmem:[#allocation8 + $0x8c] sm:$0xf]
        %v1927 = vld [vmem:[#allocation8 + $0x90] sm:$0xf]
        %v1928 = vld [vmem:[#allocation8 + $0x94] sm:$0xf]
        %v1929 = vld [vmem:[#allocation8 + $0x98] sm:$0xf]
        %v1930 = vld [vmem:[#allocation8 + $0x9c] sm:$0xf]
        %v1931 = vld [vmem:[#allocation8 + $0xa0] sm:$0xf]
        %v1932 = vld [vmem:[#allocation8 + $0xa4] sm:$0xf]
        %v1933 = vld [vmem:[#allocation8 + $0xa8] sm:$0xf]
        %v1934 = vld [vmem:[#allocation8 + $0xac] sm:$0xf]
        %v1935 = vld [vmem:[#allocation8 + $0xb0] sm:$0xf]
        %v1936 = vld [vmem:[#allocation8 + $0xb4] sm:$0xf]
        %v1937 = vld [vmem:[#allocation8 + $0xb8] sm:$0xf]
        %v1938 = vld [vmem:[#allocation8 + $0xbc] sm:$0xf]
        %v1939 = vld [vmem:[#allocation8 + $0xc0] sm:$0xf]
        %v1940 = vld [vmem:[#allocation8 + $0xc4] sm:$0xf]
        %v1941 = vld [vmem:[#allocation8 + $0xc8] sm:$0xf]
        %v1942 = vld [vmem:[#allocation8 + $0xcc] sm:$0xf]
        %v1943 = vld [vmem:[#allocation8 + $0xd0] sm:$0xf]
        %v1944 = vld [vmem:[#allocation8 + $0xd4] sm:$0xf]
        %v1945 = vld [vmem:[#allocation8 + $0xd8] sm:$0xf]
        %v1946 = vld [vmem:[#allocation8 + $0xdc] sm:$0xf]
        %v1947 = vld [vmem:[#allocation8 + $0xe0] sm:$0xf]
        %v1948 = vld [vmem:[#allocation8 + $0xe4] sm:$0xf]
        %v1949 = vld [vmem:[#allocation8 + $0xe8] sm:$0xf]
        %v1950 = vld [vmem:[#allocation8 + $0xec] sm:$0xf]
        %v1951 = vld [vmem:[#allocation8 + $0xf0] sm:$0xf]
        %v1952 = vld [vmem:[#allocation8 + $0xf4] sm:$0xf]
        %v1953 = vld [vmem:[#allocation8 + $0xf8] sm:$0xf]
        %v1954 = vld [vmem:[#allocation8 + $0xfc] sm:$0xf]
        %v1955 = vld [vmem:[%s16] sm:$0x1]
        %v1957 = vperm.slane %v1955, 0
        %v2023 = vunpack.c.l.b16 %v1891
        %v2024 = vunpack.c.l.b16 %v1892
        %v2025 = vunpack.c.l.b16 %v1893
        %v2026 = vunpack.c.l.b16 %v1894
        %v2027 = vunpack.c.l.b16 %v1895
        %v2028 = vunpack.c.l.b16 %v1896
        %v2029 = vunpack.c.l.b16 %v1897
        %v2030 = vunpack.c.l.b16 %v1898
        %v2031 = vunpack.c.l.b16 %v1899
        %v2032 = vunpack.c.l.b16 %v1900
        %v2033 = vunpack.c.l.b16 %v1901
        %v2034 = vunpack.c.l.b16 %v1902
        %v2035 = vunpack.c.l.b16 %v1903
        %v2036 = vunpack.c.l.b16 %v1904
        %v2037 = vunpack.c.l.b16 %v1905
        %v2038 = vunpack.c.l.b16 %v1906
        %v2039 = vunpack.c.l.b16 %v1907
        %v2040 = vunpack.c.l.b16 %v1908
        %v2041 = vunpack.c.l.b16 %v1909
        %v2042 = vunpack.c.l.b16 %v1910
        %v2043 = vunpack.c.l.b16 %v1911
        %v2044 = vunpack.c.l.b16 %v1912
        %v2045 = vunpack.c.l.b16 %v1913
        %v2046 = vunpack.c.l.b16 %v1914
        %v2047 = vunpack.c.l.b16 %v1915
        %v2048 = vunpack.c.l.b16 %v1916
        %v2049 = vunpack.c.l.b16 %v1917
        %v2050 = vunpack.c.l.b16 %v1918
        %v2051 = vunpack.c.l.b16 %v1919
        %v2052 = vunpack.c.l.b16 %v1920
        %v2053 = vunpack.c.l.b16 %v1921
        %v2054 = vunpack.c.l.b16 %v1922
        %v2055 = vunpack.c.l.b16 %v1923
        %v2056 = vunpack.c.l.b16 %v1924
        %v2057 = vunpack.c.l.b16 %v1925
        %v2058 = vunpack.c.l.b16 %v1926
        %v2059 = vunpack.c.l.b16 %v1927
        %v2060 = vunpack.c.l.b16 %v1928
        %v2061 = vunpack.c.l.b16 %v1929
        %v2062 = vunpack.c.l.b16 %v1930
        %v2063 = vunpack.c.l.b16 %v1931
        %v2064 = vunpack.c.l.b16 %v1932
        %v2065 = vunpack.c.l.b16 %v1933
        %v2066 = vunpack.c.l.b16 %v1934
        %v2067 = vunpack.c.l.b16 %v1935
        %v2068 = vunpack.c.l.b16 %v1936
        %v2069 = vunpack.c.l.b16 %v1937
        %v2070 = vunpack.c.l.b16 %v1938
        %v2071 = vunpack.c.l.b16 %v1939
        %v2072 = vunpack.c.l.b16 %v1940
        %v2073 = vunpack.c.l.b16 %v1941
        %v2074 = vunpack.c.l.b16 %v1942
        %v2075 = vunpack.c.l.b16 %v1943
        %v2076 = vunpack.c.l.b16 %v1944
        %v2077 = vunpack.c.l.b16 %v1945
        %v2078 = vunpack.c.l.b16 %v1946
        %v2079 = vunpack.c.l.b16 %v1947
        %v2080 = vunpack.c.l.b16 %v1948
        %v2081 = vunpack.c.l.b16 %v1949
        %v2082 = vunpack.c.l.b16 %v1950
        %v2083 = vunpack.c.l.b16 %v1951
        %v2084 = vunpack.c.l.b16 %v1952
        %v2085 = vunpack.c.l.b16 %v1953
        %v2086 = vunpack.c.l.b16 %v1954
        %v2087 = vpack.c.b16 %v2024, %v2023
        %v2088 = vpack.c.b16 %v2026, %v2025
        %v2089 = vpack.c.b16 %v2028, %v2027
        %v2090 = vpack.c.b16 %v2030, %v2029
        %v2091 = vpack.c.b16 %v2032, %v2031
        %v2092 = vpack.c.b16 %v2034, %v2033
        %v2093 = vpack.c.b16 %v2036, %v2035
        %v2094 = vpack.c.b16 %v2038, %v2037
        %v2095 = vpack.c.b16 %v2040, %v2039
        %v2096 = vpack.c.b16 %v2042, %v2041
        %v2097 = vpack.c.b16 %v2044, %v2043
        %v2098 = vpack.c.b16 %v2046, %v2045
        %v2099 = vpack.c.b16 %v2048, %v2047
        %v2100 = vpack.c.b16 %v2050, %v2049
        %v2101 = vpack.c.b16 %v2052, %v2051
        %v2102 = vpack.c.b16 %v2054, %v2053
        %v2103 = vpack.c.b16 %v2056, %v2055
        %v2104 = vpack.c.b16 %v2058, %v2057
        %v2105 = vpack.c.b16 %v2060, %v2059
        %v2106 = vpack.c.b16 %v2062, %v2061
        %v2107 = vpack.c.b16 %v2064, %v2063
        %v2108 = vpack.c.b16 %v2066, %v2065
        %v2109 = vpack.c.b16 %v2068, %v2067
        %v2110 = vpack.c.b16 %v2070, %v2069
        %v2111 = vpack.c.b16 %v2072, %v2071
        %v2112 = vpack.c.b16 %v2074, %v2073
        %v2113 = vpack.c.b16 %v2076, %v2075
        %v2114 = vpack.c.b16 %v2078, %v2077
        %v2115 = vpack.c.b16 %v2080, %v2079
        %v2116 = vpack.c.b16 %v2082, %v2081
        %v2117 = vpack.c.b16 %v2084, %v2083
        %v2118 = vpack.c.b16 %v2086, %v2085
        %2151 = vmatpush.bf16.msra.mxu0 %v2094
        %2152 = vmatpush.bf16.msra.mxu0 %v2093
        %2153 = vmatpush.bf16.msra.mxu0 %v2092
        %2154 = vmatpush.bf16.msra.mxu0 %v2091
        %2155 = vmatpush.bf16.msra.mxu0 %v2090
        %2156 = vmatpush.bf16.msra.mxu0 %v2089
        %2157 = vmatpush.bf16.msra.mxu0 %v2088
        %2158 = vmatpush.bf16.msra.mxu0 %v2087
        %2159 = vmatmul.bf16.gmra.mxu0 %v1887
        %v2160 = vpop.f32.mrf.mxu0
        %v2161 = vadd.f32 %v1957, %v2160
        %v2162 = vpop.f32.mrf.mxu0
        %v2163 = vadd.f32 %v1957, %v2162
        %2164 = vdwg.mxu0
        %2165 = vmatpush.bf16.msra.mxu0 %v2102
        %2166 = vmatpush.bf16.msra.mxu0 %v2101
        %2167 = vmatpush.bf16.msra.mxu0 %v2100
        %2168 = vmatpush.bf16.msra.mxu0 %v2099
        %2169 = vmatpush.bf16.msra.mxu0 %v2098
        %2170 = vmatpush.bf16.msra.mxu0 %v2097
        %2171 = vmatpush.bf16.msra.mxu0 %v2096
        %2172 = vmatpush.bf16.msra.mxu0 %v2095
        %2173 = vmatmul.bf16.gmra.mxu0 %v1888
        %v2174 = vpop.f32.mrf.mxu0
        %v2175 = vadd.f32 %v2161, %v2174
        %v2176 = vpop.f32.mrf.mxu0
        %v2177 = vadd.f32 %v2163, %v2176
        %2178 = vdwg.mxu0
        %2179 = vmatpush.bf16.msra.mxu0 %v2110
        %2180 = vmatpush.bf16.msra.mxu0 %v2109
        %2181 = vmatpush.bf16.msra.mxu0 %v2108
        %2182 = vmatpush.bf16.msra.mxu0 %v2107
        %2183 = vmatpush.bf16.msra.mxu0 %v2106
        %2184 = vmatpush.bf16.msra.mxu0 %v2105
        %2185 = vmatpush.bf16.msra.mxu0 %v2104
        %2186 = vmatpush.bf16.msra.mxu0 %v2103
        %2187 = vmatmul.bf16.gmra.mxu0 %v1889
        %v2188 = vpop.f32.mrf.mxu0
        %v2189 = vadd.f32 %v2175, %v2188
        %v2190 = vpop.f32.mrf.mxu0
        %v2191 = vadd.f32 %v2177, %v2190
        %2192 = vdwg.mxu0
        %2193 = vmatpush.bf16.msra.mxu0 %v2118
        %2194 = vmatpush.bf16.msra.mxu0 %v2117
        %2195 = vmatpush.bf16.msra.mxu0 %v2116
        %2196 = vmatpush.bf16.msra.mxu0 %v2115
        %2197 = vmatpush.bf16.msra.mxu0 %v2114
        %2198 = vmatpush.bf16.msra.mxu0 %v2113
        %2199 = vmatpush.bf16.msra.mxu0 %v2112
        %2200 = vmatpush.bf16.msra.mxu0 %v2111
        %2201 = vmatmul.bf16.gmra.mxu0 %v1890
        %v2202 = vpop.f32.mrf.mxu0
        %v2203 = vadd.f32 %v2189, %v2202
        %v2204 = vpop.f32.mrf.mxu0
        %v2205 = vadd.f32 %v2191, %v2204
        %2206 = vdwg.mxu0
        %v2207 = vadd.f32 %v2203, %v1234
        %v2208 = vadd.f32 %v2205, %v1235
        %2209 = vst [vmem:[%s633] sm:$0xff] %v2207
        %2210 = vst [vmem:[%s633 + $0x8] sm:$0xff] %v2208
        %s2211 = sand.u32 %s411, 1
        %s2212 = scalar_lea.sflag [#allocation4], %s2211
        %s2213 = sand.u32 %s411, 1
        %s2214 = smul.addr %s2213, 16
        %s2215 = scalar_lea.vmem [#allocation10], %s2214
        // Predicated region
        $region105: #{tpu_custom_call.1} parent=87 // pred_check
          %p2216 = pneg %p421
        $region106: #{tpu_custom_call.1} parent=87 // pred_check_branch
          %2218 = sbr.rel (%p2216) target = $region108
        $region107: #{tpu_custom_call.1} parent=87 // pred_region
          %2220 = vsyncadd %s2212, 0
          %s2221 = smul.addr %s36, 2
          %s2222 = smul.addr %s2221, 8
          %s2223 = scalar_lea.hbm %s17, %s2222
          %s2224 = sshll.u32 %s2215, 4
          %s2225 = int_to_ptr.vmem [resolvable:$true] %s2224
          %s2226 = sshll.u32 %s2223, 4
          %s2227 = int_to_ptr.hbm [resolvable:$true] %s2226
          %2232 = dma.vmem_to_hbm [thread:$0]  %s2225, 256, %s2227, %s2212, 128, 128, 8
        $region108: #{tpu_custom_call.1} parent=87 // pred_fallthru
          _
      $region88: #{tpu_custom_call.1} parent=5 // pred_fallthru
        _
      %p2233 = scmp.le.s32.totalorder 2, %s31
      // Predicated region
      $region109: #{tpu_custom_call.1} parent=5 // pred_check
        %p2234 = pneg %p2233
      $region110: #{tpu_custom_call.1} parent=5 // pred_check_branch
        %2236 = sbr.rel (%p2234) target = $region112
      $region111: #{tpu_custom_call.1} parent=5 // pred_region
        %s2237 = ssub.s32 %s31, 2
        // Predicated region
        $region113: #{tpu_custom_call.1} parent=111 // pred_check
          %p2238 = pneg %p427
        $region114: #{tpu_custom_call.1} parent=111 // pred_check_branch
          %2240 = sbr.rel (%p2238) target = $region116
        $region115: #{tpu_custom_call.1} parent=111 // pred_region
          %s2241 = sand.u32 %s412, 1
          %s2242 = scalar_lea.sflag [#allocation4], %s2241
          %s2243 = sand.u32 %s412, 1
          %s2244 = smul.addr %s2243, 16
          %s2245 = scalar_lea.vmem [#allocation10], %s2244
          %2247 = dma.done %s2242, 256
        $region116: #{tpu_custom_call.1} parent=111 // pred_fallthru
          _
      $region112: #{tpu_custom_call.1} parent=5 // pred_fallthru
        _
    $region6: #{tpu_custom_call.1} parent=1 // loop_footer
      %s35 = sadd.s32 1, %s31
    $region7: #{tpu_custom_call.1} parent=1 // loop_footer_branch
      %30 = sbr.rel target = $region3
    $region8: #{tpu_custom_call.1} parent=1 // loop_exit
      _
    %2248 = vsyncpa [#allocation3], 1
    %s2249 = scalar_lea.sflag [#allocation3], 1
    %2250 = vsyncpa %s2249, 1
    %2251 = vsyncpa [#allocation6], 1
    %2252 = vsyncpa [#allocation9], 1
    %2253 = vsyncpa [#allocation4], 1
    %s2254 = scalar_lea.sflag [#allocation4], 1
    %2255 = vsyncpa %s2254, 1

// kernel: tpu_custom_call.1
$region0: #{tpu_custom_call.1}
  #allocation0 [shape = 'u32[]', space=smem, size = 0x4, offset = 0x4, fixed_abs, tag = 'smem constant byte address 0x4 - core index']
  #allocation1 [shape = 'u32[72,128]{1,0:T(1,128)}', space=vmem, size = 0x9000, scoped, tag = 'internal scratch']
  %s0 = inlined_call_operand.vmem [shape: f32[2,16,128], index: 0, kind: input, shape index: {}]
  %s1 = inlined_call_operand.hbm [shape: f32[2,16,128], index: 1, kind: input, shape index: {}]
  %s2 = inlined_call_operand.vmem [shape: f32[1,128], index: 2, kind: input, shape index: {}]
  %s3 = inlined_call_operand.vmem [shape: bf16[128,96], index: 3, kind: input, shape index: {}]
  %s4 = inlined_call_operand.vmem [shape: f32[1,96], index: 4, kind: input, shape index: {}]
  %s5 = inlined_call_operand.hbm [shape: bf16[32,128], index: 5, kind: input, shape index: {}]
  %s6 = inlined_call_operand.vmem [shape: f32[1,128], index: 6, kind: input, shape index: {}]
  %s7 = inlined_call_operand.vmem [shape: bf16[128,32], index: 7, kind: input, shape index: {}]
  %s8 = inlined_call_operand.vmem [shape: f32[1,32], index: 8, kind: input, shape index: {}]
  %s9 = inlined_call_operand.vmem [shape: bf16[128,64], index: 9, kind: input, shape index: {}]
  %s10 = inlined_call_operand.vmem [shape: f32[1,64], index: 10, kind: input, shape index: {}]
  %s11 = inlined_call_operand.hbm [shape: bf16[32,128], index: 11, kind: input, shape index: {}]
  %s12 = inlined_call_operand.vmem [shape: f32[1,128], index: 12, kind: input, shape index: {}]
  %s13 = inlined_call_operand.vmem [shape: bf16[128,512], index: 13, kind: input, shape index: {}]
  %s14 = inlined_call_operand.vmem [shape: f32[1,512], index: 14, kind: input, shape index: {}]
  %s15 = inlined_call_operand.hbm [shape: bf16[512,128], index: 15, kind: input, shape index: {}]
  %s16 = inlined_call_operand.vmem [shape: f32[1,128], index: 16, kind: input, shape index: {}]
  %s17 = inlined_call_operand.hbm [shape: f32[2,16,128], index: 17, kind: output, shape index: {}]
  %s18 = sld [smem:[#allocation0]]
  $region117: #{tpu_custom_call.1} parent=0
    _
  %s20 = ssub.s32 1, %s18
  %s21 = scalar_select 0, %s20, %s18
  $region1: #{tpu_custom_call.1} parent=0
    #allocation2 [shape = 'u8[16384]{0}', space=vmem, size = 0x4000, scoped, tag = 'input window, operand 1']
    #allocation3 [shape = 's32[2]{0}', space=sflag, size = 0x8, scoped, tag = 'scoped memory for tpu_custom_call.1']
    #allocation4 [shape = 's32[2]{0}', space=sflag, size = 0x8, scoped, tag = 'scoped memory for tpu_custom_call.1']
    #allocation5 [shape = 'u8[8192]{0}', space=vmem, size = 0x2000, scoped, tag = 'input window, operand 5, single buffered']
    #allocation6 [shape = 's32[1]{0}', space=sflag, size = 0x4, scoped, tag = 'scoped memory for tpu_custom_call.1']
    #allocation7 [shape = 'u8[8192]{0}', space=vmem, size = 0x2000, scoped, tag = 'input window, operand 11, single buffered']
    #allocation8 [shape = 'u8[131072]{0}', space=vmem, size = 0x20000, scoped, tag = 'input window, operand 15, single buffered']
    #allocation9 [shape = 's32[1]{0}', space=sflag, size = 0x4, scoped, tag = 'scoped memory for tpu_custom_call.1']
    #allocation10 [shape = 'u8[16384]{0}', space=vmem, size = 0x4000, scoped, tag = 'output window, operand 0']
    %22 = vsyncpa [#allocation3], 0
    %s23 = scalar_lea.sflag [#allocation3], 1
    %24 = vsyncpa %s23, 0
    %25 = vsyncpa [#allocation6], 0
    %26 = vsyncpa [#allocation9], 0
    %27 = vsyncpa [#allocation4], 0
    %s28 = scalar_lea.sflag [#allocation4], 1
    %29 = vsyncpa %s28, 0
    loop: start=0, step=1, limit=4
    $region2: #{tpu_custom_call.1} parent=1 // loop_pre_header
      _
    $region3: #{tpu_custom_call.1} parent=1 // loop_header
      %s31 = sphi 0, %s35
      %p32 = scmp.ge.s32.totalorder %s31, 4
      %s41 = sphi 0, %s43
      %s44 = sphi 0, %s41
      %s45 = sphi 0, %s44
      %s61 = sphi 0, %s45
      %s67 = sphi 0, %s69
      %s70 = sphi 0, %s67
      %s71 = sphi 0, %s70
      %s87 = sphi 0, %s71
      %s91 = sphi 0, %s91
      %s93 = sphi 0, %s91
      %s94 = sphi 0, %s93
      %s108 = sphi 0, %s94
      %s112 = sphi 0, %s112
      %s114 = sphi 0, %s112
      %s115 = sphi 0, %s114
      %s129 = sphi 0, %s115
      %s133 = sphi 0, %s133
      %s135 = sphi 0, %s133
      %s136 = sphi 0, %s135
      %s150 = sphi 0, %s136
      %s154 = sphi 0, %s154
      %s156 = sphi 0, %s154
      %s157 = sphi 0, %s156
      %s171 = sphi 0, %s157
      %s175 = sphi 0, %s175
      %s177 = sphi 0, %s175
      %s178 = sphi 0, %s177
      %s192 = sphi 0, %s178
      %s196 = sphi 0, %s196
      %s198 = sphi 0, %s196
      %s199 = sphi 0, %s198
      %s213 = sphi 0, %s199
      %s217 = sphi 0, %s217
      %s219 = sphi 0, %s217
      %s220 = sphi 0, %s219
      %s234 = sphi 0, %s220
      %s238 = sphi 0, %s238
      %s240 = sphi 0, %s238
      %s241 = sphi 0, %s240
      %s255 = sphi 0, %s241
      %s259 = sphi 0, %s259
      %s261 = sphi 0, %s259
      %s262 = sphi 0, %s261
      %s276 = sphi 0, %s262
      %s280 = sphi 0, %s280
      %s282 = sphi 0, %s280
      %s283 = sphi 0, %s282
      %s297 = sphi 0, %s283
      %s301 = sphi 0, %s301
      %s303 = sphi 0, %s301
      %s304 = sphi 0, %s303
      %s318 = sphi 0, %s304
      %s322 = sphi 0, %s322
      %s324 = sphi 0, %s322
      %s325 = sphi 0, %s324
      %s339 = sphi 0, %s325
      %s343 = sphi 0, %s343
      %s345 = sphi 0, %s343
      %s346 = sphi 0, %s345
      %s360 = sphi 0, %s346
      %s364 = sphi 0, %s364
      %s366 = sphi 0, %s364
      %s367 = sphi 0, %s366
      %s381 = sphi 0, %s367
      %s385 = sphi 0, %s385
      %s387 = sphi 0, %s385
      %s388 = sphi 0, %s387
      %s402 = sphi 0, %s388
      %s408 = sphi 0, %s410
      %s411 = sphi 0, %s408
      %s412 = sphi 0, %s411
      %s428 = sphi 0, %s412
    $region4: #{tpu_custom_call.1} parent=1 // loop_header_branch
      %34 = sbr.rel (%p32) target = $region8
    $region5: #{tpu_custom_call.1} parent=1 // loop_body
      %s36 = ssub.s32 %s31, 1
      %s37 = ssub.s32 %s31, 2
      %s38 = sadd.s32 %s31, 1
      %s39 = ssub.s32 %s31, %s38
      %p40 = scmp.eq.s32.totalorder %s39, 0
      %s42 = sadd.s32 %s41, 1
      %s43 = scalar_select %p40, %s41, %s42
      %p46 = pneg %p40
      %p47 = scmp.eq.s32.totalorder %s31, 1
      %p48 = por %p46, %p47
      %p49 = scmp.ne.s32.totalorder %s41, %s44
      %p50 = scmp.eq.s32.totalorder %s31, 0
      %p51 = por %p49, %p50
      %p52 = scmp.ne.s32.totalorder %s41, %s44
      %p53 = scmp.eq.s32.totalorder %s36, 1
      %p54 = por %p52, %p53
      %p55 = scmp.ne.s32.totalorder %s44, %s45
      %p56 = scmp.eq.s32.totalorder %s36, 0
      %p57 = por %p55, %p56
      %p58 = scmp.ne.s32.totalorder %s44, %s45
      %p59 = scmp.eq.s32.totalorder %s37, 1
      %p60 = por %p58, %p59
      %p62 = scmp.ne.s32.totalorder %s45, %s61
      %p63 = scmp.eq.s32.totalorder %s37, 0
      %p64 = por %p62, %p63
      %s65 = ssub.s32 %s31, %s38
      %p66 = scmp.eq.s32.totalorder %s65, 0
      %s68 = sadd.s32 %s67, 1
      %s69 = scalar_select %p66, %s67, %s68
      %p72 = pneg %p66
      %p73 = scmp.eq.s32.totalorder %s31, 1
      %p74 = por %p72, %p73
      %p75 = scmp.ne.s32.totalorder %s67, %s70
      %p76 = scmp.eq.s32.totalorder %s31, 0
      %p77 = por %p75, %p76
      %p78 = scmp.ne.s32.totalorder %s67, %s70
      %p79 = scmp.eq.s32.totalorder %s36, 1
      %p80 = por %p78, %p79
      %p81 = scmp.ne.s32.totalorder %s70, %s71
      %p82 = scmp.eq.s32.totalorder %s36, 0
      %p83 = por %p81, %p82
      %p84 = scmp.ne.s32.totalorder %s70, %s71
      %p85 = scmp.eq.s32.totalorder %s37, 1
      %p86 = por %p84, %p85
      %p88 = scmp.ne.s32.totalorder %s71, %s87
      %p89 = scmp.eq.s32.totalorder %s37, 0
      %p90 = por %p88, %p89
      %s92 = sadd.s32 %s91, 1
      %p95 = scmp.eq.s32.totalorder %s31, 1
      %p96 = scmp.ne.s32.totalorder %s91, %s93
      %p97 = scmp.eq.s32.totalorder %s31, 0
      %p98 = por %p96, %p97
      %p99 = scmp.ne.s32.totalorder %s91, %s93
      %p100 = scmp.eq.s32.totalorder %s36, 1
      %p101 = por %p99, %p100
      %p102 = scmp.ne.s32.totalorder %s93, %s94
      %p103 = scmp.eq.s32.totalorder %s36, 0
      %p104 = por %p102, %p103
      %p105 = scmp.ne.s32.totalorder %s93, %s94
      %p106 = scmp.eq.s32.totalorder %s37, 1
      %p107 = por %p105, %p106
      %p109 = scmp.ne.s32.totalorder %s94, %s108
      %p110 = scmp.eq.s32.totalorder %s37, 0
      %p111 = por %p109, %p110
      %s113 = sadd.s32 %s112, 1
      %p116 = scmp.eq.s32.totalorder %s31, 1
      %p117 = scmp.ne.s32.totalorder %s112, %s114
      %p118 = scmp.eq.s32.totalorder %s31, 0
      %p119 = por %p117, %p118
      %p120 = scmp.ne.s32.totalorder %s112, %s114
      %p121 = scmp.eq.s32.totalorder %s36, 1
      %p122 = por %p120, %p121
      %p123 = scmp.ne.s32.totalorder %s114, %s115
      %p124 = scmp.eq.s32.totalorder %s36, 0
      %p125 = por %p123, %p124
      %p126 = scmp.ne.s32.totalorder %s114, %s115
      %p127 = scmp.eq.s32.totalorder %s37, 1
      %p128 = por %p126, %p127
      %p130 = scmp.ne.s32.totalorder %s115, %s129
      %p131 = scmp.eq.s32.totalorder %s37, 0
      %p132 = por %p130, %p131
      %s134 = sadd.s32 %s133, 1
      %p137 = scmp.eq.s32.totalorder %s31, 1
      %p138 = scmp.ne.s32.totalorder %s133, %s135
      %p139 = scmp.eq.s32.totalorder %s31, 0
      %p140 = por %p138, %p139
      %p141 = scmp.ne.s32.totalorder %s133, %s135
      %p142 = scmp.eq.s32.totalorder %s36, 1
      %p143 = por %p141, %p142
      %p144 = scmp.ne.s32.totalorder %s135, %s136
      %p145 = scmp.eq.s32.totalorder %s36, 0
      %p146 = por %p144, %p145
      %p147 = scmp.ne.s32.totalorder %s135, %s136
      %p148 = scmp.eq.s32.totalorder %s37, 1
      %p149 = por %p147, %p148
      %p151 = scmp.ne.s32.totalorder %s136, %s150
      %p152 = scmp.eq.s32.totalorder %s37, 0
      %p153 = por %p151, %p152
      %s155 = sadd.s32 %s154, 1
      %p158 = scmp.eq.s32.totalorder %s31, 1
      %p159 = scmp.ne.s32.totalorder %s154, %s156
      %p160 = scmp.eq.s32.totalorder %s31, 0
      %p161 = por %p159, %p160
      %p162 = scmp.ne.s32.totalorder %s154, %s156
      %p163 = scmp.eq.s32.totalorder %s36, 1
      %p164 = por %p162, %p163
      %p165 = scmp.ne.s32.totalorder %s156, %s157
      %p166 = scmp.eq.s32.totalorder %s36, 0
      %p167 = por %p165, %p166
      %p168 = scmp.ne.s32.totalorder %s156, %s157
      %p169 = scmp.eq.s32.totalorder %s37, 1
      %p170 = por %p168, %p169
      %p172 = scmp.ne.s32.totalorder %s157, %s171
      %p173 = scmp.eq.s32.totalorder %s37, 0
      %p174 = por %p172, %p173
      %s176 = sadd.s32 %s175, 1
      %p179 = scmp.eq.s32.totalorder %s31, 1
      %p180 = scmp.ne.s32.totalorder %s175, %s177
      %p181 = scmp.eq.s32.totalorder %s31, 0
      %p182 = por %p180, %p181
      %p183 = scmp.ne.s32.totalorder %s175, %s177
      %p184 = scmp.eq.s32.totalorder %s36, 1
      %p185 = por %p183, %p184
      %p186 = scmp.ne.s32.totalorder %s177, %s178
      %p187 = scmp.eq.s32.totalorder %s36, 0
      %p188 = por %p186, %p187
      %p189 = scmp.ne.s32.totalorder %s177, %s178
      %p190 = scmp.eq.s32.totalorder %s37, 1
      %p191 = por %p189, %p190
      %p193 = scmp.ne.s32.totalorder %s178, %s192
      %p194 = scmp.eq.s32.totalorder %s37, 0
      %p195 = por %p193, %p194
      %s197 = sadd.s32 %s196, 1
      %p200 = scmp.eq.s32.totalorder %s31, 1
      %p201 = scmp.ne.s32.totalorder %s196, %s198
      %p202 = scmp.eq.s32.totalorder %s31, 0
      %p203 = por %p201, %p202
      %p204 = scmp.ne.s32.totalorder %s196, %s198
      %p205 = scmp.eq.s32.totalorder %s36, 1
      %p206 = por %p204, %p205
      %p207 = scmp.ne.s32.totalorder %s198, %s199
      %p208 = scmp.eq.s32.totalorder %s36, 0
      %p209 = por %p207, %p208
      %p210 = scmp.ne.s32.totalorder %s198, %s199
      %p211 = scmp.eq.s32.totalorder %s37, 1
      %p212 = por %p210, %p211
      %p214 = scmp.ne.s32.totalorder %s199, %s213
      %p215 = scmp.eq.s32.totalorder %s37, 0
      %p216 = por %p214, %p215
      %s218 = sadd.s32 %s217, 1
      %p221 = scmp.eq.s32.totalorder %s31, 1
      %p222 = scmp.ne.s32.totalorder %s217, %s219
      %p223 = scmp.eq.s32.totalorder %s31, 0
      %p224 = por %p222, %p223
      %p225 = scmp.ne.s32.totalorder %s217, %s219
      %p226 = scmp.eq.s32.totalorder %s36, 1
      %p227 = por %p225, %p226
      %p228 = scmp.ne.s32.totalorder %s219, %s220
      %p229 = scmp.eq.s32.totalorder %s36, 0
      %p230 = por %p228, %p229
      %p231 = scmp.ne.s32.totalorder %s219, %s220
      %p232 = scmp.eq.s32.totalorder %s37, 1
      %p233 = por %p231, %p232
      %p235 = scmp.ne.s32.totalorder %s220, %s234
      %p236 = scmp.eq.s32.totalorder %s37, 0
      %p237 = por %p235, %p236
      %s239 = sadd.s32 %s238, 1
      %p242 = scmp.eq.s32.totalorder %s31, 1
      %p243 = scmp.ne.s32.totalorder %s238, %s240
      %p244 = scmp.eq.s32.totalorder %s31, 0
      %p245 = por %p243, %p244
      %p246 = scmp.ne.s32.totalorder %s238, %s240
      %p247 = scmp.eq.s32.totalorder %s36, 1
      %p248 = por %p246, %p247
      %p249 = scmp.ne.s32.totalorder %s240, %s241
      %p250 = scmp.eq.s32.totalorder %s36, 0
      %p251 = por %p249, %p250
      %p252 = scmp.ne.s32.totalorder %s240, %s241
      %p253 = scmp.eq.s32.totalorder %s37, 1
      %p254 = por %p252, %p253
      %p256 = scmp.ne.s32.totalorder %s241, %s255
      %p257 = scmp.eq.s32.totalorder %s37, 0
      %p258 = por %p256, %p257
      %s260 = sadd.s32 %s259, 1
      %p263 = scmp.eq.s32.totalorder %s31, 1
      %p264 = scmp.ne.s32.totalorder %s259, %s261
      %p265 = scmp.eq.s32.totalorder %s31, 0
      %p266 = por %p264, %p265
      %p267 = scmp.ne.s32.totalorder %s259, %s261
      %p268 = scmp.eq.s32.totalorder %s36, 1
      %p269 = por %p267, %p268
      %p270 = scmp.ne.s32.totalorder %s261, %s262
      %p271 = scmp.eq.s32.totalorder %s36, 0
      %p272 = por %p270, %p271
      %p273 = scmp.ne.s32.totalorder %s261, %s262
      %p274 = scmp.eq.s32.totalorder %s37, 1
      %p275 = por %p273, %p274
      %p277 = scmp.ne.s32.totalorder %s262, %s276
      %p278 = scmp.eq.s32.totalorder %s37, 0
      %p279 = por %p277, %p278
      %s281 = sadd.s32 %s280, 1
      %p284 = scmp.eq.s32.totalorder %s31, 1
      %p285 = scmp.ne.s32.totalorder %s280, %s282
      %p286 = scmp.eq.s32.totalorder %s31, 0
      %p287 = por %p285, %p286
      %p288 = scmp.ne.s32.totalorder %s280, %s282
      %p289 = scmp.eq.s32.totalorder %s36, 1
      %p290 = por %p288, %p289
      %p291 = scmp.ne.s32.totalorder %s282, %s283
      %p292 = scmp.eq.s32.totalorder %s36, 0
      %p293 = por %p291, %p292
      %p294 = scmp.ne.s32.totalorder %s282, %s283
      %p295 = scmp.eq.s32.totalorder %s37, 1
      %p296 = por %p294, %p295
      %p298 = scmp.ne.s32.totalorder %s283, %s297
      %p299 = scmp.eq.s32.totalorder %s37, 0
      %p300 = por %p298, %p299
      %s302 = sadd.s32 %s301, 1
      %p305 = scmp.eq.s32.totalorder %s31, 1
      %p306 = scmp.ne.s32.totalorder %s301, %s303
      %p307 = scmp.eq.s32.totalorder %s31, 0
      %p308 = por %p306, %p307
      %p309 = scmp.ne.s32.totalorder %s301, %s303
      %p310 = scmp.eq.s32.totalorder %s36, 1
      %p311 = por %p309, %p310
      %p312 = scmp.ne.s32.totalorder %s303, %s304
      %p313 = scmp.eq.s32.totalorder %s36, 0
      %p314 = por %p312, %p313
      %p315 = scmp.ne.s32.totalorder %s303, %s304
      %p316 = scmp.eq.s32.totalorder %s37, 1
      %p317 = por %p315, %p316
      %p319 = scmp.ne.s32.totalorder %s304, %s318
      %p320 = scmp.eq.s32.totalorder %s37, 0
      %p321 = por %p319, %p320
      %s323 = sadd.s32 %s322, 1
      %p326 = scmp.eq.s32.totalorder %s31, 1
      %p327 = scmp.ne.s32.totalorder %s322, %s324
      %p328 = scmp.eq.s32.totalorder %s31, 0
      %p329 = por %p327, %p328
      %p330 = scmp.ne.s32.totalorder %s322, %s324
      %p331 = scmp.eq.s32.totalorder %s36, 1
      %p332 = por %p330, %p331
      %p333 = scmp.ne.s32.totalorder %s324, %s325
      %p334 = scmp.eq.s32.totalorder %s36, 0
      %p335 = por %p333, %p334
      %p336 = scmp.ne.s32.totalorder %s324, %s325
      %p337 = scmp.eq.s32.totalorder %s37, 1
      %p338 = por %p336, %p337
      %p340 = scmp.ne.s32.totalorder %s325, %s339
      %p341 = scmp.eq.s32.totalorder %s37, 0
      %p342 = por %p340, %p341
      %s344 = sadd.s32 %s343, 1
      %p347 = scmp.eq.s32.totalorder %s31, 1
      %p348 = scmp.ne.s32.totalorder %s343, %s345
      %p349 = scmp.eq.s32.totalorder %s31, 0
      %p350 = por %p348, %p349
      %p351 = scmp.ne.s32.totalorder %s343, %s345
      %p352 = scmp.eq.s32.totalorder %s36, 1
      %p353 = por %p351, %p352
      %p354 = scmp.ne.s32.totalorder %s345, %s346
      %p355 = scmp.eq.s32.totalorder %s36, 0
      %p356 = por %p354, %p355
      %p357 = scmp.ne.s32.totalorder %s345, %s346
      %p358 = scmp.eq.s32.totalorder %s37, 1
      %p359 = por %p357, %p358
      %p361 = scmp.ne.s32.totalorder %s346, %s360
      %p362 = scmp.eq.s32.totalorder %s37, 0
      %p363 = por %p361, %p362
      %s365 = sadd.s32 %s364, 1
      %p368 = scmp.eq.s32.totalorder %s31, 1
      %p369 = scmp.ne.s32.totalorder %s364, %s366
      %p370 = scmp.eq.s32.totalorder %s31, 0
      %p371 = por %p369, %p370
      %p372 = scmp.ne.s32.totalorder %s364, %s366
      %p373 = scmp.eq.s32.totalorder %s36, 1
      %p374 = por %p372, %p373
      %p375 = scmp.ne.s32.totalorder %s366, %s367
      %p376 = scmp.eq.s32.totalorder %s36, 0
      %p377 = por %p375, %p376
      %p378 = scmp.ne.s32.totalorder %s366, %s367
      %p379 = scmp.eq.s32.totalorder %s37, 1
      %p380 = por %p378, %p379
      %p382 = scmp.ne.s32.totalorder %s367, %s381
      %p383 = scmp.eq.s32.totalorder %s37, 0
      %p384 = por %p382, %p383
      %s386 = sadd.s32 %s385, 1
      %p389 = scmp.eq.s32.totalorder %s31, 1
      %p390 = scmp.ne.s32.totalorder %s385, %s387
      %p391 = scmp.eq.s32.totalorder %s31, 0
      %p392 = por %p390, %p391
      %p393 = scmp.ne.s32.totalorder %s385, %s387
      %p394 = scmp.eq.s32.totalorder %s36, 1
      %p395 = por %p393, %p394
      %p396 = scmp.ne.s32.totalorder %s387, %s388
      %p397 = scmp.eq.s32.totalorder %s36, 0
      %p398 = por %p396, %p397
      %p399 = scmp.ne.s32.totalorder %s387, %s388
      %p400 = scmp.eq.s32.totalorder %s37, 1
      %p401 = por %p399, %p400
      %p403 = scmp.ne.s32.totalorder %s388, %s402
      %p404 = scmp.eq.s32.totalorder %s37, 0
      %p405 = por %p403, %p404
      %s406 = ssub.s32 %s31, %s38
      %p407 = scmp.eq.s32.totalorder %s406, 0
      %s409 = sadd.s32 %s408, 1
      %s410 = scalar_select %p407, %s408, %s409
      %p413 = pneg %p407
      %p414 = scmp.eq.s32.totalorder %s31, 1
      %p415 = por %p413, %p414
      %p416 = scmp.ne.s32.totalorder %s408, %s411
      %p417 = scmp.eq.s32.totalorder %s31, 0
      %p418 = por %p416, %p417
      %p419 = scmp.ne.s32.totalorder %s408, %s411
      %p420 = scmp.eq.s32.totalorder %s36, 1
      %p421 = por %p419, %p420
      %p422 = scmp.ne.s32.totalorder %s411, %s412
      %p423 = scmp.eq.s32.totalorder %s36, 0
      %p424 = por %p422, %p423
      %p425 = scmp.ne.s32.totalorder %s411, %s412
      %p426 = scmp.eq.s32.totalorder %s37, 1
      %p427 = por %p425, %p426
      %p429 = scmp.ne.s32.totalorder %s412, %s428
      %p430 = scmp.eq.s32.totalorder %s37, 0
      %p431 = por %p429, %p430
      %p432 = scmp.le.s32.totalorder 1, %s31
      %p433 = scmp.lt.s32.totalorder %s31, 3
      %p434 = pnand %p432, %p433
      %p435 = pneg %p434
      // Predicated region
      $region9: #{tpu_custom_call.1} parent=5 // pred_check
        _
      $region10: #{tpu_custom_call.1} parent=5 // pred_check_branch
        %437 = sbr.rel (%p434) target = $region12
      $region11: #{tpu_custom_call.1} parent=5 // pred_region
        %s438 = ssub.s32 %s31, 1
        // Predicated region
        $region13: #{tpu_custom_call.1} parent=11 // pred_check
          %p439 = pneg %p104
        $region14: #{tpu_custom_call.1} parent=11 // pred_check_branch
          %441 = sbr.rel (%p439) target = $region16
        $region15: #{tpu_custom_call.1} parent=11 // pred_region
          _
        $region16: #{tpu_custom_call.1} parent=11 // pred_fallthru
          _
        // Predicated region
        $region17: #{tpu_custom_call.1} parent=11 // pred_check
          %p442 = pneg %p125
        $region18: #{tpu_custom_call.1} parent=11 // pred_check_branch
          %444 = sbr.rel (%p442) target = $region20
        $region19: #{tpu_custom_call.1} parent=11 // pred_region
          _
        $region20: #{tpu_custom_call.1} parent=11 // pred_fallthru
          _
        // Predicated region
        $region21: #{tpu_custom_call.1} parent=11 // pred_check
          %p445 = pneg %p146
        $region22: #{tpu_custom_call.1} parent=11 // pred_check_branch
          %447 = sbr.rel (%p445) target = $region24
        $region23: #{tpu_custom_call.1} parent=11 // pred_region
          _
        $region24: #{tpu_custom_call.1} parent=11 // pred_fallthru
          _
        // Predicated region
        $region25: #{tpu_custom_call.1} parent=11 // pred_check
          %p448 = pneg %p167
        $region26: #{tpu_custom_call.1} parent=11 // pred_check_branch
          %450 = sbr.rel (%p448) target = $region28
        $region27: #{tpu_custom_call.1} parent=11 // pred_region
          %452 = vsyncadd [#allocation6], 0
          %s453 = sshll.u32 %s5, 4
          %s454 = int_to_ptr.hbm [resolvable:$true] %s453
          %s455 = sshll.u32 [#allocation5], 4
          %s456 = int_to_ptr.vmem [resolvable:$true] %s455
          %461 = dma.hbm_to_vmem [thread:$0]  %s454, 256, %s456, [#allocation6], 64, 64, 4
        $region28: #{tpu_custom_call.1} parent=11 // pred_fallthru
          _
        // Predicated region
        $region29: #{tpu_custom_call.1} parent=11 // pred_check
          %p462 = pneg %p188
        $region30: #{tpu_custom_call.1} parent=11 // pred_check_branch
          %464 = sbr.rel (%p462) target = $region32
        $region31: #{tpu_custom_call.1} parent=11 // pred_region
          _
        $region32: #{tpu_custom_call.1} parent=11 // pred_fallthru
          _
        // Predicated region
        $region33: #{tpu_custom_call.1} parent=11 // pred_check
          %p465 = pneg %p209
        $region34: #{tpu_custom_call.1} parent=11 // pred_check_branch
          %467 = sbr.rel (%p465) target = $region36
        $region35: #{tpu_custom_call.1} parent=11 // pred_region
          _
        $region36: #{tpu_custom_call.1} parent=11 // pred_fallthru
          _
        // Predicated region
        $region37: #{tpu_custom_call.1} parent=11 // pred_check
          %p468 = pneg %p230
        $region38: #{tpu_custom_call.1} parent=11 // pred_check_branch
          %470 = sbr.rel (%p468) target = $region40
        $region39: #{tpu_custom_call.1} parent=11 // pred_region
          _
        $region40: #{tpu_custom_call.1} parent=11 // pred_fallthru
          _
        // Predicated region
        $region41: #{tpu_custom_call.1} parent=11 // pred_check
          %p471 = pneg %p251
        $region42: #{tpu_custom_call.1} parent=11 // pred_check_branch
          %473 = sbr.rel (%p471) target = $region44
        $region43: #{tpu_custom_call.1} parent=11 // pred_region
          _
        $region44: #{tpu_custom_call.1} parent=11 // pred_fallthru
          _
        // Predicated region
        $region45: #{tpu_custom_call.1} parent=11 // pred_check
          %p474 = pneg %p272
        $region46: #{tpu_custom_call.1} parent=11 // pred_check_branch
          %476 = sbr.rel (%p474) target = $region48
        $region47: #{tpu_custom_call.1} parent=11 // pred_region
          _
        $region48: #{tpu_custom_call.1} parent=11 // pred_fallthru
          _
        // Predicated region
        $region49: #{tpu_custom_call.1} parent=11 // pred_check
          %p477 = pneg %p293
        $region50: #{tpu_custom_call.1} parent=11 // pred_check_branch
          %479 = sbr.rel (%p477) target = $region52
        $region51: #{tpu_custom_call.1} parent=11 // pred_region
          %481 = vsyncadd [#allocation6], 0
          %s482 = sshll.u32 %s11, 4
          %s483 = int_to_ptr.hbm [resolvable:$true] %s482
          %s484 = sshll.u32 [#allocation7], 4
          %s485 = int_to_ptr.vmem [resolvable:$true] %s484
          %490 = dma.hbm_to_vmem [thread:$0]  %s483, 256, %s485, [#allocation6], 64, 64, 4
        $region52: #{tpu_custom_call.1} parent=11 // pred_fallthru
          _
        // Predicated region
        $region53: #{tpu_custom_call.1} parent=11 // pred_check
          %p491 = pneg %p314
        $region54: #{tpu_custom_call.1} parent=11 // pred_check_branch
          %493 = sbr.rel (%p491) target = $region56
        $region55: #{tpu_custom_call.1} parent=11 // pred_region
          _
        $region56: #{tpu_custom_call.1} parent=11 // pred_fallthru
          _
        // Predicated region
        $region57: #{tpu_custom_call.1} parent=11 // pred_check
          %p494 = pneg %p335
        $region58: #{tpu_custom_call.1} parent=11 // pred_check_branch
          %496 = sbr.rel (%p494) target = $region60
        $region59: #{tpu_custom_call.1} parent=11 // pred_region
          _
        $region60: #{tpu_custom_call.1} parent=11 // pred_fallthru
          _
        // Predicated region
        $region61: #{tpu_custom_call.1} parent=11 // pred_check
          %p497 = pneg %p356
        $region62: #{tpu_custom_call.1} parent=11 // pred_check_branch
          %499 = sbr.rel (%p497) target = $region64
        $region63: #{tpu_custom_call.1} parent=11 // pred_region
          _
        $region64: #{tpu_custom_call.1} parent=11 // pred_fallthru
          _
        // Predicated region
        $region65: #{tpu_custom_call.1} parent=11 // pred_check
          %p500 = pneg %p377
        $region66: #{tpu_custom_call.1} parent=11 // pred_check_branch
          %502 = sbr.rel (%p500) target = $region68
        $region67: #{tpu_custom_call.1} parent=11 // pred_region
          %504 = vsyncadd [#allocation9], 0
          %s505 = sshll.u32 %s15, 4
          %s506 = int_to_ptr.hbm [resolvable:$true] %s505
          %s507 = sshll.u32 [#allocation8], 4
          %s508 = int_to_ptr.vmem [resolvable:$true] %s507
          %513 = dma.hbm_to_vmem [thread:$0]  %s506, 4096, %s508, [#allocation9], 64, 64, 4
        $region68: #{tpu_custom_call.1} parent=11 // pred_fallthru
          _
        // Predicated region
        $region69: #{tpu_custom_call.1} parent=11 // pred_check
          %p514 = pneg %p398
        $region70: #{tpu_custom_call.1} parent=11 // pred_check_branch
          %516 = sbr.rel (%p514) target = $region72
        $region71: #{tpu_custom_call.1} parent=11 // pred_region
          _
        $region72: #{tpu_custom_call.1} parent=11 // pred_fallthru
          _
      $region12: #{tpu_custom_call.1} parent=5 // pred_fallthru
        _
      %p517 = scmp.lt.s32.totalorder %s31, 2
      // Predicated region
      $region73: #{tpu_custom_call.1} parent=5 // pred_check
        %p518 = pneg %p517
      $region74: #{tpu_custom_call.1} parent=5 // pred_check_branch
        %520 = sbr.rel (%p518) target = $region76
      $region75: #{tpu_custom_call.1} parent=5 // pred_region
        // Predicated region
        $region77: #{tpu_custom_call.1} parent=75 // pred_check
          %p521 = pneg %p51
        $region78: #{tpu_custom_call.1} parent=75 // pred_check_branch
          %523 = sbr.rel (%p521) target = $region80
        $region79: #{tpu_custom_call.1} parent=75 // pred_region
          %p524 = scmp.lt.s32.totalorder %s31, 1
          %s525 = scalar_select %p524, %s31, 1
          %s526 = smul.addr %s525, 2
          %s527 = smul.addr %s526, 8
          %s528 = scalar_lea.vmem %s0, %s527
        $region80: #{tpu_custom_call.1} parent=75 // pred_fallthru
          _
        // Predicated region
        $region81: #{tpu_custom_call.1} parent=75 // pred_check
          %p529 = pneg %p77
        $region82: #{tpu_custom_call.1} parent=75 // pred_check_branch
          %531 = sbr.rel (%p529) target = $region84
        $region83: #{tpu_custom_call.1} parent=75 // pred_region
          %s532 = sand.u32 %s67, 1
          %s533 = scalar_lea.sflag [#allocation3], %s532
          %s534 = sand.u32 %s67, 1
          %s535 = smul.addr %s534, 16
          %s536 = scalar_lea.vmem [#allocation2], %s535
          %538 = vsyncadd %s533, 0
          %s539 = smul.addr %s31, 2
          %s540 = smul.addr %s539, 8
          %s541 = scalar_lea.hbm %s1, %s540
          %s542 = sshll.u32 %s541, 4
          %s543 = int_to_ptr.hbm [resolvable:$true] %s542
          %s544 = sshll.u32 %s536, 4
          %s545 = int_to_ptr.vmem [resolvable:$true] %s544
          %550 = dma.hbm_to_vmem [thread:$0]  %s543, 256, %s545, %s533, 128, 128, 8
        $region84: #{tpu_custom_call.1} parent=75 // pred_fallthru
          _
      $region76: #{tpu_custom_call.1} parent=5 // pred_fallthru
        _
      %p551 = scmp.le.s32.totalorder 1, %s31
      %p552 = scmp.lt.s32.totalorder %s31, 3
      %p553 = pnand %p551, %p552
      %p554 = pneg %p553
      // Predicated region
      $region85: #{tpu_custom_call.1} parent=5 // pred_check
        _
      $region86: #{tpu_custom_call.1} parent=5 // pred_check_branch
        %556 = sbr.rel (%p553) target = $region88
      $region87: #{tpu_custom_call.1} parent=5 // pred_region
        %s557 = ssub.s32 %s31, 1
        %s558 = sand.u32 %s70, 1
        %s559 = scalar_lea.sflag [#allocation3], %s558
        %s560 = sand.u32 %s70, 1
        %s561 = smul.addr %s560, 16
        %s562 = scalar_lea.vmem [#allocation2], %s561
        // Predicated region
        $region89: #{tpu_custom_call.1} parent=87 // pred_check
          %p563 = pneg %p83
        $region90: #{tpu_custom_call.1} parent=87 // pred_check_branch
          %565 = sbr.rel (%p563) target = $region92
        $region91: #{tpu_custom_call.1} parent=87 // pred_region
          %567 = dma.done %s559, 256
        $region92: #{tpu_custom_call.1} parent=87 // pred_fallthru
          _
        // Predicated region
        $region93: #{tpu_custom_call.1} parent=87 // pred_check
          %p568 = pneg %p167
        $region94: #{tpu_custom_call.1} parent=87 // pred_check_branch
          %570 = sbr.rel (%p568) target = $region96
        $region95: #{tpu_custom_call.1} parent=87 // pred_region
          %572 = dma.done [#allocation6], 256
        $region96: #{tpu_custom_call.1} parent=87 // pred_fallthru
          _
        // Predicated region
        $region97: #{tpu_custom_call.1} parent=87 // pred_check
          %p573 = pneg %p293
        $region98: #{tpu_custom_call.1} parent=87 // pred_check_branch
          %575 = sbr.rel (%p573) target = $region100
        $region99: #{tpu_custom_call.1} parent=87 // pred_region
          %577 = dma.done [#allocation6], 256
        $region100: #{tpu_custom_call.1} parent=87 // pred_fallthru
          _
        // Predicated region
        $region101: #{tpu_custom_call.1} parent=87 // pred_check
          %p578 = pneg %p377
        $region102: #{tpu_custom_call.1} parent=87 // pred_check_branch
          %580 = sbr.rel (%p578) target = $region104
        $region103: #{tpu_custom_call.1} parent=87 // pred_region
          %582 = dma.done [#allocation9], 4096
        $region104: #{tpu_custom_call.1} parent=87 // pred_fallthru
          _
        %p583 = scmp.lt.s32.totalorder %s36, 1
        %s584 = scalar_select %p583, %s36, 1
        %s585 = smul.addr %s584, 2
        %s586 = smul.addr %s585, 8
        %s587 = scalar_lea.vmem %s0, %s586
        %p588 = pneg %p57
        %p589 = pneg %p54
        %s590 = sand.u32 %s70, 1
        %s591 = scalar_lea.sflag [#allocation3], %s590
        %s592 = sand.u32 %s70, 1
        %s593 = smul.addr %s592, 16
        %s594 = scalar_lea.vmem [#allocation2], %s593
        %p595 = pneg %p83
        %p596 = pneg %p80
        %p597 = pneg %p104
        %p598 = pneg %p101
        %p599 = pneg %p125
        %p600 = pneg %p122
        %p601 = pneg %p146
        %p602 = pneg %p143
        %p603 = pneg %p167
        %p604 = pneg %p164
        %p605 = pneg %p188
        %p606 = pneg %p185
        %p607 = pneg %p209
        %p608 = pneg %p206
        %p609 = pneg %p230
        %p610 = pneg %p227
        %p611 = pneg %p251
        %p612 = pneg %p248
        %p613 = pneg %p272
        %p614 = pneg %p269
        %p615 = pneg %p293
        %p616 = pneg %p290
        %p617 = pneg %p314
        %p618 = pneg %p311
        %p619 = pneg %p335
        %p620 = pneg %p332
        %p621 = pneg %p356
        %p622 = pneg %p353
        %p623 = pneg %p377
        %p624 = pneg %p374
        %p625 = pneg %p398
        %p626 = pneg %p395
        %p627 = pneg %p424
        %p628 = pneg %p421
        %s629 = sand.u32 %s411, 1
        %s630 = scalar_lea.sflag [#allocation4], %s629
        %s631 = sand.u32 %s411, 1
        %s632 = smul.addr %s631, 16
        %s633 = scalar_lea.vmem [#allocation10], %s632
        %p634 = scmp.lt.s32.totalorder %s36, 1
        %s635 = scalar_select %p634, %s36, 1
        %s636 = smul.addr %s635, 2
        %s637 = smul.addr %s636, 8
        %s638 = scalar_lea.vmem %s0, %s637
        %v640 = vld [vmem:[%s2] sm:$0x1]
        %v641 = vld [vmem:[%s638] sm:$0xff]
        %v642 = vld [vmem:[%s638 + $0x8] sm:$0xff]
        %v643 = vld [vmem:[%s562] sm:$0xff]
        %v644 = vld [vmem:[%s562 + $0x8] sm:$0xff]
        %v645 = vmul.f32 %v641, %v641
        %v646 = vmul.f32 %v642, %v642
        %647 = vadd.xlane.f32.xlu0 %v645
        %v648 = vpop.xlane.xlu0 %647
        %649 = vadd.xlane.f32.xlu0 %v646
        %v650 = vpop.xlane.xlu0 %649
        %v651 = vrsqrt.pop %v648
        %v652 = vmul.f32 %v651, %v648
        %v653 = vmul.f32 %v652, %v651
        %v654 = vmul.f32 0.5, %v653
        %v655 = vsub.f32 1.5, %v654
        %v656 = vmul.f32 %v651, %v655
        %v657 = vmul.f32 %v648, %v656
        %vm658 = vcmp.eq.f32.partialorder %v648, inf
        %v659 = vsel %vm658, %v648, %v657
        %vm660 = vcmp.eq.f32.partialorder %v648, 0.0
        %v661 = vand.u32 %v648, 2147483648
        %v662 = vsel %vm660, %v661, %v659
        %v663 = vrsqrt.pop %v650
        %v664 = vmul.f32 %v663, %v650
        %v665 = vmul.f32 %v664, %v663
        %v666 = vmul.f32 0.5, %v665
        %v667 = vsub.f32 1.5, %v666
        %v668 = vmul.f32 %v663, %v667
        %v669 = vmul.f32 %v650, %v668
        %vm670 = vcmp.eq.f32.partialorder %v650, inf
        %v671 = vsel %vm670, %v650, %v669
        %vm672 = vcmp.eq.f32.partialorder %v650, 0.0
        %v673 = vand.u32 %v650, 2147483648
        %v674 = vsel %vm672, %v673, %v671
        %v675 = vmul.f32 %v662, 0.088388346
        %v676 = vmul.f32 %v674, 0.088388346
        %v677 = vadd.f32 %v675, 1e-08
        %v678 = vadd.f32 %v676, 1e-08
        %v679 = vrcp.pop %v677
        %v680 = vrcp.pop %v678
        %v681 = vmul.f32 %v641, %v679
        %v682 = vmul.f32 %v642, %v680
        %v684 = vperm.slane %v640, 0
        %v686 = vmul.f32 %v681, %v684
        %v687 = vmul.f32 %v682, %v684
        %v688 = vpack.c.bf16 %v687, %v686
        %v689 = vld [vmem:[%s3] sm:$0xf]
        %v690 = vld [vmem:[%s3 + $0x4] sm:$0xf]
        %v691 = vld [vmem:[%s3 + $0x8] sm:$0xf]
        %v692 = vld [vmem:[%s3 + $0xc] sm:$0xf]
        %v693 = vld [vmem:[%s3 + $0x10] sm:$0xf]
        %v694 = vld [vmem:[%s3 + $0x14] sm:$0xf]
        %v695 = vld [vmem:[%s3 + $0x18] sm:$0xf]
        %v696 = vld [vmem:[%s3 + $0x1c] sm:$0xf]
        %v697 = vld [vmem:[%s3 + $0x20] sm:$0xf]
        %v698 = vld [vmem:[%s3 + $0x24] sm:$0xf]
        %v699 = vld [vmem:[%s3 + $0x28] sm:$0xf]
        %v700 = vld [vmem:[%s3 + $0x2c] sm:$0xf]
        %v701 = vld [vmem:[%s3 + $0x30] sm:$0xf]
        %v702 = vld [vmem:[%s3 + $0x34] sm:$0xf]
        %v703 = vld [vmem:[%s3 + $0x38] sm:$0xf]
        %v704 = vld [vmem:[%s3 + $0x3c] sm:$0xf]
        %v705 = vld [vmem:[%s4] sm:$0x1]
        %v707 = vperm.slane %v705, 0
        %v725 = vunpack.c.l.b16 %v689
        %v726 = vunpack.c.l.b16 %v690
        %v727 = vunpack.c.l.b16 %v691
        %v728 = vunpack.c.l.b16 %v692
        %v729 = vunpack.c.l.b16 %v693
        %v730 = vunpack.c.l.b16 %v694
        %v731 = vunpack.c.l.b16 %v695
        %v732 = vunpack.c.l.b16 %v696
        %v733 = vunpack.c.l.b16 %v697
        %v734 = vunpack.c.l.b16 %v698
        %v735 = vunpack.c.l.b16 %v699
        %v736 = vunpack.c.l.b16 %v700
        %v737 = vunpack.c.l.b16 %v701
        %v738 = vunpack.c.l.b16 %v702
        %v739 = vunpack.c.l.b16 %v703
        %v740 = vunpack.c.l.b16 %v704
        %v741 = vpack.c.b16 %v726, %v725
        %v742 = vpack.c.b16 %v728, %v727
        %v743 = vpack.c.b16 %v730, %v729
        %v744 = vpack.c.b16 %v732, %v731
        %v745 = vpack.c.b16 %v734, %v733
        %v746 = vpack.c.b16 %v736, %v735
        %v747 = vpack.c.b16 %v738, %v737
        %v748 = vpack.c.b16 %v740, %v739
        %757 = vmatpush.bf16.msra.mxu0 %v748
        %758 = vmatpush.bf16.msra.mxu0 %v747
        %759 = vmatpush.bf16.msra.mxu0 %v746
        %760 = vmatpush.bf16.msra.mxu0 %v745
        %761 = vmatpush.bf16.msra.mxu0 %v744
        %762 = vmatpush.bf16.msra.mxu0 %v743
        %763 = vmatpush.bf16.msra.mxu0 %v742
        %764 = vmatpush.bf16.msra.mxu0 %v741
        %765 = vmatmul.bf16.gmra.mxu0 %v688
        %v766 = vpop.f32.mrf.mxu0
        %v767 = vadd.f32 %v707, %v766
        %v768 = vpop.f32.mrf.mxu0
        %v769 = vadd.f32 %v707, %v768
        %770 = vdwg.mxu0
        %v771 = vpack.c.bf16 %v769, %v767
        %773 = vrot.lane.b32.xlu0 %v771, 96
        %v774 = vpop.permute.xlu0 %773
        %vm775 = vcmask 261120
        %v777 = vsel %vm775, %v771, 0
        %v780 = vsel %vm775, %v774, 0
        %782 = vmatpush.bf16.xpose.msra.mxu0 0
        %783 = vmatpush.bf16.xpose.msra.mxu0 0
        %784 = vmatpush.bf16.xpose.msra.mxu0 0
        %785 = vmatpush.bf16.xpose.msra.mxu0 0
        %786 = vmatpush.bf16.xpose.msra.mxu0 0
        %787 = vmatpush.bf16.xpose.msra.mxu0 0
        %788 = vmatpush.bf16.xpose.msra.mxu0 0
        %789 = vmatpush.bf16.xpose.msra.mxu0 %v780
        %790 = vmatmul.bf16.gmra.mxu0 %v777
        %v791 = vpop.f32.mrf.mxu0
        %v792 = vadd.f32 0.0, %v791
        %v793 = vpop.f32.mrf.mxu0
        %v794 = vadd.f32 0.0, %v793
        %795 = vdwg.mxu0
        %v796 = vmul.f32 %v792, 0.17677669
        %v797 = vmul.f32 %v794, 0.17677669
        %vm798 = vcmask 130048
        %v799 = vsel %vm798, %v796, -inf
        %800 = vmax.xlane.f32.xlu0 %v799
        %v801 = vpop.xlane.xlu0 %800
        %v802 = vsel %vm798, %v797, -inf
        %803 = vmax.xlane.f32.xlu0 %v802
        %v804 = vpop.xlane.xlu0 %803
        %v805 = vsub.f32 %v796, %v801
        %v806 = vsub.f32 %v797, %v804
        %v807 = vmul.f32 %v805, 1.442695
        %v808 = vpow.pop %v807
        %v809 = vmul.f32 %v806, 1.442695
        %v810 = vpow.pop %v809
        %v811 = vsel %vm798, %v808, 0.0
        %812 = vadd.xlane.f32.xlu0 %v811
        %v813 = vpop.xlane.xlu0 %812
        %v814 = vsel %vm798, %v810, 0.0
        %815 = vadd.xlane.f32.xlu0 %v814
        %v816 = vpop.xlane.xlu0 %815
        %v817 = vrcp.pop %v813
        %v818 = vrcp.pop %v816
        %v819 = vmul.f32 %v808, %v817
        %v820 = vmul.f32 %v810, %v818
        %v821 = vpack.c.bf16 %v820, %v819
        %822 = vrot.lane.b32.xlu0 %v771, 64
        %v823 = vpop.permute.xlu0 %822
        %v826 = vsel %vm798, %v821, 0
        %828 = vmatpush.bf16.msra.mxu0 0
        %829 = vmatpush.bf16.msra.mxu0 0
        %830 = vmatpush.bf16.msra.mxu0 0
        %831 = vmatpush.bf16.msra.mxu0 0
        %832 = vmatpush.bf16.msra.mxu0 0
        %833 = vmatpush.bf16.msra.mxu0 0
        %834 = vmatpush.bf16.msra.mxu0 0
        %835 = vmatpush.bf16.msra.mxu0 %v823
        %836 = vmatmul.bf16.gmra.mxu0 %v826
        %v837 = vpop.f32.mrf.mxu0
        %v838 = vadd.f32 0.0, %v837
        %v839 = vpop.f32.mrf.mxu0
        %v840 = vadd.f32 0.0, %v839
        %841 = vdwg.mxu0
        %v842 = vpack.c.bf16 %v840, %v838
        %v843 = vld [vmem:[#allocation5] sm:$0xf]
        %v844 = vld [vmem:[#allocation5 + $0x4] sm:$0xf]
        %v845 = vld [vmem:[#allocation5 + $0x8] sm:$0xf]
        %v846 = vld [vmem:[#allocation5 + $0xc] sm:$0xf]
        %v847 = vld [vmem:[%s6] sm:$0x1]
        %v849 = vperm.slane %v847, 0
        %v855 = vunpack.c.l.b16 %v843
        %v856 = vunpack.c.l.b16 %v844
        %v857 = vunpack.c.l.b16 %v845
        %v858 = vunpack.c.l.b16 %v846
        %v859 = vpack.c.b16 %v856, %v855
        %v860 = vpack.c.b16 %v858, %v857
        %v864 = vsel %vm775, %v842, 0
        %866 = vmatpush.bf16.msra.mxu0 0
        %867 = vmatpush.bf16.msra.mxu0 0
        %868 = vmatpush.bf16.msra.mxu0 0
        %869 = vmatpush.bf16.msra.mxu0 0
        %870 = vmatpush.bf16.msra.mxu0 0
        %871 = vmatpush.bf16.msra.mxu0 0
        %872 = vmatpush.bf16.msra.mxu0 %v860
        %873 = vmatpush.bf16.msra.mxu0 %v859
        %874 = vmatmul.bf16.gmra.mxu0 %v864
        %v875 = vpop.f32.mrf.mxu0
        %v876 = vadd.f32 %v849, %v875
        %v877 = vpop.f32.mrf.mxu0
        %v878 = vadd.f32 %v849, %v877
        %879 = vdwg.mxu0
        %v880 = vadd.f32 %v876, %v641
        %v881 = vadd.f32 %v878, %v642
        %v882 = vmul.f32 %v880, %v880
        %v883 = vmul.f32 %v881, %v881
        %884 = vadd.xlane.f32.xlu0 %v882
        %v885 = vpop.xlane.xlu0 %884
        %886 = vadd.xlane.f32.xlu0 %v883
        %v887 = vpop.xlane.xlu0 %886
        %v888 = vrsqrt.pop %v885
        %v889 = vmul.f32 %v888, %v885
        %v890 = vmul.f32 %v889, %v888
        %v891 = vmul.f32 0.5, %v890
        %v892 = vsub.f32 1.5, %v891
        %v893 = vmul.f32 %v888, %v892
        %v894 = vmul.f32 %v885, %v893
        %vm895 = vcmp.eq.f32.partialorder %v885, inf
        %v896 = vsel %vm895, %v885, %v894
        %vm897 = vcmp.eq.f32.partialorder %v885, 0.0
        %v898 = vand.u32 %v885, 2147483648
        %v899 = vsel %vm897, %v898, %v896
        %v900 = vrsqrt.pop %v887
        %v901 = vmul.f32 %v900, %v887
        %v902 = vmul.f32 %v901, %v900
        %v903 = vmul.f32 0.5, %v902
        %v904 = vsub.f32 1.5, %v903
        %v905 = vmul.f32 %v900, %v904
        %v906 = vmul.f32 %v887, %v905
        %vm907 = vcmp.eq.f32.partialorder %v887, inf
        %v908 = vsel %vm907, %v887, %v906
        %vm909 = vcmp.eq.f32.partialorder %v887, 0.0
        %v910 = vand.u32 %v887, 2147483648
        %v911 = vsel %vm909, %v910, %v908
        %v912 = vmul.f32 %v899, 0.088388346
        %v913 = vmul.f32 %v911, 0.088388346
        %v914 = vadd.f32 %v912, 1e-08
        %v915 = vadd.f32 %v913, 1e-08
        %v916 = vrcp.pop %v914
        %v917 = vrcp.pop %v915
        %v918 = vmul.f32 %v880, %v916
        %v919 = vmul.f32 %v881, %v917
        %v920 = vmul.f32 %v918, %v684
        %v921 = vmul.f32 %v919, %v684
        %v922 = vmul.f32 %v643, %v643
        %v923 = vmul.f32 %v644, %v644
        %924 = vadd.xlane.f32.xlu0 %v922
        %v925 = vpop.xlane.xlu0 %924
        %926 = vadd.xlane.f32.xlu0 %v923
        %v927 = vpop.xlane.xlu0 %926
        %v928 = vrsqrt.pop %v925
        %v929 = vmul.f32 %v928, %v925
        %v930 = vmul.f32 %v929, %v928
        %v931 = vmul.f32 0.5, %v930
        %v932 = vsub.f32 1.5, %v931
        %v933 = vmul.f32 %v928, %v932
        %v934 = vmul.f32 %v925, %v933
        %vm935 = vcmp.eq.f32.partialorder %v925, inf
        %v936 = vsel %vm935, %v925, %v934
        %vm937 = vcmp.eq.f32.partialorder %v925, 0.0
        %v938 = vand.u32 %v925, 2147483648
        %v939 = vsel %vm937, %v938, %v936
        %v940 = vrsqrt.pop %v927
        %v941 = vmul.f32 %v940, %v927
        %v942 = vmul.f32 %v941, %v940
        %v943 = vmul.f32 0.5, %v942
        %v944 = vsub.f32 1.5, %v943
        %v945 = vmul.f32 %v940, %v944
        %v946 = vmul.f32 %v927, %v945
        %vm947 = vcmp.eq.f32.partialorder %v927, inf
        %v948 = vsel %vm947, %v927, %v946
        %vm949 = vcmp.eq.f32.partialorder %v927, 0.0
        %v950 = vand.u32 %v927, 2147483648
        %v951 = vsel %vm949, %v950, %v948
        %v952 = vmul.f32 %v939, 0.088388346
        %v953 = vmul.f32 %v951, 0.088388346
        %v954 = vadd.f32 %v952, 1e-08
        %v955 = vadd.f32 %v953, 1e-08
        %v956 = vrcp.pop %v954
        %v957 = vrcp.pop %v955
        %v958 = vmul.f32 %v643, %v956
        %v959 = vmul.f32 %v644, %v957
        %v960 = vmul.f32 %v958, %v684
        %v961 = vmul.f32 %v959, %v684
        %v962 = vpack.c.bf16 %v921, %v920
        %v963 = vld [vmem:[%s7] sm:$0xf]
        %v964 = vld [vmem:[%s7 + $0x4] sm:$0xf]
        %v965 = vld [vmem:[%s7 + $0x8] sm:$0xf]
        %v966 = vld [vmem:[%s7 + $0xc] sm:$0xf]
        %v967 = vld [vmem:[%s7 + $0x10] sm:$0xf]
        %v968 = vld [vmem:[%s7 + $0x14] sm:$0xf]
        %v969 = vld [vmem:[%s7 + $0x18] sm:$0xf]
        %v970 = vld [vmem:[%s7 + $0x1c] sm:$0xf]
        %v971 = vld [vmem:[%s7 + $0x20] sm:$0xf]
        %v972 = vld [vmem:[%s7 + $0x24] sm:$0xf]
        %v973 = vld [vmem:[%s7 + $0x28] sm:$0xf]
        %v974 = vld [vmem:[%s7 + $0x2c] sm:$0xf]
        %v975 = vld [vmem:[%s7 + $0x30] sm:$0xf]
        %v976 = vld [vmem:[%s7 + $0x34] sm:$0xf]
        %v977 = vld [vmem:[%s7 + $0x38] sm:$0xf]
        %v978 = vld [vmem:[%s7 + $0x3c] sm:$0xf]
        %v979 = vld [vmem:[%s8] sm:$0x1]
        %v981 = vperm.slane %v979, 0
        %v999 = vunpack.c.l.b16 %v963
        %v1000 = vunpack.c.l.b16 %v964
        %v1001 = vunpack.c.l.b16 %v965
        %v1002 = vunpack.c.l.b16 %v966
        %v1003 = vunpack.c.l.b16 %v967
        %v1004 = vunpack.c.l.b16 %v968
        %v1005 = vunpack.c.l.b16 %v969
        %v1006 = vunpack.c.l.b16 %v970
        %v1007 = vunpack.c.l.b16 %v971
        %v1008 = vunpack.c.l.b16 %v972
        %v1009 = vunpack.c.l.b16 %v973
        %v1010 = vunpack.c.l.b16 %v974
        %v1011 = vunpack.c.l.b16 %v975
        %v1012 = vunpack.c.l.b16 %v976
        %v1013 = vunpack.c.l.b16 %v977
        %v1014 = vunpack.c.l.b16 %v978
        %v1015 = vpack.c.b16 %v1000, %v999
        %v1016 = vpack.c.b16 %v1002, %v1001
        %v1017 = vpack.c.b16 %v1004, %v1003
        %v1018 = vpack.c.b16 %v1006, %v1005
        %v1019 = vpack.c.b16 %v1008, %v1007
        %v1020 = vpack.c.b16 %v1010, %v1009
        %v1021 = vpack.c.b16 %v1012, %v1011
        %v1022 = vpack.c.b16 %v1014, %v1013
        %1031 = vmatpush.bf16.msra.mxu0 %v1022
        %1032 = vmatpush.bf16.msra.mxu0 %v1021
        %1033 = vmatpush.bf16.msra.mxu0 %v1020
        %1034 = vmatpush.bf16.msra.mxu0 %v1019
        %1035 = vmatpush.bf16.msra.mxu0 %v1018
        %1036 = vmatpush.bf16.msra.mxu0 %v1017
        %1037 = vmatpush.bf16.msra.mxu0 %v1016
        %1038 = vmatpush.bf16.msra.mxu0 %v1015
        %1039 = vmatmul.bf16.gmra.mxu0 %v962
        %v1040 = vpop.f32.mrf.mxu0
        %v1041 = vadd.f32 %v981, %v1040
        %v1042 = vpop.f32.mrf.mxu0
        %v1043 = vadd.f32 %v981, %v1042
        %1044 = vdwg.mxu0
        %v1045 = vpack.c.bf16 %v961, %v960
        %v1046 = vld [vmem:[%s9] sm:$0xf]
        %v1047 = vld [vmem:[%s9 + $0x4] sm:$0xf]
        %v1048 = vld [vmem:[%s9 + $0x8] sm:$0xf]
        %v1049 = vld [vmem:[%s9 + $0xc] sm:$0xf]
        %v1050 = vld [vmem:[%s9 + $0x10] sm:$0xf]
        %v1051 = vld [vmem:[%s9 + $0x14] sm:$0xf]
        %v1052 = vld [vmem:[%s9 + $0x18] sm:$0xf]
        %v1053 = vld [vmem:[%s9 + $0x1c] sm:$0xf]
        %v1054 = vld [vmem:[%s9 + $0x20] sm:$0xf]
        %v1055 = vld [vmem:[%s9 + $0x24] sm:$0xf]
        %v1056 = vld [vmem:[%s9 + $0x28] sm:$0xf]
        %v1057 = vld [vmem:[%s9 + $0x2c] sm:$0xf]
        %v1058 = vld [vmem:[%s9 + $0x30] sm:$0xf]
        %v1059 = vld [vmem:[%s9 + $0x34] sm:$0xf]
        %v1060 = vld [vmem:[%s9 + $0x38] sm:$0xf]
        %v1061 = vld [vmem:[%s9 + $0x3c] sm:$0xf]
        %v1062 = vld [vmem:[%s10] sm:$0x1]
        %v1064 = vperm.slane %v1062, 0
        %v1082 = vunpack.c.l.b16 %v1046
        %v1083 = vunpack.c.l.b16 %v1047
        %v1084 = vunpack.c.l.b16 %v1048
        %v1085 = vunpack.c.l.b16 %v1049
        %v1086 = vunpack.c.l.b16 %v1050
        %v1087 = vunpack.c.l.b16 %v1051
        %v1088 = vunpack.c.l.b16 %v1052
        %v1089 = vunpack.c.l.b16 %v1053
        %v1090 = vunpack.c.l.b16 %v1054
        %v1091 = vunpack.c.l.b16 %v1055
        %v1092 = vunpack.c.l.b16 %v1056
        %v1093 = vunpack.c.l.b16 %v1057
        %v1094 = vunpack.c.l.b16 %v1058
        %v1095 = vunpack.c.l.b16 %v1059
        %v1096 = vunpack.c.l.b16 %v1060
        %v1097 = vunpack.c.l.b16 %v1061
        %v1098 = vpack.c.b16 %v1083, %v1082
        %v1099 = vpack.c.b16 %v1085, %v1084
        %v1100 = vpack.c.b16 %v1087, %v1086
        %v1101 = vpack.c.b16 %v1089, %v1088
        %v1102 = vpack.c.b16 %v1091, %v1090
        %v1103 = vpack.c.b16 %v1093, %v1092
        %v1104 = vpack.c.b16 %v1095, %v1094
        %v1105 = vpack.c.b16 %v1097, %v1096
        %1114 = vmatpush.bf16.msra.mxu0 %v1105
        %1115 = vmatpush.bf16.msra.mxu0 %v1104
        %1116 = vmatpush.bf16.msra.mxu0 %v1103
        %1117 = vmatpush.bf16.msra.mxu0 %v1102
        %1118 = vmatpush.bf16.msra.mxu0 %v1101
        %1119 = vmatpush.bf16.msra.mxu0 %v1100
        %1120 = vmatpush.bf16.msra.mxu0 %v1099
        %1121 = vmatpush.bf16.msra.mxu0 %v1098
        %1122 = vmatmul.bf16.gmra.mxu0 %v1045
        %v1123 = vpop.f32.mrf.mxu0
        %v1124 = vadd.f32 %v1064, %v1123
        %v1125 = vpop.f32.mrf.mxu0
        %v1126 = vadd.f32 %v1064, %v1125
        %1127 = vdwg.mxu0
        %v1128 = vpack.c.bf16 %v1043, %v1041
        %v1129 = vpack.c.bf16 %v1126, %v1124
        %v1131 = vsel %vm775, %v1128, 0
        %v1134 = vsel %vm775, %v1129, 0
        %1136 = vmatpush.bf16.xpose.msra.mxu0 0
        %1137 = vmatpush.bf16.xpose.msra.mxu0 0
        %1138 = vmatpush.bf16.xpose.msra.mxu0 0
        %1139 = vmatpush.bf16.xpose.msra.mxu0 0
        %1140 = vmatpush.bf16.xpose.msra.mxu0 0
        %1141 = vmatpush.bf16.xpose.msra.mxu0 0
        %1142 = vmatpush.bf16.xpose.msra.mxu0 0
        %1143 = vmatpush.bf16.xpose.msra.mxu0 %v1134
        %1144 = vmatmul.bf16.gmra.mxu0 %v1131
        %v1145 = vpop.f32.mrf.mxu0
        %v1146 = vadd.f32 0.0, %v1145
        %v1147 = vpop.f32.mrf.mxu0
        %v1148 = vadd.f32 0.0, %v1147
        %1149 = vdwg.mxu0
        %v1150 = vmul.f32 %v1146, 0.17677669
        %v1151 = vmul.f32 %v1148, 0.17677669
        %v1152 = vsel %vm798, %v1150, -inf
        %1153 = vmax.xlane.f32.xlu0 %v1152
        %v1154 = vpop.xlane.xlu0 %1153
        %v1155 = vsel %vm798, %v1151, -inf
        %1156 = vmax.xlane.f32.xlu0 %v1155
        %v1157 = vpop.xlane.xlu0 %1156
        %v1158 = vsub.f32 %v1150, %v1154
        %v1159 = vsub.f32 %v1151, %v1157
        %v1160 = vmul.f32 %v1158, 1.442695
        %v1161 = vpow.pop %v1160
        %v1162 = vmul.f32 %v1159, 1.442695
        %v1163 = vpow.pop %v1162
        %v1164 = vsel %vm798, %v1161, 0.0
        %1165 = vadd.xlane.f32.xlu0 %v1164
        %v1166 = vpop.xlane.xlu0 %1165
        %v1167 = vsel %vm798, %v1163, 0.0
        %1168 = vadd.xlane.f32.xlu0 %v1167
        %v1169 = vpop.xlane.xlu0 %1168
        %v1170 = vrcp.pop %v1166
        %v1171 = vrcp.pop %v1169
        %v1172 = vmul.f32 %v1161, %v1170
        %v1173 = vmul.f32 %v1163, %v1171
        %v1174 = vpack.c.bf16 %v1173, %v1172
        %1176 = vrot.lane.b32.xlu0 %v1129, 96
        %v1177 = vpop.permute.xlu0 %1176
        %v1180 = vsel %vm798, %v1174, 0
        %1182 = vmatpush.bf16.msra.mxu0 0
        %1183 = vmatpush.bf16.msra.mxu0 0
        %1184 = vmatpush.bf16.msra.mxu0 0
        %1185 = vmatpush.bf16.msra.mxu0 0
        %1186 = vmatpush.bf16.msra.mxu0 0
        %1187 = vmatpush.bf16.msra.mxu0 0
        %1188 = vmatpush.bf16.msra.mxu0 0
        %1189 = vmatpush.bf16.msra.mxu0 %v1177
        %1190 = vmatmul.bf16.gmra.mxu0 %v1180
        %v1191 = vpop.f32.mrf.mxu0
        %v1192 = vadd.f32 0.0, %v1191
        %v1193 = vpop.f32.mrf.mxu0
        %v1194 = vadd.f32 0.0, %v1193
        %1195 = vdwg.mxu0
        %v1196 = vpack.c.bf16 %v1194, %v1192
        %v1197 = vld [vmem:[#allocation7] sm:$0xf]
        %v1198 = vld [vmem:[#allocation7 + $0x4] sm:$0xf]
        %v1199 = vld [vmem:[#allocation7 + $0x8] sm:$0xf]
        %v1200 = vld [vmem:[#allocation7 + $0xc] sm:$0xf]
        %v1201 = vld [vmem:[%s12] sm:$0x1]
        %v1203 = vperm.slane %v1201, 0
        %v1209 = vunpack.c.l.b16 %v1197
        %v1210 = vunpack.c.l.b16 %v1198
        %v1211 = vunpack.c.l.b16 %v1199
        %v1212 = vunpack.c.l.b16 %v1200
        %v1213 = vpack.c.b16 %v1210, %v1209
        %v1214 = vpack.c.b16 %v1212, %v1211
        %v1218 = vsel %vm775, %v1196, 0
        %1220 = vmatpush.bf16.msra.mxu0 0
        %1221 = vmatpush.bf16.msra.mxu0 0
        %1222 = vmatpush.bf16.msra.mxu0 0
        %1223 = vmatpush.bf16.msra.mxu0 0
        %1224 = vmatpush.bf16.msra.mxu0 0
        %1225 = vmatpush.bf16.msra.mxu0 0
        %1226 = vmatpush.bf16.msra.mxu0 %v1214
        %1227 = vmatpush.bf16.msra.mxu0 %v1213
        %1228 = vmatmul.bf16.gmra.mxu0 %v1218
        %v1229 = vpop.f32.mrf.mxu0
        %v1230 = vadd.f32 %v1203, %v1229
        %v1231 = vpop.f32.mrf.mxu0
        %v1232 = vadd.f32 %v1203, %v1231
        %1233 = vdwg.mxu0
        %v1234 = vadd.f32 %v1230, %v880
        %v1235 = vadd.f32 %v1232, %v881
        %v1236 = vmul.f32 %v1234, %v1234
        %v1237 = vmul.f32 %v1235, %v1235
        %1238 = vadd.xlane.f32.xlu0 %v1236
        %v1239 = vpop.xlane.xlu0 %1238
        %1240 = vadd.xlane.f32.xlu0 %v1237
        %v1241 = vpop.xlane.xlu0 %1240
        %v1242 = vrsqrt.pop %v1239
        %v1243 = vmul.f32 %v1242, %v1239
        %v1244 = vmul.f32 %v1243, %v1242
        %v1245 = vmul.f32 0.5, %v1244
        %v1246 = vsub.f32 1.5, %v1245
        %v1247 = vmul.f32 %v1242, %v1246
        %v1248 = vmul.f32 %v1239, %v1247
        %vm1249 = vcmp.eq.f32.partialorder %v1239, inf
        %v1250 = vsel %vm1249, %v1239, %v1248
        %vm1251 = vcmp.eq.f32.partialorder %v1239, 0.0
        %v1252 = vand.u32 %v1239, 2147483648
        %v1253 = vsel %vm1251, %v1252, %v1250
        %v1254 = vrsqrt.pop %v1241
        %v1255 = vmul.f32 %v1254, %v1241
        %v1256 = vmul.f32 %v1255, %v1254
        %v1257 = vmul.f32 0.5, %v1256
        %v1258 = vsub.f32 1.5, %v1257
        %v1259 = vmul.f32 %v1254, %v1258
        %v1260 = vmul.f32 %v1241, %v1259
        %vm1261 = vcmp.eq.f32.partialorder %v1241, inf
        %v1262 = vsel %vm1261, %v1241, %v1260
        %vm1263 = vcmp.eq.f32.partialorder %v1241, 0.0
        %v1264 = vand.u32 %v1241, 2147483648
        %v1265 = vsel %vm1263, %v1264, %v1262
        %v1266 = vmul.f32 %v1253, 0.088388346
        %v1267 = vmul.f32 %v1265, 0.088388346
        %v1268 = vadd.f32 %v1266, 1e-08
        %v1269 = vadd.f32 %v1267, 1e-08
        %v1270 = vrcp.pop %v1268
        %v1271 = vrcp.pop %v1269
        %v1272 = vmul.f32 %v1234, %v1270
        %v1273 = vmul.f32 %v1235, %v1271
        %v1274 = vmul.f32 %v1272, %v684
        %v1275 = vmul.f32 %v1273, %v684
        %v1276 = vpack.c.bf16 %v1275, %v1274
        %v1277 = vld [vmem:[%s13] sm:$0xff]
        %v1278 = vld [vmem:[%s13 + $0x8] sm:$0xff]
        %v1279 = vld [vmem:[%s13 + $0x10] sm:$0xff]
        %v1280 = vld [vmem:[%s13 + $0x18] sm:$0xff]
        %v1281 = vld [vmem:[%s13 + $0x20] sm:$0xff]
        %v1282 = vld [vmem:[%s13 + $0x28] sm:$0xff]
        %v1283 = vld [vmem:[%s13 + $0x30] sm:$0xff]
        %v1284 = vld [vmem:[%s13 + $0x38] sm:$0xff]
        %v1285 = vld [vmem:[%s13 + $0x40] sm:$0xff]
        %v1286 = vld [vmem:[%s13 + $0x48] sm:$0xff]
        %v1287 = vld [vmem:[%s13 + $0x50] sm:$0xff]
        %v1288 = vld [vmem:[%s13 + $0x58] sm:$0xff]
        %v1289 = vld [vmem:[%s13 + $0x60] sm:$0xff]
        %v1290 = vld [vmem:[%s13 + $0x68] sm:$0xff]
        %v1291 = vld [vmem:[%s13 + $0x70] sm:$0xff]
        %v1292 = vld [vmem:[%s13 + $0x78] sm:$0xff]
        %v1293 = vld [vmem:[%s13 + $0x80] sm:$0xff]
        %v1294 = vld [vmem:[%s13 + $0x88] sm:$0xff]
        %v1295 = vld [vmem:[%s13 + $0x90] sm:$0xff]
        %v1296 = vld [vmem:[%s13 + $0x98] sm:$0xff]
        %v1297 = vld [vmem:[%s13 + $0xa0] sm:$0xff]
        %v1298 = vld [vmem:[%s13 + $0xa8] sm:$0xff]
        %v1299 = vld [vmem:[%s13 + $0xb0] sm:$0xff]
        %v1300 = vld [vmem:[%s13 + $0xb8] sm:$0xff]
        %v1301 = vld [vmem:[%s13 + $0xc0] sm:$0xff]
        %v1302 = vld [vmem:[%s13 + $0xc8] sm:$0xff]
        %v1303 = vld [vmem:[%s13 + $0xd0] sm:$0xff]
        %v1304 = vld [vmem:[%s13 + $0xd8] sm:$0xff]
        %v1305 = vld [vmem:[%s13 + $0xe0] sm:$0xff]
        %v1306 = vld [vmem:[%s13 + $0xe8] sm:$0xff]
        %v1307 = vld [vmem:[%s13 + $0xf0] sm:$0xff]
        %v1308 = vld [vmem:[%s13 + $0xf8] sm:$0xff]
        %v1309 = vld [vmem:[%s14] sm:$0xf]
        %v1311 = vperm.slane %v1309, 0
        %v1312 = vperm.slane %v1309, 1
        %v1313 = vperm.slane %v1309, 2
        %v1314 = vperm.slane %v1309, 3
        %v1351 = vunpack.c.l.b16 %v1277
        %v1352 = vunpack.c.h.b16 %v1277
        %v1353 = vunpack.c.l.b16 %v1278
        %v1354 = vunpack.c.h.b16 %v1278
        %v1355 = vunpack.c.l.b16 %v1279
        %v1356 = vunpack.c.h.b16 %v1279
        %v1357 = vunpack.c.l.b16 %v1280
        %v1358 = vunpack.c.h.b16 %v1280
        %v1359 = vunpack.c.l.b16 %v1281
        %v1360 = vunpack.c.h.b16 %v1281
        %v1361 = vunpack.c.l.b16 %v1282
        %v1362 = vunpack.c.h.b16 %v1282
        %v1363 = vunpack.c.l.b16 %v1283
        %v1364 = vunpack.c.h.b16 %v1283
        %v1365 = vunpack.c.l.b16 %v1284
        %v1366 = vunpack.c.h.b16 %v1284
        %v1367 = vunpack.c.l.b16 %v1285
        %v1368 = vunpack.c.h.b16 %v1285
        %v1369 = vunpack.c.l.b16 %v1286
        %v1370 = vunpack.c.h.b16 %v1286
        %v1371 = vunpack.c.l.b16 %v1287
        %v1372 = vunpack.c.h.b16 %v1287
        %v1373 = vunpack.c.l.b16 %v1288
        %v1374 = vunpack.c.h.b16 %v1288
        %v1375 = vunpack.c.l.b16 %v1289
        %v1376 = vunpack.c.h.b16 %v1289
        %v1377 = vunpack.c.l.b16 %v1290
        %v1378 = vunpack.c.h.b16 %v1290
        %v1379 = vunpack.c.l.b16 %v1291
        %v1380 = vunpack.c.h.b16 %v1291
        %v1381 = vunpack.c.l.b16 %v1292
        %v1382 = vunpack.c.h.b16 %v1292
        %v1383 = vunpack.c.l.b16 %v1293
        %v1384 = vunpack.c.h.b16 %v1293
        %v1385 = vunpack.c.l.b16 %v1294
        %v1386 = vunpack.c.h.b16 %v1294
        %v1387 = vunpack.c.l.b16 %v1295
        %v1388 = vunpack.c.h.b16 %v1295
        %v1389 = vunpack.c.l.b16 %v1296
        %v1390 = vunpack.c.h.b16 %v1296
        %v1391 = vunpack.c.l.b16 %v1297
        %v1392 = vunpack.c.h.b16 %v1297
        %v1393 = vunpack.c.l.b16 %v1298
        %v1394 = vunpack.c.h.b16 %v1298
        %v1395 = vunpack.c.l.b16 %v1299
        %v1396 = vunpack.c.h.b16 %v1299
        %v1397 = vunpack.c.l.b16 %v1300
        %v1398 = vunpack.c.h.b16 %v1300
        %v1399 = vunpack.c.l.b16 %v1301
        %v1400 = vunpack.c.h.b16 %v1301
        %v1401 = vunpack.c.l.b16 %v1302
        %v1402 = vunpack.c.h.b16 %v1302
        %v1403 = vunpack.c.l.b16 %v1303
        %v1404 = vunpack.c.h.b16 %v1303
        %v1405 = vunpack.c.l.b16 %v1304
        %v1406 = vunpack.c.h.b16 %v1304
        %v1407 = vunpack.c.l.b16 %v1305
        %v1408 = vunpack.c.h.b16 %v1305
        %v1409 = vunpack.c.l.b16 %v1306
        %v1410 = vunpack.c.h.b16 %v1306
        %v1411 = vunpack.c.l.b16 %v1307
        %v1412 = vunpack.c.h.b16 %v1307
        %v1413 = vunpack.c.l.b16 %v1308
        %v1414 = vunpack.c.h.b16 %v1308
        %v1415 = vpack.c.b16 %v1355, %v1351
        %v1416 = vpack.c.b16 %v1356, %v1352
        %v1417 = vpack.c.b16 %v1357, %v1353
        %v1418 = vpack.c.b16 %v1358, %v1354
        %v1419 = vpack.c.b16 %v1363, %v1359
        %v1420 = vpack.c.b16 %v1364, %v1360
        %v1421 = vpack.c.b16 %v1365, %v1361
        %v1422 = vpack.c.b16 %v1366, %v1362
        %v1423 = vpack.c.b16 %v1371, %v1367
        %v1424 = vpack.c.b16 %v1372, %v1368
        %v1425 = vpack.c.b16 %v1373, %v1369
        %v1426 = vpack.c.b16 %v1374, %v1370
        %v1427 = vpack.c.b16 %v1379, %v1375
        %v1428 = vpack.c.b16 %v1380, %v1376
        %v1429 = vpack.c.b16 %v1381, %v1377
        %v1430 = vpack.c.b16 %v1382, %v1378
        %v1431 = vpack.c.b16 %v1387, %v1383
        %v1432 = vpack.c.b16 %v1388, %v1384
        %v1433 = vpack.c.b16 %v1389, %v1385
        %v1434 = vpack.c.b16 %v1390, %v1386
        %v1435 = vpack.c.b16 %v1395, %v1391
        %v1436 = vpack.c.b16 %v1396, %v1392
        %v1437 = vpack.c.b16 %v1397, %v1393
        %v1438 = vpack.c.b16 %v1398, %v1394
        %v1439 = vpack.c.b16 %v1403, %v1399
        %v1440 = vpack.c.b16 %v1404, %v1400
        %v1441 = vpack.c.b16 %v1405, %v1401
        %v1442 = vpack.c.b16 %v1406, %v1402
        %v1443 = vpack.c.b16 %v1411, %v1407
        %v1444 = vpack.c.b16 %v1412, %v1408
        %v1445 = vpack.c.b16 %v1413, %v1409
        %v1446 = vpack.c.b16 %v1414, %v1410
        %1479 = vmatpush.bf16.msra.mxu0 %v1443
        %1480 = vmatpush.bf16.msra.mxu0 %v1439
        %1481 = vmatpush.bf16.msra.mxu0 %v1435
        %1482 = vmatpush.bf16.msra.mxu0 %v1431
        %1483 = vmatpush.bf16.msra.mxu0 %v1427
        %1484 = vmatpush.bf16.msra.mxu0 %v1423
        %1485 = vmatpush.bf16.msra.mxu0 %v1419
        %1486 = vmatpush.bf16.msra.mxu0 %v1415
        %1487 = vmatmul.bf16.gmra.mxu0 %v1276
        %v1488 = vpop.f32.mrf.mxu0
        %v1489 = vadd.f32 %v1311, %v1488
        %v1490 = vpop.f32.mrf.mxu0
        %v1491 = vadd.f32 %v1311, %v1490
        %1492 = vdwg.mxu0
        %1493 = vmatpush.bf16.msra.mxu0 %v1444
        %1494 = vmatpush.bf16.msra.mxu0 %v1440
        %1495 = vmatpush.bf16.msra.mxu0 %v1436
        %1496 = vmatpush.bf16.msra.mxu0 %v1432
        %1497 = vmatpush.bf16.msra.mxu0 %v1428
        %1498 = vmatpush.bf16.msra.mxu0 %v1424
        %1499 = vmatpush.bf16.msra.mxu0 %v1420
        %1500 = vmatpush.bf16.msra.mxu0 %v1416
        %1501 = vmatmul.bf16.gmra.mxu0 %v1276
        %v1502 = vpop.f32.mrf.mxu0
        %v1503 = vadd.f32 %v1312, %v1502
        %v1504 = vpop.f32.mrf.mxu0
        %v1505 = vadd.f32 %v1312, %v1504
        %1506 = vdwg.mxu0
        %1507 = vmatpush.bf16.msra.mxu0 %v1445
        %1508 = vmatpush.bf16.msra.mxu0 %v1441
        %1509 = vmatpush.bf16.msra.mxu0 %v1437
        %1510 = vmatpush.bf16.msra.mxu0 %v1433
        %1511 = vmatpush.bf16.msra.mxu0 %v1429
        %1512 = vmatpush.bf16.msra.mxu0 %v1425
        %1513 = vmatpush.bf16.msra.mxu0 %v1421
        %1514 = vmatpush.bf16.msra.mxu0 %v1417
        %1515 = vmatmul.bf16.gmra.mxu0 %v1276
        %v1516 = vpop.f32.mrf.mxu0
        %v1517 = vadd.f32 %v1313, %v1516
        %v1518 = vpop.f32.mrf.mxu0
        %v1519 = vadd.f32 %v1313, %v1518
        %1520 = vdwg.mxu0
        %1521 = vmatpush.bf16.msra.mxu0 %v1446
        %1522 = vmatpush.bf16.msra.mxu0 %v1442
        %1523 = vmatpush.bf16.msra.mxu0 %v1438
        %1524 = vmatpush.bf16.msra.mxu0 %v1434
        %1525 = vmatpush.bf16.msra.mxu0 %v1430
        %1526 = vmatpush.bf16.msra.mxu0 %v1426
        %1527 = vmatpush.bf16.msra.mxu0 %v1422
        %1528 = vmatpush.bf16.msra.mxu0 %v1418
        %1529 = vmatmul.bf16.gmra.mxu0 %v1276
        %v1530 = vpop.f32.mrf.mxu0
        %v1531 = vadd.f32 %v1314, %v1530
        %v1532 = vpop.f32.mrf.mxu0
        %v1533 = vadd.f32 %v1314, %v1532
        %1534 = vdwg.mxu0
        %v1535 = vmul.f32 %v1489, 0.5
        %v1536 = vmul.f32 %v1503, 0.5
        %v1537 = vmul.f32 %v1517, 0.5
        %v1538 = vmul.f32 %v1531, 0.5
        %v1539 = vmul.f32 %v1491, 0.5
        %v1540 = vmul.f32 %v1505, 0.5
        %v1541 = vmul.f32 %v1519, 0.5
        %v1542 = vmul.f32 %v1533, 0.5
        %v1543 = vmul.f32 %v1489, 0.70710677
        %v1544 = vmul.f32 %v1503, 0.70710677
        %v1545 = vmul.f32 %v1517, 0.70710677
        %v1546 = vmul.f32 %v1531, 0.70710677
        %v1547 = vmul.f32 %v1491, 0.70710677
        %v1548 = vmul.f32 %v1505, 0.70710677
        %v1549 = vmul.f32 %v1519, 0.70710677
        %v1550 = vmul.f32 %v1533, 0.70710677
        %v1551 = vmul.f32 %v1543, %v1543
        %v1552 = vmin.f32 16.0, %v1551
        %v1553 = vmul.f32 %v1552, 2.1237322e-06
        %v1554 = vadd.f32 %v1553, 0.00028619796
        %v1555 = vmul.f32 %v1552, %v1554
        %v1556 = vadd.f32 %v1555, 0.0036580483
        %v1557 = vmul.f32 %v1552, %v1556
        %v1558 = vadd.f32 %v1557, 0.05243302
        %v1559 = vmul.f32 %v1552, %v1558
        %v1560 = vadd.f32 %v1559, 0.18741608
        %v1561 = vmul.f32 %v1552, %v1560
        %v1562 = vadd.f32 %v1561, 1.1283791
        %v1563 = vmul.f32 %v1543, %v1562
        %v1564 = vmul.f32 %v1552, 3.8918573e-05
        %v1565 = vadd.f32 %v1564, 0.001143296
        %v1566 = vmul.f32 %v1552, %v1565
        %v1567 = vadd.f32 %v1566, 0.014752088
        %v1568 = vmul.f32 %v1552, %v1567
        %v1569 = vadd.f32 %v1568, 0.112945676
        %v1570 = vmul.f32 %v1552, %v1569
        %v1571 = vadd.f32 %v1570, 0.4994258
        %v1572 = vmul.f32 %v1552, %v1571
        %v1573 = vadd.f32 %v1572, 1.0
        %v1574 = vrcp.pop %v1573
        %v1575 = vmul.f32 %v1573, %v1574
        %v1576 = vsub.f32 1.0, %v1575
        %v1577 = vmul.f32 %v1574, %v1576
        %v1578 = vadd.f32 %v1574, %v1577
        %vm1579 = vweird.f32 %v1573
        %vm1580 = vweird.f32 %v1574
        %vm1581 = vmor %vm1579, %vm1580
        %v1582 = vsel %vm1581, %v1574, %v1578
        %v1583 = vand.u32 2147483647, %v1573
        %vm1584 = vcmp.eq.f32.partialorder %v1583, 8.507059e+37
        %v1585 = vand.u32 %v1573, 2147483648
        %v1586 = vor.u32 1.1754944e-38, %v1585
        %v1587 = vsel %vm1584, %v1586, %v1582
        %v1588 = vmul.f32 %v1563, %v1587
        %v1589 = vmin.f32 %v1588, 1.0
        %v1590 = vmax.f32 %v1589, -1.0
        %v1591 = vmul.f32 %v1544, %v1544
        %v1592 = vmin.f32 16.0, %v1591
        %v1593 = vmul.f32 %v1592, 2.1237322e-06
        %v1594 = vadd.f32 %v1593, 0.00028619796
        %v1595 = vmul.f32 %v1592, %v1594
        %v1596 = vadd.f32 %v1595, 0.0036580483
        %v1597 = vmul.f32 %v1592, %v1596
        %v1598 = vadd.f32 %v1597, 0.05243302
        %v1599 = vmul.f32 %v1592, %v1598
        %v1600 = vadd.f32 %v1599, 0.18741608
        %v1601 = vmul.f32 %v1592, %v1600
        %v1602 = vadd.f32 %v1601, 1.1283791
        %v1603 = vmul.f32 %v1544, %v1602
        %v1604 = vmul.f32 %v1592, 3.8918573e-05
        %v1605 = vadd.f32 %v1604, 0.001143296
        %v1606 = vmul.f32 %v1592, %v1605
        %v1607 = vadd.f32 %v1606, 0.014752088
        %v1608 = vmul.f32 %v1592, %v1607
        %v1609 = vadd.f32 %v1608, 0.112945676
        %v1610 = vmul.f32 %v1592, %v1609
        %v1611 = vadd.f32 %v1610, 0.4994258
        %v1612 = vmul.f32 %v1592, %v1611
        %v1613 = vadd.f32 %v1612, 1.0
        %v1614 = vrcp.pop %v1613
        %v1615 = vmul.f32 %v1613, %v1614
        %v1616 = vsub.f32 1.0, %v1615
        %v1617 = vmul.f32 %v1614, %v1616
        %v1618 = vadd.f32 %v1614, %v1617
        %vm1619 = vweird.f32 %v1613
        %vm1620 = vweird.f32 %v1614
        %vm1621 = vmor %vm1619, %vm1620
        %v1622 = vsel %vm1621, %v1614, %v1618
        %v1623 = vand.u32 2147483647, %v1613
        %vm1624 = vcmp.eq.f32.partialorder %v1623, 8.507059e+37
        %v1625 = vand.u32 %v1613, 2147483648
        %v1626 = vor.u32 1.1754944e-38, %v1625
        %v1627 = vsel %vm1624, %v1626, %v1622
        %v1628 = vmul.f32 %v1603, %v1627
        %v1629 = vmin.f32 %v1628, 1.0
        %v1630 = vmax.f32 %v1629, -1.0
        %v1631 = vmul.f32 %v1545, %v1545
        %v1632 = vmin.f32 16.0, %v1631
        %v1633 = vmul.f32 %v1632, 2.1237322e-06
        %v1634 = vadd.f32 %v1633, 0.00028619796
        %v1635 = vmul.f32 %v1632, %v1634
        %v1636 = vadd.f32 %v1635, 0.0036580483
        %v1637 = vmul.f32 %v1632, %v1636
        %v1638 = vadd.f32 %v1637, 0.05243302
        %v1639 = vmul.f32 %v1632, %v1638
        %v1640 = vadd.f32 %v1639, 0.18741608
        %v1641 = vmul.f32 %v1632, %v1640
        %v1642 = vadd.f32 %v1641, 1.1283791
        %v1643 = vmul.f32 %v1545, %v1642
        %v1644 = vmul.f32 %v1632, 3.8918573e-05
        %v1645 = vadd.f32 %v1644, 0.001143296
        %v1646 = vmul.f32 %v1632, %v1645
        %v1647 = vadd.f32 %v1646, 0.014752088
        %v1648 = vmul.f32 %v1632, %v1647
        %v1649 = vadd.f32 %v1648, 0.112945676
        %v1650 = vmul.f32 %v1632, %v1649
        %v1651 = vadd.f32 %v1650, 0.4994258
        %v1652 = vmul.f32 %v1632, %v1651
        %v1653 = vadd.f32 %v1652, 1.0
        %v1654 = vrcp.pop %v1653
        %v1655 = vmul.f32 %v1653, %v1654
        %v1656 = vsub.f32 1.0, %v1655
        %v1657 = vmul.f32 %v1654, %v1656
        %v1658 = vadd.f32 %v1654, %v1657
        %vm1659 = vweird.f32 %v1653
        %vm1660 = vweird.f32 %v1654
        %vm1661 = vmor %vm1659, %vm1660
        %v1662 = vsel %vm1661, %v1654, %v1658
        %v1663 = vand.u32 2147483647, %v1653
        %vm1664 = vcmp.eq.f32.partialorder %v1663, 8.507059e+37
        %v1665 = vand.u32 %v1653, 2147483648
        %v1666 = vor.u32 1.1754944e-38, %v1665
        %v1667 = vsel %vm1664, %v1666, %v1662
        %v1668 = vmul.f32 %v1643, %v1667
        %v1669 = vmin.f32 %v1668, 1.0
        %v1670 = vmax.f32 %v1669, -1.0
        %v1671 = vmul.f32 %v1546, %v1546
        %v1672 = vmin.f32 16.0, %v1671
        %v1673 = vmul.f32 %v1672, 2.1237322e-06
        %v1674 = vadd.f32 %v1673, 0.00028619796
        %v1675 = vmul.f32 %v1672, %v1674
        %v1676 = vadd.f32 %v1675, 0.0036580483
        %v1677 = vmul.f32 %v1672, %v1676
        %v1678 = vadd.f32 %v1677, 0.05243302
        %v1679 = vmul.f32 %v1672, %v1678
        %v1680 = vadd.f32 %v1679, 0.18741608
        %v1681 = vmul.f32 %v1672, %v1680
        %v1682 = vadd.f32 %v1681, 1.1283791
        %v1683 = vmul.f32 %v1546, %v1682
        %v1684 = vmul.f32 %v1672, 3.8918573e-05
        %v1685 = vadd.f32 %v1684, 0.001143296
        %v1686 = vmul.f32 %v1672, %v1685
        %v1687 = vadd.f32 %v1686, 0.014752088
        %v1688 = vmul.f32 %v1672, %v1687
        %v1689 = vadd.f32 %v1688, 0.112945676
        %v1690 = vmul.f32 %v1672, %v1689
        %v1691 = vadd.f32 %v1690, 0.4994258
        %v1692 = vmul.f32 %v1672, %v1691
        %v1693 = vadd.f32 %v1692, 1.0
        %v1694 = vrcp.pop %v1693
        %v1695 = vmul.f32 %v1693, %v1694
        %v1696 = vsub.f32 1.0, %v1695
        %v1697 = vmul.f32 %v1694, %v1696
        %v1698 = vadd.f32 %v1694, %v1697
        %vm1699 = vweird.f32 %v1693
        %vm1700 = vweird.f32 %v1694
        %vm1701 = vmor %vm1699, %vm1700
        %v1702 = vsel %vm1701, %v1694, %v1698
        %v1703 = vand.u32 2147483647, %v1693
        %vm1704 = vcmp.eq.f32.partialorder %v1703, 8.507059e+37
        %v1705 = vand.u32 %v1693, 2147483648
        %v1706 = vor.u32 1.1754944e-38, %v1705
        %v1707 = vsel %vm1704, %v1706, %v1702
        %v1708 = vmul.f32 %v1683, %v1707
        %v1709 = vmin.f32 %v1708, 1.0
        %v1710 = vmax.f32 %v1709, -1.0
        %v1711 = vmul.f32 %v1547, %v1547
        %v1712 = vmin.f32 16.0, %v1711
        %v1713 = vmul.f32 %v1712, 2.1237322e-06
        %v1714 = vadd.f32 %v1713, 0.00028619796
        %v1715 = vmul.f32 %v1712, %v1714
        %v1716 = vadd.f32 %v1715, 0.0036580483
        %v1717 = vmul.f32 %v1712, %v1716
        %v1718 = vadd.f32 %v1717, 0.05243302
        %v1719 = vmul.f32 %v1712, %v1718
        %v1720 = vadd.f32 %v1719, 0.18741608
        %v1721 = vmul.f32 %v1712, %v1720
        %v1722 = vadd.f32 %v1721, 1.1283791
        %v1723 = vmul.f32 %v1547, %v1722
        %v1724 = vmul.f32 %v1712, 3.8918573e-05
        %v1725 = vadd.f32 %v1724, 0.001143296
        %v1726 = vmul.f32 %v1712, %v1725
        %v1727 = vadd.f32 %v1726, 0.014752088
        %v1728 = vmul.f32 %v1712, %v1727
        %v1729 = vadd.f32 %v1728, 0.112945676
        %v1730 = vmul.f32 %v1712, %v1729
        %v1731 = vadd.f32 %v1730, 0.4994258
        %v1732 = vmul.f32 %v1712, %v1731
        %v1733 = vadd.f32 %v1732, 1.0
        %v1734 = vrcp.pop %v1733
        %v1735 = vmul.f32 %v1733, %v1734
        %v1736 = vsub.f32 1.0, %v1735
        %v1737 = vmul.f32 %v1734, %v1736
        %v1738 = vadd.f32 %v1734, %v1737
        %vm1739 = vweird.f32 %v1733
        %vm1740 = vweird.f32 %v1734
        %vm1741 = vmor %vm1739, %vm1740
        %v1742 = vsel %vm1741, %v1734, %v1738
        %v1743 = vand.u32 2147483647, %v1733
        %vm1744 = vcmp.eq.f32.partialorder %v1743, 8.507059e+37
        %v1745 = vand.u32 %v1733, 2147483648
        %v1746 = vor.u32 1.1754944e-38, %v1745
        %v1747 = vsel %vm1744, %v1746, %v1742
        %v1748 = vmul.f32 %v1723, %v1747
        %v1749 = vmin.f32 %v1748, 1.0
        %v1750 = vmax.f32 %v1749, -1.0
        %v1751 = vmul.f32 %v1548, %v1548
        %v1752 = vmin.f32 16.0, %v1751
        %v1753 = vmul.f32 %v1752, 2.1237322e-06
        %v1754 = vadd.f32 %v1753, 0.00028619796
        %v1755 = vmul.f32 %v1752, %v1754
        %v1756 = vadd.f32 %v1755, 0.0036580483
        %v1757 = vmul.f32 %v1752, %v1756
        %v1758 = vadd.f32 %v1757, 0.05243302
        %v1759 = vmul.f32 %v1752, %v1758
        %v1760 = vadd.f32 %v1759, 0.18741608
        %v1761 = vmul.f32 %v1752, %v1760
        %v1762 = vadd.f32 %v1761, 1.1283791
        %v1763 = vmul.f32 %v1548, %v1762
        %v1764 = vmul.f32 %v1752, 3.8918573e-05
        %v1765 = vadd.f32 %v1764, 0.001143296
        %v1766 = vmul.f32 %v1752, %v1765
        %v1767 = vadd.f32 %v1766, 0.014752088
        %v1768 = vmul.f32 %v1752, %v1767
        %v1769 = vadd.f32 %v1768, 0.112945676
        %v1770 = vmul.f32 %v1752, %v1769
        %v1771 = vadd.f32 %v1770, 0.4994258
        %v1772 = vmul.f32 %v1752, %v1771
        %v1773 = vadd.f32 %v1772, 1.0
        %v1774 = vrcp.pop %v1773
        %v1775 = vmul.f32 %v1773, %v1774
        %v1776 = vsub.f32 1.0, %v1775
        %v1777 = vmul.f32 %v1774, %v1776
        %v1778 = vadd.f32 %v1774, %v1777
        %vm1779 = vweird.f32 %v1773
        %vm1780 = vweird.f32 %v1774
        %vm1781 = vmor %vm1779, %vm1780
        %v1782 = vsel %vm1781, %v1774, %v1778
        %v1783 = vand.u32 2147483647, %v1773
        %vm1784 = vcmp.eq.f32.partialorder %v1783, 8.507059e+37
        %v1785 = vand.u32 %v1773, 2147483648
        %v1786 = vor.u32 1.1754944e-38, %v1785
        %v1787 = vsel %vm1784, %v1786, %v1782
        %v1788 = vmul.f32 %v1763, %v1787
        %v1789 = vmin.f32 %v1788, 1.0
        %v1790 = vmax.f32 %v1789, -1.0
        %v1791 = vmul.f32 %v1549, %v1549
        %v1792 = vmin.f32 16.0, %v1791
        %v1793 = vmul.f32 %v1792, 2.1237322e-06
        %v1794 = vadd.f32 %v1793, 0.00028619796
        %v1795 = vmul.f32 %v1792, %v1794
        %v1796 = vadd.f32 %v1795, 0.0036580483
        %v1797 = vmul.f32 %v1792, %v1796
        %v1798 = vadd.f32 %v1797, 0.05243302
        %v1799 = vmul.f32 %v1792, %v1798
        %v1800 = vadd.f32 %v1799, 0.18741608
        %v1801 = vmul.f32 %v1792, %v1800
        %v1802 = vadd.f32 %v1801, 1.1283791
        %v1803 = vmul.f32 %v1549, %v1802
        %v1804 = vmul.f32 %v1792, 3.8918573e-05
        %v1805 = vadd.f32 %v1804, 0.001143296
        %v1806 = vmul.f32 %v1792, %v1805
        %v1807 = vadd.f32 %v1806, 0.014752088
        %v1808 = vmul.f32 %v1792, %v1807
        %v1809 = vadd.f32 %v1808, 0.112945676
        %v1810 = vmul.f32 %v1792, %v1809
        %v1811 = vadd.f32 %v1810, 0.4994258
        %v1812 = vmul.f32 %v1792, %v1811
        %v1813 = vadd.f32 %v1812, 1.0
        %v1814 = vrcp.pop %v1813
        %v1815 = vmul.f32 %v1813, %v1814
        %v1816 = vsub.f32 1.0, %v1815
        %v1817 = vmul.f32 %v1814, %v1816
        %v1818 = vadd.f32 %v1814, %v1817
        %vm1819 = vweird.f32 %v1813
        %vm1820 = vweird.f32 %v1814
        %vm1821 = vmor %vm1819, %vm1820
        %v1822 = vsel %vm1821, %v1814, %v1818
        %v1823 = vand.u32 2147483647, %v1813
        %vm1824 = vcmp.eq.f32.partialorder %v1823, 8.507059e+37
        %v1825 = vand.u32 %v1813, 2147483648
        %v1826 = vor.u32 1.1754944e-38, %v1825
        %v1827 = vsel %vm1824, %v1826, %v1822
        %v1828 = vmul.f32 %v1803, %v1827
        %v1829 = vmin.f32 %v1828, 1.0
        %v1830 = vmax.f32 %v1829, -1.0
        %v1831 = vmul.f32 %v1550, %v1550
        %v1832 = vmin.f32 16.0, %v1831
        %v1833 = vmul.f32 %v1832, 2.1237322e-06
        %v1834 = vadd.f32 %v1833, 0.00028619796
        %v1835 = vmul.f32 %v1832, %v1834
        %v1836 = vadd.f32 %v1835, 0.0036580483
        %v1837 = vmul.f32 %v1832, %v1836
        %v1838 = vadd.f32 %v1837, 0.05243302
        %v1839 = vmul.f32 %v1832, %v1838
        %v1840 = vadd.f32 %v1839, 0.18741608
        %v1841 = vmul.f32 %v1832, %v1840
        %v1842 = vadd.f32 %v1841, 1.1283791
        %v1843 = vmul.f32 %v1550, %v1842
        %v1844 = vmul.f32 %v1832, 3.8918573e-05
        %v1845 = vadd.f32 %v1844, 0.001143296
        %v1846 = vmul.f32 %v1832, %v1845
        %v1847 = vadd.f32 %v1846, 0.014752088
        %v1848 = vmul.f32 %v1832, %v1847
        %v1849 = vadd.f32 %v1848, 0.112945676
        %v1850 = vmul.f32 %v1832, %v1849
        %v1851 = vadd.f32 %v1850, 0.4994258
        %v1852 = vmul.f32 %v1832, %v1851
        %v1853 = vadd.f32 %v1852, 1.0
        %v1854 = vrcp.pop %v1853
        %v1855 = vmul.f32 %v1853, %v1854
        %v1856 = vsub.f32 1.0, %v1855
        %v1857 = vmul.f32 %v1854, %v1856
        %v1858 = vadd.f32 %v1854, %v1857
        %vm1859 = vweird.f32 %v1853
        %vm1860 = vweird.f32 %v1854
        %vm1861 = vmor %vm1859, %vm1860
        %v1862 = vsel %vm1861, %v1854, %v1858
        %v1863 = vand.u32 2147483647, %v1853
        %vm1864 = vcmp.eq.f32.partialorder %v1863, 8.507059e+37
        %v1865 = vand.u32 %v1853, 2147483648
        %v1866 = vor.u32 1.1754944e-38, %v1865
        %v1867 = vsel %vm1864, %v1866, %v1862
        %v1868 = vmul.f32 %v1843, %v1867
        %v1869 = vmin.f32 %v1868, 1.0
        %v1870 = vmax.f32 %v1869, -1.0
        %v1871 = vadd.f32 %v1590, 1.0
        %v1872 = vadd.f32 %v1630, 1.0
        %v1873 = vadd.f32 %v1670, 1.0
        %v1874 = vadd.f32 %v1710, 1.0
        %v1875 = vadd.f32 %v1750, 1.0
        %v1876 = vadd.f32 %v1790, 1.0
        %v1877 = vadd.f32 %v1830, 1.0
        %v1878 = vadd.f32 %v1870, 1.0
        %v1879 = vmul.f32 %v1535, %v1871
        %v1880 = vmul.f32 %v1536, %v1872
        %v1881 = vmul.f32 %v1537, %v1873
        %v1882 = vmul.f32 %v1538, %v1874
        %v1883 = vmul.f32 %v1539, %v1875
        %v1884 = vmul.f32 %v1540, %v1876
        %v1885 = vmul.f32 %v1541, %v1877
        %v1886 = vmul.f32 %v1542, %v1878
        %v1887 = vpack.c.bf16 %v1883, %v1879
        %v1888 = vpack.c.bf16 %v1884, %v1880
        %v1889 = vpack.c.bf16 %v1885, %v1881
        %v1890 = vpack.c.bf16 %v1886, %v1882
        %v1891 = vld [vmem:[#allocation8] sm:$0xf]
        %v1892 = vld [vmem:[#allocation8 + $0x4] sm:$0xf]
        %v1893 = vld [vmem:[#allocation8 + $0x8] sm:$0xf]
        %v1894 = vld [vmem:[#allocation8 + $0xc] sm:$0xf]
        %v1895 = vld [vmem:[#allocation8 + $0x10] sm:$0xf]
        %v1896 = vld [vmem:[#allocation8 + $0x14] sm:$0xf]
        %v1897 = vld [vmem:[#allocation8 + $0x18] sm:$0xf]
        %v1898 = vld [vmem:[#allocation8 + $0x1c] sm:$0xf]
        %v1899 = vld [vmem:[#allocation8 + $0x20] sm:$0xf]
        %v1900 = vld [vmem:[#allocation8 + $0x24] sm:$0xf]
        %v1901 = vld [vmem:[#allocation8 + $0x28] sm:$0xf]
        %v1902 = vld [vmem:[#allocation8 + $0x2c] sm:$0xf]
        %v1903 = vld [vmem:[#allocation8 + $0x30] sm:$0xf]
        %v1904 = vld [vmem:[#allocation8 + $0x34] sm:$0xf]
        %v1905 = vld [vmem:[#allocation8 + $0x38] sm:$0xf]
        %v1906 = vld [vmem:[#allocation8 + $0x3c] sm:$0xf]
        %v1907 = vld [vmem:[#allocation8 + $0x40] sm:$0xf]
        %v1908 = vld [vmem:[#allocation8 + $0x44] sm:$0xf]
        %v1909 = vld [vmem:[#allocation8 + $0x48] sm:$0xf]
        %v1910 = vld [vmem:[#allocation8 + $0x4c] sm:$0xf]
        %v1911 = vld [vmem:[#allocation8 + $0x50] sm:$0xf]
        %v1912 = vld [vmem:[#allocation8 + $0x54] sm:$0xf]
        %v1913 = vld [vmem:[#allocation8 + $0x58] sm:$0xf]
        %v1914 = vld [vmem:[#allocation8 + $0x5c] sm:$0xf]
        %v1915 = vld [vmem:[#allocation8 + $0x60] sm:$0xf]
        %v1916 = vld [vmem:[#allocation8 + $0x64] sm:$0xf]
        %v1917 = vld [vmem:[#allocation8 + $0x68] sm:$0xf]
        %v1918 = vld [vmem:[#allocation8 + $0x6c] sm:$0xf]
        %v1919 = vld [vmem:[#allocation8 + $0x70] sm:$0xf]
        %v1920 = vld [vmem:[#allocation8 + $0x74] sm:$0xf]
        %v1921 = vld [vmem:[#allocation8 + $0x78] sm:$0xf]
        %v1922 = vld [vmem:[#allocation8 + $0x7c] sm:$0xf]
        %v1923 = vld [vmem:[#allocation8 + $0x80] sm:$0xf]
        %v1924 = vld [vmem:[#allocation8 + $0x84] sm:$0xf]
        %v1925 = vld [vmem:[#allocation8 + $0x88] sm:$0xf]
        %v1926 = vld [vmem:[#allocation8 + $0x8c] sm:$0xf]
        %v1927 = vld [vmem:[#allocation8 + $0x90] sm:$0xf]
        %v1928 = vld [vmem:[#allocation8 + $0x94] sm:$0xf]
        %v1929 = vld [vmem:[#allocation8 + $0x98] sm:$0xf]
        %v1930 = vld [vmem:[#allocation8 + $0x9c] sm:$0xf]
        %v1931 = vld [vmem:[#allocation8 + $0xa0] sm:$0xf]
        %v1932 = vld [vmem:[#allocation8 + $0xa4] sm:$0xf]
        %v1933 = vld [vmem:[#allocation8 + $0xa8] sm:$0xf]
        %v1934 = vld [vmem:[#allocation8 + $0xac] sm:$0xf]
        %v1935 = vld [vmem:[#allocation8 + $0xb0] sm:$0xf]
        %v1936 = vld [vmem:[#allocation8 + $0xb4] sm:$0xf]
        %v1937 = vld [vmem:[#allocation8 + $0xb8] sm:$0xf]
        %v1938 = vld [vmem:[#allocation8 + $0xbc] sm:$0xf]
        %v1939 = vld [vmem:[#allocation8 + $0xc0] sm:$0xf]
        %v1940 = vld [vmem:[#allocation8 + $0xc4] sm:$0xf]
        %v1941 = vld [vmem:[#allocation8 + $0xc8] sm:$0xf]
        %v1942 = vld [vmem:[#allocation8 + $0xcc] sm:$0xf]
        %v1943 = vld [vmem:[#allocation8 + $0xd0] sm:$0xf]
        %v1944 = vld [vmem:[#allocation8 + $0xd4] sm:$0xf]
        %v1945 = vld [vmem:[#allocation8 + $0xd8] sm:$0xf]
        %v1946 = vld [vmem:[#allocation8 + $0xdc] sm:$0xf]
        %v1947 = vld [vmem:[#allocation8 + $0xe0] sm:$0xf]
        %v1948 = vld [vmem:[#allocation8 + $0xe4] sm:$0xf]
        %v1949 = vld [vmem:[#allocation8 + $0xe8] sm:$0xf]
        %v1950 = vld [vmem:[#allocation8 + $0xec] sm:$0xf]
        %v1951 = vld [vmem:[#allocation8 + $0xf0] sm:$0xf]
        %v1952 = vld [vmem:[#allocation8 + $0xf4] sm:$0xf]
        %v1953 = vld [vmem:[#allocation8 + $0xf8] sm:$0xf]
        %v1954 = vld [vmem:[#allocation8 + $0xfc] sm:$0xf]
        %v1955 = vld [vmem:[%s16] sm:$0x1]
        %v1957 = vperm.slane %v1955, 0
        %v2023 = vunpack.c.l.b16 %v1891
        %v2024 = vunpack.c.l.b16 %v1892
        %v2025 = vunpack.c.l.b16 %v1893
        %v2026 = vunpack.c.l.b16 %v1894
        %v2027 = vunpack.c.l.b16 %v1895
        %v2028 = vunpack.c.l.b16 %v1896
        %v2029 = vunpack.c.l.b16 %v1897
        %v2030 = vunpack.c.l.b16 %v1898
        %v2031 = vunpack.c.l.b16 %v1899
        %v2032 = vunpack.c.l.b16 %v1900
        %v2033 = vunpack.c.l.b16 %v1901
        %v2034 = vunpack.c.l.b16 %v1902
        %v2035 = vunpack.c.l.b16 %v1903
        %v2036 = vunpack.c.l.b16 %v1904
        %v2037 = vunpack.c.l.b16 %v1905
        %v2038 = vunpack.c.l.b16 %v1906
        %v2039 = vunpack.c.l.b16 %v1907
        %v2040 = vunpack.c.l.b16 %v1908
        %v2041 = vunpack.c.l.b16 %v1909
        %v2042 = vunpack.c.l.b16 %v1910
        %v2043 = vunpack.c.l.b16 %v1911
        %v2044 = vunpack.c.l.b16 %v1912
        %v2045 = vunpack.c.l.b16 %v1913
        %v2046 = vunpack.c.l.b16 %v1914
        %v2047 = vunpack.c.l.b16 %v1915
        %v2048 = vunpack.c.l.b16 %v1916
        %v2049 = vunpack.c.l.b16 %v1917
        %v2050 = vunpack.c.l.b16 %v1918
        %v2051 = vunpack.c.l.b16 %v1919
        %v2052 = vunpack.c.l.b16 %v1920
        %v2053 = vunpack.c.l.b16 %v1921
        %v2054 = vunpack.c.l.b16 %v1922
        %v2055 = vunpack.c.l.b16 %v1923
        %v2056 = vunpack.c.l.b16 %v1924
        %v2057 = vunpack.c.l.b16 %v1925
        %v2058 = vunpack.c.l.b16 %v1926
        %v2059 = vunpack.c.l.b16 %v1927
        %v2060 = vunpack.c.l.b16 %v1928
        %v2061 = vunpack.c.l.b16 %v1929
        %v2062 = vunpack.c.l.b16 %v1930
        %v2063 = vunpack.c.l.b16 %v1931
        %v2064 = vunpack.c.l.b16 %v1932
        %v2065 = vunpack.c.l.b16 %v1933
        %v2066 = vunpack.c.l.b16 %v1934
        %v2067 = vunpack.c.l.b16 %v1935
        %v2068 = vunpack.c.l.b16 %v1936
        %v2069 = vunpack.c.l.b16 %v1937
        %v2070 = vunpack.c.l.b16 %v1938
        %v2071 = vunpack.c.l.b16 %v1939
        %v2072 = vunpack.c.l.b16 %v1940
        %v2073 = vunpack.c.l.b16 %v1941
        %v2074 = vunpack.c.l.b16 %v1942
        %v2075 = vunpack.c.l.b16 %v1943
        %v2076 = vunpack.c.l.b16 %v1944
        %v2077 = vunpack.c.l.b16 %v1945
        %v2078 = vunpack.c.l.b16 %v1946
        %v2079 = vunpack.c.l.b16 %v1947
        %v2080 = vunpack.c.l.b16 %v1948
        %v2081 = vunpack.c.l.b16 %v1949
        %v2082 = vunpack.c.l.b16 %v1950
        %v2083 = vunpack.c.l.b16 %v1951
        %v2084 = vunpack.c.l.b16 %v1952
        %v2085 = vunpack.c.l.b16 %v1953
        %v2086 = vunpack.c.l.b16 %v1954
        %v2087 = vpack.c.b16 %v2024, %v2023
        %v2088 = vpack.c.b16 %v2026, %v2025
        %v2089 = vpack.c.b16 %v2028, %v2027
        %v2090 = vpack.c.b16 %v2030, %v2029
        %v2091 = vpack.c.b16 %v2032, %v2031
        %v2092 = vpack.c.b16 %v2034, %v2033
        %v2093 = vpack.c.b16 %v2036, %v2035
        %v2094 = vpack.c.b16 %v2038, %v2037
        %v2095 = vpack.c.b16 %v2040, %v2039
        %v2096 = vpack.c.b16 %v2042, %v2041
        %v2097 = vpack.c.b16 %v2044, %v2043
        %v2098 = vpack.c.b16 %v2046, %v2045
        %v2099 = vpack.c.b16 %v2048, %v2047
        %v2100 = vpack.c.b16 %v2050, %v2049
        %v2101 = vpack.c.b16 %v2052, %v2051
        %v2102 = vpack.c.b16 %v2054, %v2053
        %v2103 = vpack.c.b16 %v2056, %v2055
        %v2104 = vpack.c.b16 %v2058, %v2057
        %v2105 = vpack.c.b16 %v2060, %v2059
        %v2106 = vpack.c.b16 %v2062, %v2061
        %v2107 = vpack.c.b16 %v2064, %v2063
        %v2108 = vpack.c.b16 %v2066, %v2065
        %v2109 = vpack.c.b16 %v2068, %v2067
        %v2110 = vpack.c.b16 %v2070, %v2069
        %v2111 = vpack.c.b16 %v2072, %v2071
        %v2112 = vpack.c.b16 %v2074, %v2073
        %v2113 = vpack.c.b16 %v2076, %v2075
        %v2114 = vpack.c.b16 %v2078, %v2077
        %v2115 = vpack.c.b16 %v2080, %v2079
        %v2116 = vpack.c.b16 %v2082, %v2081
        %v2117 = vpack.c.b16 %v2084, %v2083
        %v2118 = vpack.c.b16 %v2086, %v2085
        %2151 = vmatpush.bf16.msra.mxu0 %v2094
        %2152 = vmatpush.bf16.msra.mxu0 %v2093
        %2153 = vmatpush.bf16.msra.mxu0 %v2092
        %2154 = vmatpush.bf16.msra.mxu0 %v2091
        %2155 = vmatpush.bf16.msra.mxu0 %v2090
        %2156 = vmatpush.bf16.msra.mxu0 %v2089
        %2157 = vmatpush.bf16.msra.mxu0 %v2088
        %2158 = vmatpush.bf16.msra.mxu0 %v2087
        %2159 = vmatmul.bf16.gmra.mxu0 %v1887
        %v2160 = vpop.f32.mrf.mxu0
        %v2161 = vadd.f32 %v1957, %v2160
        %v2162 = vpop.f32.mrf.mxu0
        %v2163 = vadd.f32 %v1957, %v2162
        %2164 = vdwg.mxu0
        %2165 = vmatpush.bf16.msra.mxu0 %v2102
        %2166 = vmatpush.bf16.msra.mxu0 %v2101
        %2167 = vmatpush.bf16.msra.mxu0 %v2100
        %2168 = vmatpush.bf16.msra.mxu0 %v2099
        %2169 = vmatpush.bf16.msra.mxu0 %v2098
        %2170 = vmatpush.bf16.msra.mxu0 %v2097
        %2171 = vmatpush.bf16.msra.mxu0 %v2096
        %2172 = vmatpush.bf16.msra.mxu0 %v2095
        %2173 = vmatmul.bf16.gmra.mxu0 %v1888
        %v2174 = vpop.f32.mrf.mxu0
        %v2175 = vadd.f32 %v2161, %v2174
        %v2176 = vpop.f32.mrf.mxu0
        %v2177 = vadd.f32 %v2163, %v2176
        %2178 = vdwg.mxu0
        %2179 = vmatpush.bf16.msra.mxu0 %v2110
        %2180 = vmatpush.bf16.msra.mxu0 %v2109
        %2181 = vmatpush.bf16.msra.mxu0 %v2108
        %2182 = vmatpush.bf16.msra.mxu0 %v2107
        %2183 = vmatpush.bf16.msra.mxu0 %v2106
        %2184 = vmatpush.bf16.msra.mxu0 %v2105
        %2185 = vmatpush.bf16.msra.mxu0 %v2104
        %2186 = vmatpush.bf16.msra.mxu0 %v2103
        %2187 = vmatmul.bf16.gmra.mxu0 %v1889
        %v2188 = vpop.f32.mrf.mxu0
        %v2189 = vadd.f32 %v2175, %v2188
        %v2190 = vpop.f32.mrf.mxu0
        %v2191 = vadd.f32 %v2177, %v2190
        %2192 = vdwg.mxu0
        %2193 = vmatpush.bf16.msra.mxu0 %v2118
        %2194 = vmatpush.bf16.msra.mxu0 %v2117
        %2195 = vmatpush.bf16.msra.mxu0 %v2116
        %2196 = vmatpush.bf16.msra.mxu0 %v2115
        %2197 = vmatpush.bf16.msra.mxu0 %v2114
        %2198 = vmatpush.bf16.msra.mxu0 %v2113
        %2199 = vmatpush.bf16.msra.mxu0 %v2112
        %2200 = vmatpush.bf16.msra.mxu0 %v2111
        %2201 = vmatmul.bf16.gmra.mxu0 %v1890
        %v2202 = vpop.f32.mrf.mxu0
        %v2203 = vadd.f32 %v2189, %v2202
        %v2204 = vpop.f32.mrf.mxu0
        %v2205 = vadd.f32 %v2191, %v2204
        %2206 = vdwg.mxu0
        %v2207 = vadd.f32 %v2203, %v1234
        %v2208 = vadd.f32 %v2205, %v1235
        %2209 = vst [vmem:[%s633] sm:$0xff] %v2207
        %2210 = vst [vmem:[%s633 + $0x8] sm:$0xff] %v2208
        %s2211 = sand.u32 %s411, 1
        %s2212 = scalar_lea.sflag [#allocation4], %s2211
        %s2213 = sand.u32 %s411, 1
        %s2214 = smul.addr %s2213, 16
        %s2215 = scalar_lea.vmem [#allocation10], %s2214
        // Predicated region
        $region105: #{tpu_custom_call.1} parent=87 // pred_check
          %p2216 = pneg %p421
        $region106: #{tpu_custom_call.1} parent=87 // pred_check_branch
          %2218 = sbr.rel (%p2216) target = $region108
        $region107: #{tpu_custom_call.1} parent=87 // pred_region
          %2220 = vsyncadd %s2212, 0
          %s2221 = smul.addr %s36, 2
          %s2222 = smul.addr %s2221, 8
          %s2223 = scalar_lea.hbm %s17, %s2222
          %s2224 = sshll.u32 %s2215, 4
          %s2225 = int_to_ptr.vmem [resolvable:$true] %s2224
          %s2226 = sshll.u32 %s2223, 4
          %s2227 = int_to_ptr.hbm [resolvable:$true] %s2226
          %2232 = dma.vmem_to_hbm [thread:$0]  %s2225, 256, %s2227, %s2212, 128, 128, 8
        $region108: #{tpu_custom_call.1} parent=87 // pred_fallthru
          _
      $region88: #{tpu_custom_call.1} parent=5 // pred_fallthru
        _
      %p2233 = scmp.le.s32.totalorder 2, %s31
      // Predicated region
      $region109: #{tpu_custom_call.1} parent=5 // pred_check
        %p2234 = pneg %p2233
      $region110: #{tpu_custom_call.1} parent=5 // pred_check_branch
        %2236 = sbr.rel (%p2234) target = $region112
      $region111: #{tpu_custom_call.1} parent=5 // pred_region
        %s2237 = ssub.s32 %s31, 2
        // Predicated region
        $region113: #{tpu_custom_call.1} parent=111 // pred_check
          %p2238 = pneg %p427
        $region114: #{tpu_custom_call.1} parent=111 // pred_check_branch
          %2240 = sbr.rel (%p2238) target = $region116
        $region115: #{tpu_custom_call.1} parent=111 // pred_region
          %s2241 = sand.u32 %s412, 1
          %s2242 = scalar_lea.sflag [#allocation4], %s2241
          %s2243 = sand.u32 %s412, 1
          %s2244 = smul.addr %s2243, 16
          %s2245 = scalar_lea.vmem [#allocation10], %s2244
          %2247 = dma.done %s2242, 256
        $region116: #{tpu_custom_call.1} parent=111 // pred_fallthru
          _
      $region112: #{tpu_custom_call.1} parent=5 // pred_fallthru
        _
    $region6: #{tpu_custom_call.1} parent=1 // loop_footer
      %s35 = sadd.s32 1, %s31
    $region7: #{tpu_custom_call.1} parent=1 // loop_footer_branch
      %30 = sbr.rel target = $region3
    $region8: #{tpu_custom_call.1} parent=1 // loop_exit
      _
    %2248 = vsyncpa [#allocation3], 1
    %s2249 = scalar_lea.sflag [#allocation3], 1
    %2250 = vsyncpa %s2249, 1
    %2251 = vsyncpa [#allocation6], 1
    %2252 = vsyncpa [#allocation9], 1
    %2253 = vsyncpa [#allocation4], 1
    %s2254 = scalar_lea.sflag [#allocation4], 1
    %2255 = vsyncpa %s2254, 1

</llo_original>
